<compile_context>
chip_gen: v7x
topology: tpu7x:2x2x1
jax: 0.10.0
libtpu: 0.0.40
codegen_flags: <defaults>
</compile_context>

<pallas_src>
import functools

import jax
import jax.numpy as jnp
from jax.experimental import pallas as pl
from jax.experimental.pallas import tpu as pltpu

D = 512          # hidden attention dim (module hard-codes self.D = 512)
K = 2            # number of attention heads / pooled views (self.K = 2)
NEG_BIG = -1e30
ROW_ALIGN = 16   # sublane alignment for bf16-packed x tiles


def _sigmoid(z):
    # tanh-based sigmoid: exact for finite z and handles +/-inf boundaries (-> 1 / 0).
    return 0.5 * (jnp.tanh(0.5 * z) + 1.0)


def _round_up(v, m):
    return ((v + m - 1) // m) * m


# Per-generation tile / VMEM-budget / gating-dtype policy.
_GEN_CONFIG = {
    "v7x":   dict(tile_n=1024, vmem_limit=48 * 1024 * 1024, bf16_gating=True),
    "v6e":   dict(tile_n=1024, vmem_limit=100 * 1024 * 1024, bf16_gating=True),
    "v5":    dict(tile_n=1024, vmem_limit=96 * 1024 * 1024, bf16_gating=False),
    "other": dict(tile_n=512,  vmem_limit=32 * 1024 * 1024, bf16_gating=False),
}


def _tpu_generation():
    try:
        kind = jax.devices()[0].device_kind.lower()
    except Exception:
        return "other"
    if "v7" in kind or "7x" in kind:
        return "v7x"
    if "v6" in kind or "trillium" in kind:
        return "v6e"
    if "v5" in kind:
        return "v5"
    return "other"


def _make_kernel(n_valid, tile_n, bf16_gating):
    """Build the kernel with bag size, tile size and dtype policy baked in (static)."""

    def kernel(x_ref, wvu_ref, bvu_ref, wwt_ref, wc_ref, hi_ref, lo_ref, scal_ref,
               out_ref, m_scr, l_scr, acc_scr):
        step = pl.program_id(0)

        @pl.when(step == 0)
        def _init():
            m_scr[...] = jnp.full(m_scr.shape, NEG_BIG, jnp.float32)
            l_scr[...] = jnp.zeros(l_scr.shape, jnp.float32)
            acc_scr[...] = jnp.zeros(acc_scr.shape, jnp.float32)

        x = x_ref[...]                                                     # (TN, L) bf16

        # Fused attention_V | attention_U projection: one MXU matmul, bf16 in, f32 acc.
        h = jnp.dot(x, wvu_ref[...],
                    preferred_element_type=jnp.float32) + bvu_ref[...]     # (TN, 2D) f32

        # Gating nonlinearity: bf16 EUP path on v6e/v7x (halves EUP pushes, the
        # binding slot for small/medium L); f32 on v5-class chips.
        if bf16_gating:
            hb = h.astype(jnp.bfloat16)
            gated = (jnp.tanh(hb[:, :D]) * _sigmoid(hb[:, D:])).astype(jnp.float32)
        else:
            gated = jnp.tanh(h[:, :D]) * _sigmoid(h[:, D:])               # (TN, D) f32

        # Valid-row mask for the (zero-padded) last tile.  Invariant: every tile has
        # >= 1 valid row (n_pad - n < tile_n by construction), so the online-softmax
        # running max is never still NEG_BIG after its first update.
        row = jax.lax.broadcasted_iota(jnp.int32, (tile_n, 1), 0) + step * tile_n
        row_ok = row < n_valid                                             # (TN, 1)

        # Per-head (K = 2, fully unrolled) online softmax over the instance axis with
        # a lane-dense (K, L) pooled accumulator; per-head state is a (1, 1) splat so
        # no tiny transposes / lane-sparse tiles are materialized.
        for k in range(K):
            # attention_weights row k: VPU multiply + XLU lane reduce (a 2-lane-wide
            # MXU matmul would be wasteful; MXU has ample slack anyway).
            ak = jnp.sum(gated * wwt_ref[k:k + 1, :], axis=-1,
                         keepdims=True) + scal_ref[k]                      # (TN, 1)
            ak = jnp.where(row_ok, ak, NEG_BIG)

            m_prev = m_scr[k:k + 1, :]                                     # (1, 1)
            m_new = jnp.maximum(m_prev, jnp.max(ak, axis=0, keepdims=True))
            corr = jnp.exp(m_prev - m_new)                                 # (1, 1)
            p = jnp.exp(ak - m_new)                                        # (TN, 1) f32
            l_scr[k:k + 1, :] = (corr * l_scr[k:k + 1, :]
                                 + jnp.sum(p, axis=0, keepdims=True))

            # Pooled bag feature for head k: p^T @ x on the MXU, bf16 in, f32 acc.
            pooled = jax.lax.dot_general(p.astype(x.dtype), x,
                                         (((0,), (0,)), ((), ())),
                                         preferred_element_type=jnp.float32)  # (1, L)
            acc_scr[k:k + 1, :] = corr * acc_scr[k:k + 1, :] + pooled
            m_scr[k:k + 1, :] = m_new

        @pl.when(step == pl.num_programs(0) - 1)
        def _finalize():
            inv_l = pl.reciprocal(l_scr[...], approx=True)                 # (K, 1)
            m_pool = acc_scr[...] * inv_l                                  # (K, L) == M
            # classifier Linear(K*L, 1) on row-major flattened M, lane-dense reduce.
            y = jnp.sum(m_pool * wc_ref[...]) + scal_ref[K]
            pred = y * scal_ref[K + 1]
            out_ref[...] = (_sigmoid(hi_ref[...] - pred)
                            - _sigmoid(lo_ref[...] - pred))

    return kernel


def init_params(key, input_size, output_class, var_scaling=2.0, cutp_scale=2.0):
    L = input_size
    ks = jax.random.split(key, 4)

    def linear(k, fan_in, fan_out):
        bound = 1.0 / jnp.sqrt(jnp.float32(fan_in))
        kw, kb = jax.random.split(k)
        w = jax.random.uniform(kw, (fan_in, fan_out), jnp.float32, -bound, bound)
        b = jax.random.uniform(kb, (1, fan_out), jnp.float32, -bound, bound)
        return w, b

    wv, bv = linear(ks[0], L, D)
    wu, bu = linear(ks[1], L, D)
    ww, bw = linear(ks[2], D, K)
    wc, bc = linear(ks[3], K * L, 1)            # classifier weight, stored (K*L, 1)
    wc_kl = wc.reshape(K, L)                    # matches torch row-major flatten of M

    cutpoints = (cutp_scale *
                 (jnp.arange(1, output_class, dtype=jnp.float32) - output_class * 0.5))
    seq = jnp.concatenate([jnp.array([-jnp.inf], jnp.float32),
                           cutpoints,
                           jnp.array([jnp.inf], jnp.float32)])              # (C+1,)
    vs = jnp.float32(var_scaling)

    return dict(
        # f32 originals (reference / "PyTorch" parameters)
        wv=wv, bv=bv, wu=wu, bu=bu, ww=ww, bw=bw, wc_kl=wc_kl, bc=bc, vs=vs,
        cutpoints=cutpoints,
        seq_hi=seq[1:][None, :],                                            # (1, C)
        seq_lo=seq[:-1][None, :],                                           # (1, C)
        # kernel-side fused / transposed / bf16 copies
        wvu_bf16=jnp.concatenate([wv, wu], axis=1).astype(jnp.bfloat16),    # (L, 2D)
        bvu=jnp.concatenate([bv, bu], axis=1),                              # (1, 2D)
        wwt=ww.T,                                                           # (K, D)
        scal=jnp.concatenate(                                               # (K+2,) SMEM
            [bw.reshape(-1), bc.reshape(-1),
             jnp.array([var_scaling], jnp.float32)]),
    )


def gated_attention_forward(x, p, *, tile_n=None, single_buffer_weights=True):
    x2 = jnp.squeeze(x, axis=0).astype(jnp.bfloat16)     # stream x as bf16
    n, l_feat = x2.shape
    c = p["seq_hi"].shape[1]

    cfg = _GEN_CONFIG[_tpu_generation()]
    vmem_limit = cfg["vmem_limit"]
    if tile_n is None:
        tile_n = cfg["tile_n"]
    assert tile_n % ROW_ALIGN == 0, "tile_n must be a multiple of 16"
    # Keep the double-buffered bf16 x stream within roughly half the VMEM budget.
    max_tn = (vmem_limit // 2) // (2 * l_feat * 2)
    max_tn = max(ROW_ALIGN, (max_tn // ROW_ALIGN) * ROW_ALIGN)
    tile_n = min(tile_n, max_tn)

    tn = min(tile_n, _round_up(n, ROW_ALIGN))
    n_pad = _round_up(n, tn)
    if n_pad != n:
        x2 = jnp.pad(x2, ((0, n_pad - n), (0, 0)))       # padded rows are zero
    steps = n_pad // tn

    kernel = _make_kernel(n, tn, cfg["bf16_gating"])

    flops = 2 * n_pad * l_feat * 2 * D + 2 * n_pad * D * K + 2 * n_pad * K * l_feat
    bytes_accessed = (n_pad * l_feat * 2 + l_feat * 2 * D * 2 + 2 * D * 4
                      + K * D * 4 + K * l_feat * 4 + 2 * c * 4 + (K + 2) * 4 + c * 4)

    def const_spec(shape):
        imap = lambda i: (0,) * len(shape)
        if single_buffer_weights:
            # Grid-invariant operand: a single VMEM buffer suffices.
            return pl.BlockSpec(shape, imap, pipeline_mode=pl.Buffered(1))
        return pl.BlockSpec(shape, imap)

    ordinal_residual = pl.pallas_call(
        kernel,
        out_shape=jax.ShapeDtypeStruct((1, c), jnp.float32),
        grid=(steps,),
        in_specs=[
            pl.BlockSpec((tn, l_feat), lambda i: (i, 0)),          # x tiles (bf16 stream)
            const_spec((l_feat, 2 * D)),                           # fused W_V|W_U (bf16)
            const_spec((1, 2 * D)),                                # fused b_V|b_U
            const_spec((K, D)),                                    # W_attn^T
            const_spec((K, l_feat)),                               # W_cls as (K, L)
            const_spec((1, c)),                                    # seq[1:]
            const_spec((1, c)),                                    # seq[:-1]
            pl.BlockSpec(memory_space=pltpu.MemorySpace.SMEM),     # [b_attn, b_cls, vs]
        ],
        out_specs=pl.BlockSpec((1, c), lambda i: (0, 0)),
        scratch_shapes=[
            pltpu.VMEM((K, 1), jnp.float32),        # running per-head max
            pltpu.VMEM((K, 1), jnp.float32),        # running per-head sum
            pltpu.VMEM((K, l_feat), jnp.float32),   # running pooled M (lane-dense)
        ],
        compiler_params=pltpu.CompilerParams(
            dimension_semantics=("arbitrary",),
            vmem_limit_bytes=vmem_limit),
        cost_estimate=pl.CostEstimate(
            flops=flops,
            transcendentals=n_pad * (2 * D + K),
            bytes_accessed=bytes_accessed),
    )(x2, p["wvu_bf16"], p["bvu"], p["wwt"], p["wc_kl"],
      p["seq_hi"], p["seq_lo"], p["scal"])

    # Module returns (ordinal_residual, cutpoints, var_scaling)
    return ordinal_residual, p["cutpoints"], p["vs"]


def reference_forward(x, p):
    """Pure-JAX (f32) mirror of the PyTorch forward, for correctness checking."""
    x2 = jnp.squeeze(x, axis=0).astype(jnp.float32)
    av = jnp.tanh(x2 @ p["wv"] + p["bv"])
    au = jax.nn.sigmoid(x2 @ p["wu"] + p["bu"])
    a = (av * au) @ p["ww"] + p["bw"]            # (N, K)
    a = jax.nn.softmax(a.T, axis=1)              # (K, N)
    M = a @ x2                                   # (K, L)
    y = jnp.sum(M * p["wc_kl"]) + p["bc"][0, 0]  # classifier on flattened M
    pred = y * p["vs"]
    return jax.nn.sigmoid(p["seq_hi"] - pred) - jax.nn.sigmoid(p["seq_lo"] - pred)


if __name__ == "__main__":
    key = jax.random.PRNGKey(0)
    kx, kp = jax.random.split(key)

    input_size = 32       # L
    output_class = 4      # -> 3 cutpoints, 4-way ordinal residual
    n_instances = 300     # N (bag size; deliberately not a multiple of the tile)

    x = jax.random.normal(kx, (1, n_instances, input_size), jnp.float32)
    params = init_params(kp, input_size, output_class)

    def run(single_buffer):
        fwd = jax.jit(functools.partial(gated_attention_forward, tile_n=128,
                                        single_buffer_weights=single_buffer))
        res, cp, vs = fwd(x, params)
        return jax.block_until_ready(res), cp, vs

    try:
        ordinal_residual, cutpoints, var_scaling = run(True)
    except Exception:
        # Fallback for jax/libtpu versions that reject pipeline_mode=pl.Buffered(1)
        # on top-level pallas_call BlockSpecs: use default double-buffering.
        ordinal_residual, cutpoints, var_scaling = run(False)

    ref = reference_forward(x, params)
    assert ordinal_residual.shape == (1, output_class)
    # bf16 MXU operands + bf16 gating + approx reciprocal => loosened tolerance
    assert jnp.allclose(ordinal_residual, ref, atol=1e-2, rtol=1e-2), (ordinal_residual, ref)
    # ordinal bin probabilities telescope to exactly 1
    assert jnp.allclose(jnp.sum(ordinal_residual), 1.0, atol=1e-3)

    print("KERNEL_OK")
</pallas_src>

<mosaic_0001>
module attributes {stable_mosaic.version = 11 : i64} {
  func.func @kernel(%arg0: i32, %arg1: memref<128x32xbf16, #tpu.memory_space<vmem>>, %arg2: memref<32x1024xbf16, #tpu.memory_space<vmem>>, %arg3: memref<1x1024xf32, #tpu.memory_space<vmem>>, %arg4: memref<2x512xf32, #tpu.memory_space<vmem>>, %arg5: memref<2x32xf32, #tpu.memory_space<vmem>>, %arg6: memref<1x4xf32, #tpu.memory_space<vmem>>, %arg7: memref<1x4xf32, #tpu.memory_space<vmem>>, %arg8: memref<4xf32, #tpu.memory_space<smem>>, %arg9: memref<1x4xf32, #tpu.memory_space<vmem>>, %arg10: memref<2x1xf32, #tpu.memory_space<vmem>>, %arg11: memref<2x1xf32, #tpu.memory_space<vmem>>, %arg12: memref<2x32xf32, #tpu.memory_space<vmem>>) attributes {dimension_semantics = [#tpu.dimension_semantics<arbitrary>], iteration_bounds = array<i64: 3>, scalar_prefetch = 0 : i64, scratch_operands = 3 : i64, tpu.core_type = #tpu.core_type<tc>, window_params = [{transform_indices = @transform_0, window_bounds = array<i64: 128, 32>}, {pipeline_mode = #tpu.pipeline_mode<synchronous>, transform_indices = @transform_1, window_bounds = array<i64: 32, 1024>}, {pipeline_mode = #tpu.pipeline_mode<synchronous>, transform_indices = @transform_2, window_bounds = array<i64: 1, 1024>}, {pipeline_mode = #tpu.pipeline_mode<synchronous>, transform_indices = @transform_3, window_bounds = array<i64: 2, 512>}, {pipeline_mode = #tpu.pipeline_mode<synchronous>, transform_indices = @transform_4, window_bounds = array<i64: 2, 32>}, {pipeline_mode = #tpu.pipeline_mode<synchronous>, transform_indices = @transform_5, window_bounds = array<i64: 1, 4>}, {pipeline_mode = #tpu.pipeline_mode<synchronous>, transform_indices = @transform_6, window_bounds = array<i64: 1, 4>}, {transform_indices = @transform_7, window_bounds = array<i64: 4>}, {pipeline_mode = #tpu.pipeline_mode<synchronous>, transform_indices = @transform_8, window_bounds = array<i64: 1, 4>}]} {
    %c0_i32 = arith.constant 0 : i32
    %0 = arith.cmpi eq, %arg0, %c0_i32 : i32
    %1 = arith.extui %0 : i1 to i32
    %c0_i32_0 = arith.constant 0 : i32
    %2 = arith.cmpi ne, %1, %c0_i32_0 : i32
    scf.if %2 {
      %cst_49 = arith.constant -1.000000e+30 : f32
      %95 = vector.broadcast %cst_49 : f32 to vector<2x1xf32>
      %c0_50 = arith.constant 0 : index
      %c0_51 = arith.constant 0 : index
      %96 = vector.load %arg10[%c0_50, %c0_51] : memref<2x1xf32, #tpu.memory_space<vmem>>, vector<2x1xf32>
      tpu.vector_store %arg10[%c0_50, %c0_51], %95 {strides = array<i32>} : memref<2x1xf32, #tpu.memory_space<vmem>>, vector<2x1xf32>,
      %cst_52 = arith.constant 0.000000e+00 : f32
      %97 = vector.broadcast %cst_52 : f32 to vector<2x1xf32>
      %c0_53 = arith.constant 0 : index
      %c0_54 = arith.constant 0 : index
      %98 = vector.load %arg11[%c0_53, %c0_54] : memref<2x1xf32, #tpu.memory_space<vmem>>, vector<2x1xf32>
      tpu.vector_store %arg11[%c0_53, %c0_54], %97 {strides = array<i32>} : memref<2x1xf32, #tpu.memory_space<vmem>>, vector<2x1xf32>,
      %cst_55 = arith.constant 0.000000e+00 : f32
      %99 = vector.broadcast %cst_55 : f32 to vector<2x32xf32>
      %c0_56 = arith.constant 0 : index
      %c0_57 = arith.constant 0 : index
      %100 = vector.load %arg12[%c0_56, %c0_57] : memref<2x32xf32, #tpu.memory_space<vmem>>, vector<2x32xf32>
      tpu.vector_store %arg12[%c0_56, %c0_57], %99 {strides = array<i32>} : memref<2x32xf32, #tpu.memory_space<vmem>>, vector<2x32xf32>,
    } else {
    }
    %c0 = arith.constant 0 : index
    %c0_1 = arith.constant 0 : index
    %3 = vector.load %arg1[%c0, %c0_1] : memref<128x32xbf16, #tpu.memory_space<vmem>>, vector<128x32xbf16>
    %c0_2 = arith.constant 0 : index
    %c0_3 = arith.constant 0 : index
    %4 = vector.load %arg2[%c0_2, %c0_3] : memref<32x1024xbf16, #tpu.memory_space<vmem>>, vector<32x1024xbf16>
    %cst = arith.constant dense<0.000000e+00> : vector<128x1024xf32>
    %5 = tpu.matmul %3, %4, %cst {dimension_numbers = #tpu.dot_dimension_numbers<[1], [0], [0], [1], [0, 0, 1, 1], [], []>} : vector<128x32xbf16>, vector<32x1024xbf16>, vector<128x1024xf32> -> vector<128x1024xf32>
    %c0_4 = arith.constant 0 : index
    %c0_5 = arith.constant 0 : index
    %6 = vector.load %arg3[%c0_4, %c0_5] : memref<1x1024xf32, #tpu.memory_space<vmem>>, vector<1x1024xf32>
    %7 = vector.broadcast %6 : vector<1x1024xf32> to vector<128x1024xf32>
    %8 = arith.addf %5, %7 : vector<128x1024xf32>
    %9 = vector.extract_strided_slice %8 {offsets = [0, 0], sizes = [128, 512], strides = [1, 1]} : vector<128x1024xf32> to vector<128x512xf32>
    %10 = math.tanh %9 : vector<128x512xf32>
    %11 = vector.extract_strided_slice %8 {offsets = [0, 512], sizes = [128, 512], strides = [1, 1]} : vector<128x1024xf32> to vector<128x512xf32>
    %cst_6 = arith.constant 5.000000e-01 : f32
    %12 = vector.broadcast %cst_6 : f32 to vector<128x512xf32>
    %13 = arith.mulf %12, %11 : vector<128x512xf32>
    %14 = math.tanh %13 : vector<128x512xf32>
    %cst_7 = arith.constant 1.000000e+00 : f32
    %15 = vector.broadcast %cst_7 : f32 to vector<128x512xf32>
    %16 = arith.addf %14, %15 : vector<128x512xf32>
    %cst_8 = arith.constant 5.000000e-01 : f32
    %17 = vector.broadcast %cst_8 : f32 to vector<128x512xf32>
    %18 = arith.mulf %17, %16 : vector<128x512xf32>
    %19 = arith.mulf %10, %18 : vector<128x512xf32>
    %20 = tpu.iota {dimensions = array<i32: 0>} : vector<128x1xi32>
    %c128_i32 = arith.constant 128 : i32
    %21 = arith.muli %arg0, %c128_i32 : i32
    %22 = vector.broadcast %21 : i32 to vector<128x1xi32>
    %23 = arith.addi %20, %22 : vector<128x1xi32>
    %c300_i32 = arith.constant 300 : i32
    %24 = vector.broadcast %c300_i32 : i32 to vector<128x1xi32>
    %25 = arith.cmpi slt, %23, %24 : vector<128x1xi32>
    %c0_9 = arith.constant 0 : index
    %c0_10 = arith.constant 0 : index
    %26 = vector.load %arg4[%c0_9, %c0_10] : memref<2x512xf32, #tpu.memory_space<vmem>>, vector<1x512xf32>
    %27 = vector.broadcast %26 : vector<1x512xf32> to vector<128x512xf32>
    %28 = arith.mulf %19, %27 : vector<128x512xf32>
    %cst_11 = arith.constant dense<0.000000e+00> : vector<128xf32>
    %29 = vector.multi_reduction <add>, %28, %cst_11 [1] : vector<128x512xf32> to vector<128xf32>
    %30 = vector.shape_cast %29 : vector<128xf32> to vector<128x1xf32>
    %c0_12 = arith.constant 0 : index
    %31 = memref.load %arg8[%c0_12] : memref<4xf32, #tpu.memory_space<smem>>
    %32 = vector.broadcast %31 : f32 to vector<128x1xf32>
    %33 = arith.addf %30, %32 : vector<128x1xf32>
    %cst_13 = arith.constant -1.000000e+30 : f32
    %34 = vector.broadcast %cst_13 : f32 to vector<128x1xf32>
    %35 = arith.select %25, %33, %34 : vector<128x1xi1>, vector<128x1xf32>
    %c0_14 = arith.constant 0 : index
    %c0_15 = arith.constant 0 : index
    %36 = vector.load %arg10[%c0_14, %c0_15] : memref<2x1xf32, #tpu.memory_space<vmem>>, vector<1x1xf32>
    %cst_16 = arith.constant dense<0xFF800000> : vector<1xf32>
    %37 = vector.multi_reduction <maximumf>, %35, %cst_16 [0] : vector<128x1xf32> to vector<1xf32>
    %38 = vector.shape_cast %37 : vector<1xf32> to vector<1x1xf32>
    %39 = arith.maximumf %36, %38 : vector<1x1xf32>
    %40 = arith.subf %36, %39 : vector<1x1xf32>
    %41 = math.exp %40 : vector<1x1xf32>
    %42 = vector.broadcast %39 : vector<1x1xf32> to vector<128x1xf32>
    %43 = arith.subf %35, %42 : vector<128x1xf32>
    %44 = math.exp %43 : vector<128x1xf32>
    %c0_17 = arith.constant 0 : index
    %c0_18 = arith.constant 0 : index
    %45 = vector.load %arg11[%c0_17, %c0_18] : memref<2x1xf32, #tpu.memory_space<vmem>>, vector<1x1xf32>
    %46 = arith.mulf %41, %45 : vector<1x1xf32>
    %cst_19 = arith.constant dense<0.000000e+00> : vector<1xf32>
    %47 = vector.multi_reduction <add>, %44, %cst_19 [0] : vector<128x1xf32> to vector<1xf32>
    %48 = vector.shape_cast %47 : vector<1xf32> to vector<1x1xf32>
    %49 = arith.addf %46, %48 : vector<1x1xf32>
    %c0_20 = arith.constant 0 : index
    %c0_21 = arith.constant 0 : index
    %50 = vector.load %arg11[%c0_20, %c0_21] : memref<2x1xf32, #tpu.memory_space<vmem>>, vector<1x1xf32>
    tpu.vector_store %arg11[%c0_20, %c0_21], %49 {strides = array<i32>} : memref<2x1xf32, #tpu.memory_space<vmem>>, vector<1x1xf32>,
    %51 = arith.truncf %44 : vector<128x1xf32> to vector<128x1xbf16>
    %cst_22 = arith.constant dense<0.000000e+00> : vector<1x32xf32>
    %52 = tpu.matmul %51, %3, %cst_22 {dimension_numbers = #tpu.dot_dimension_numbers<[0], [0], [1], [1], [0, 1, 1, 1], [], []>} : vector<128x1xbf16>, vector<128x32xbf16>, vector<1x32xf32> -> vector<1x32xf32>
    %c0_23 = arith.constant 0 : index
    %c0_24 = arith.constant 0 : index
    %53 = vector.load %arg12[%c0_23, %c0_24] : memref<2x32xf32, #tpu.memory_space<vmem>>, vector<1x32xf32>
    %54 = vector.broadcast %41 : vector<1x1xf32> to vector<1x32xf32>
    %55 = arith.mulf %54, %53 : vector<1x32xf32>
    %56 = arith.addf %55, %52 : vector<1x32xf32>
    %c0_25 = arith.constant 0 : index
    %c0_26 = arith.constant 0 : index
    %57 = vector.load %arg12[%c0_25, %c0_26] : memref<2x32xf32, #tpu.memory_space<vmem>>, vector<1x32xf32>
    tpu.vector_store %arg12[%c0_25, %c0_26], %56 {strides = array<i32>} : memref<2x32xf32, #tpu.memory_space<vmem>>, vector<1x32xf32>,
    %c0_27 = arith.constant 0 : index
    %c0_28 = arith.constant 0 : index
    %58 = vector.load %arg10[%c0_27, %c0_28] : memref<2x1xf32, #tpu.memory_space<vmem>>, vector<1x1xf32>
    tpu.vector_store %arg10[%c0_27, %c0_28], %39 {strides = array<i32>} : memref<2x1xf32, #tpu.memory_space<vmem>>, vector<1x1xf32>,
    %c1 = arith.constant 1 : index
    %c0_29 = arith.constant 0 : index
    %59 = vector.load %arg4[%c1, %c0_29] : memref<2x512xf32, #tpu.memory_space<vmem>>, vector<1x512xf32>
    %60 = vector.broadcast %59 : vector<1x512xf32> to vector<128x512xf32>
    %61 = arith.mulf %19, %60 : vector<128x512xf32>
    %cst_30 = arith.constant dense<0.000000e+00> : vector<128xf32>
    %62 = vector.multi_reduction <add>, %61, %cst_30 [1] : vector<128x512xf32> to vector<128xf32>
    %63 = vector.shape_cast %62 : vector<128xf32> to vector<128x1xf32>
    %c1_31 = arith.constant 1 : index
    %64 = memref.load %arg8[%c1_31] : memref<4xf32, #tpu.memory_space<smem>>
    %65 = vector.broadcast %64 : f32 to vector<128x1xf32>
    %66 = arith.addf %63, %65 : vector<128x1xf32>
    %cst_32 = arith.constant -1.000000e+30 : f32
    %67 = vector.broadcast %cst_32 : f32 to vector<128x1xf32>
    %68 = arith.select %25, %66, %67 : vector<128x1xi1>, vector<128x1xf32>
    %c1_33 = arith.constant 1 : index
    %c0_34 = arith.constant 0 : index
    %69 = vector.load %arg10[%c1_33, %c0_34] : memref<2x1xf32, #tpu.memory_space<vmem>>, vector<1x1xf32>
    %cst_35 = arith.constant dense<0xFF800000> : vector<1xf32>
    %70 = vector.multi_reduction <maximumf>, %68, %cst_35 [0] : vector<128x1xf32> to vector<1xf32>
    %71 = vector.shape_cast %70 : vector<1xf32> to vector<1x1xf32>
    %72 = arith.maximumf %69, %71 : vector<1x1xf32>
    %73 = arith.subf %69, %72 : vector<1x1xf32>
    %74 = math.exp %73 : vector<1x1xf32>
    %75 = vector.broadcast %72 : vector<1x1xf32> to vector<128x1xf32>
    %76 = arith.subf %68, %75 : vector<128x1xf32>
    %77 = math.exp %76 : vector<128x1xf32>
    %c1_36 = arith.constant 1 : index
    %c0_37 = arith.constant 0 : index
    %78 = vector.load %arg11[%c1_36, %c0_37] : memref<2x1xf32, #tpu.memory_space<vmem>>, vector<1x1xf32>
    %79 = arith.mulf %74, %78 : vector<1x1xf32>
    %cst_38 = arith.constant dense<0.000000e+00> : vector<1xf32>
    %80 = vector.multi_reduction <add>, %77, %cst_38 [0] : vector<128x1xf32> to vector<1xf32>
    %81 = vector.shape_cast %80 : vector<1xf32> to vector<1x1xf32>
    %82 = arith.addf %79, %81 : vector<1x1xf32>
    %c1_39 = arith.constant 1 : index
    %c0_40 = arith.constant 0 : index
    %83 = vector.load %arg11[%c1_39, %c0_40] : memref<2x1xf32, #tpu.memory_space<vmem>>, vector<1x1xf32>
    tpu.vector_store %arg11[%c1_39, %c0_40], %82 {strides = array<i32>} : memref<2x1xf32, #tpu.memory_space<vmem>>, vector<1x1xf32>,
    %84 = arith.truncf %77 : vector<128x1xf32> to vector<128x1xbf16>
    %cst_41 = arith.constant dense<0.000000e+00> : vector<1x32xf32>
    %85 = tpu.matmul %84, %3, %cst_41 {dimension_numbers = #tpu.dot_dimension_numbers<[0], [0], [1], [1], [0, 1, 1, 1], [], []>} : vector<128x1xbf16>, vector<128x32xbf16>, vector<1x32xf32> -> vector<1x32xf32>
    %c1_42 = arith.constant 1 : index
    %c0_43 = arith.constant 0 : index
    %86 = vector.load %arg12[%c1_42, %c0_43] : memref<2x32xf32, #tpu.memory_space<vmem>>, vector<1x32xf32>
    %87 = vector.broadcast %74 : vector<1x1xf32> to vector<1x32xf32>
    %88 = arith.mulf %87, %86 : vector<1x32xf32>
    %89 = arith.addf %88, %85 : vector<1x32xf32>
    %c1_44 = arith.constant 1 : index
    %c0_45 = arith.constant 0 : index
    %90 = vector.load %arg12[%c1_44, %c0_45] : memref<2x32xf32, #tpu.memory_space<vmem>>, vector<1x32xf32>
    tpu.vector_store %arg12[%c1_44, %c0_45], %89 {strides = array<i32>} : memref<2x32xf32, #tpu.memory_space<vmem>>, vector<1x32xf32>,
    %c1_46 = arith.constant 1 : index
    %c0_47 = arith.constant 0 : index
    %91 = vector.load %arg10[%c1_46, %c0_47] : memref<2x1xf32, #tpu.memory_space<vmem>>, vector<1x1xf32>
    tpu.vector_store %arg10[%c1_46, %c0_47], %72 {strides = array<i32>} : memref<2x1xf32, #tpu.memory_space<vmem>>, vector<1x1xf32>,
    %c2_i32 = arith.constant 2 : i32
    %92 = arith.cmpi eq, %arg0, %c2_i32 : i32
    %93 = arith.extui %92 : i1 to i32
    %c0_i32_48 = arith.constant 0 : i32
    %94 = arith.cmpi ne, %93, %c0_i32_48 : i32
    scf.if %94 {
      %c0_49 = arith.constant 0 : index
      %c0_50 = arith.constant 0 : index
      %95 = vector.load %arg11[%c0_49, %c0_50] : memref<2x1xf32, #tpu.memory_space<vmem>>, vector<2x1xf32>
      %96 = tpu.reciprocal %95 {approx = true} : vector<2x1xf32> -> vector<2x1xf32>
      %c0_51 = arith.constant 0 : index
      %c0_52 = arith.constant 0 : index
      %97 = vector.load %arg12[%c0_51, %c0_52] : memref<2x32xf32, #tpu.memory_space<vmem>>, vector<2x32xf32>
      %98 = vector.broadcast %96 : vector<2x1xf32> to vector<2x32xf32>
      %99 = arith.mulf %97, %98 : vector<2x32xf32>
      %c0_53 = arith.constant 0 : index
      %c0_54 = arith.constant 0 : index
      %100 = vector.load %arg5[%c0_53, %c0_54] : memref<2x32xf32, #tpu.memory_space<vmem>>, vector<2x32xf32>
      %101 = arith.mulf %99, %100 : vector<2x32xf32>
      %102 = vector.shape_cast %101 : vector<2x32xf32> to vector<1x2x32xf32>
      %cst_55 = arith.constant dense<0.000000e+00> : vector<1xf32>
      %103 = vector.multi_reduction <add>, %102, %cst_55 [1, 2] : vector<1x2x32xf32> to vector<1xf32>
      %104 = vector.shape_cast %103 : vector<1xf32> to vector<1x1x1xf32>
      %105 = vector.extract %104[0, 0, 0] : f32 from vector<1x1x1xf32>
      %c2 = arith.constant 2 : index
      %106 = memref.load %arg8[%c2] : memref<4xf32, #tpu.memory_space<smem>>
      %107 = arith.addf %105, %106 : f32
      %c3 = arith.constant 3 : index
      %108 = memref.load %arg8[%c3] : memref<4xf32, #tpu.memory_space<smem>>
      %109 = arith.mulf %107, %108 : f32
      %c0_56 = arith.constant 0 : index
      %c0_57 = arith.constant 0 : index
      %110 = vector.load %arg6[%c0_56, %c0_57] : memref<1x4xf32, #tpu.memory_space<vmem>>, vector<1x4xf32>
      %111 = vector.broadcast %109 : f32 to vector<1x4xf32>
      %112 = arith.subf %110, %111 : vector<1x4xf32>
      %cst_58 = arith.constant 5.000000e-01 : f32
      %113 = vector.broadcast %cst_58 : f32 to vector<1x4xf32>
      %114 = arith.mulf %113, %112 : vector<1x4xf32>
      %115 = math.tanh %114 : vector<1x4xf32>
      %cst_59 = arith.constant 1.000000e+00 : f32
      %116 = vector.broadcast %cst_59 : f32 to vector<1x4xf32>
      %117 = arith.addf %115, %116 : vector<1x4xf32>
      %cst_60 = arith.constant 5.000000e-01 : f32
      %118 = vector.broadcast %cst_60 : f32 to vector<1x4xf32>
      %119 = arith.mulf %118, %117 : vector<1x4xf32>
      %c0_61 = arith.constant 0 : index
      %c0_62 = arith.constant 0 : index
      %120 = vector.load %arg7[%c0_61, %c0_62] : memref<1x4xf32, #tpu.memory_space<vmem>>, vector<1x4xf32>
      %121 = vector.broadcast %109 : f32 to vector<1x4xf32>
      %122 = arith.subf %120, %121 : vector<1x4xf32>
      %cst_63 = arith.constant 5.000000e-01 : f32
      %123 = vector.broadcast %cst_63 : f32 to vector<1x4xf32>
      %124 = arith.mulf %123, %122 : vector<1x4xf32>
      %125 = math.tanh %124 : vector<1x4xf32>
      %cst_64 = arith.constant 1.000000e+00 : f32
      %126 = vector.broadcast %cst_64 : f32 to vector<1x4xf32>
      %127 = arith.addf %125, %126 : vector<1x4xf32>
      %cst_65 = arith.constant 5.000000e-01 : f32
      %128 = vector.broadcast %cst_65 : f32 to vector<1x4xf32>
      %129 = arith.mulf %128, %127 : vector<1x4xf32>
      %130 = arith.subf %119, %129 : vector<1x4xf32>
      %c0_66 = arith.constant 0 : index
      %c0_67 = arith.constant 0 : index
      %131 = vector.load %arg9[%c0_66, %c0_67] : memref<1x4xf32, #tpu.memory_space<vmem>>, vector<1x4xf32>
      tpu.vector_store %arg9[%c0_66, %c0_67], %130 {strides = array<i32>} : memref<1x4xf32, #tpu.memory_space<vmem>>, vector<1x4xf32>,
    } else {
    }
    return
  }
  func.func @transform_0(%arg0: i32) -> (i32, i32) {
    %c0_i32 = arith.constant 0 : i32
    %c0_i32_0 = arith.constant 0 : i32
    return %arg0, %c0_i32 : i32, i32
  }
  func.func @transform_1(%arg0: i32) -> (i32, i32) {
    %c0_i32 = arith.constant 0 : i32
    %c0_i32_0 = arith.constant 0 : i32
    %c0_i32_1 = arith.constant 0 : i32
    return %c0_i32, %c0_i32_0 : i32, i32
  }
  func.func @transform_2(%arg0: i32) -> (i32, i32) {
    %c0_i32 = arith.constant 0 : i32
    %c0_i32_0 = arith.constant 0 : i32
    %c0_i32_1 = arith.constant 0 : i32
    return %c0_i32, %c0_i32_0 : i32, i32
  }
  func.func @transform_3(%arg0: i32) -> (i32, i32) {
    %c0_i32 = arith.constant 0 : i32
    %c0_i32_0 = arith.constant 0 : i32
    %c0_i32_1 = arith.constant 0 : i32
    return %c0_i32, %c0_i32_0 : i32, i32
  }
  func.func @transform_4(%arg0: i32) -> (i32, i32) {
    %c0_i32 = arith.constant 0 : i32
    %c0_i32_0 = arith.constant 0 : i32
    %c0_i32_1 = arith.constant 0 : i32
    return %c0_i32, %c0_i32_0 : i32, i32
  }
  func.func @transform_5(%arg0: i32) -> (i32, i32) {
    %c0_i32 = arith.constant 0 : i32
    %c0_i32_0 = arith.constant 0 : i32
    %c0_i32_1 = arith.constant 0 : i32
    return %c0_i32, %c0_i32_0 : i32, i32
  }
  func.func @transform_6(%arg0: i32) -> (i32, i32) {
    %c0_i32 = arith.constant 0 : i32
    %c0_i32_0 = arith.constant 0 : i32
    %c0_i32_1 = arith.constant 0 : i32
    return %c0_i32, %c0_i32_0 : i32, i32
  }
  func.func @transform_7(%arg0: i32) -> i32 {
    %c0_i32 = arith.constant 0 : i32
    %c0_i32_0 = arith.constant 0 : i32
    return %c0_i32 : i32
  }
  func.func @transform_8(%arg0: i32) -> (i32, i32) {
    %c0_i32 = arith.constant 0 : i32
    %c0_i32_0 = arith.constant 0 : i32
    %c0_i32_1 = arith.constant 0 : i32
    return %c0_i32, %c0_i32_0 : i32, i32
  }
}

module attributes {stable_mosaic.version = 11 : i64} {
  func.func @kernel(%arg0: i32, %arg1: memref<128x32xbf16, #tpu.memory_space<vmem>>, %arg2: memref<32x1024xbf16, #tpu.memory_space<vmem>>, %arg3: memref<1x1024xf32, #tpu.memory_space<vmem>>, %arg4: memref<2x512xf32, #tpu.memory_space<vmem>>, %arg5: memref<2x32xf32, #tpu.memory_space<vmem>>, %arg6: memref<1x4xf32, #tpu.memory_space<vmem>>, %arg7: memref<1x4xf32, #tpu.memory_space<vmem>>, %arg8: memref<4xf32, #tpu.memory_space<smem>>, %arg9: memref<1x4xf32, #tpu.memory_space<vmem>>, %arg10: memref<2x1xf32, #tpu.memory_space<vmem>>, %arg11: memref<2x1xf32, #tpu.memory_space<vmem>>, %arg12: memref<2x32xf32, #tpu.memory_space<vmem>>) attributes {dimension_semantics = [#tpu.dimension_semantics<arbitrary>], iteration_bounds = array<i64: 3>, scalar_prefetch = 0 : i64, scratch_operands = 3 : i64, tpu.core_type = #tpu.core_type<tc>, window_params = [{transform_indices = @transform_0, window_bounds = array<i64: 128, 32>}, {pipeline_mode = #tpu.pipeline_mode<synchronous>, transform_indices = @transform_1, window_bounds = array<i64: 32, 1024>}, {pipeline_mode = #tpu.pipeline_mode<synchronous>, transform_indices = @transform_2, window_bounds = array<i64: 1, 1024>}, {pipeline_mode = #tpu.pipeline_mode<synchronous>, transform_indices = @transform_3, window_bounds = array<i64: 2, 512>}, {pipeline_mode = #tpu.pipeline_mode<synchronous>, transform_indices = @transform_4, window_bounds = array<i64: 2, 32>}, {pipeline_mode = #tpu.pipeline_mode<synchronous>, transform_indices = @transform_5, window_bounds = array<i64: 1, 4>}, {pipeline_mode = #tpu.pipeline_mode<synchronous>, transform_indices = @transform_6, window_bounds = array<i64: 1, 4>}, {transform_indices = @transform_7, window_bounds = array<i64: 4>}, {pipeline_mode = #tpu.pipeline_mode<synchronous>, transform_indices = @transform_8, window_bounds = array<i64: 1, 4>}]} {
    %c0_i32 = arith.constant 0 : i32
    %0 = arith.cmpi eq, %arg0, %c0_i32 : i32
    %1 = arith.extui %0 : i1 to i32
    %c0_i32_0 = arith.constant 0 : i32
    %2 = arith.cmpi ne, %1, %c0_i32_0 : i32
    scf.if %2 {
      %cst_49 = arith.constant -1.000000e+30 : f32
      %95 = vector.broadcast %cst_49 : f32 to vector<2x1xf32>
      %c0_50 = arith.constant 0 : index
      %c0_51 = arith.constant 0 : index
      %96 = vector.load %arg10[%c0_50, %c0_51] : memref<2x1xf32, #tpu.memory_space<vmem>>, vector<2x1xf32>
      tpu.vector_store %arg10[%c0_50, %c0_51], %95 {strides = array<i32>} : memref<2x1xf32, #tpu.memory_space<vmem>>, vector<2x1xf32>,
      %cst_52 = arith.constant 0.000000e+00 : f32
      %97 = vector.broadcast %cst_52 : f32 to vector<2x1xf32>
      %c0_53 = arith.constant 0 : index
      %c0_54 = arith.constant 0 : index
      %98 = vector.load %arg11[%c0_53, %c0_54] : memref<2x1xf32, #tpu.memory_space<vmem>>, vector<2x1xf32>
      tpu.vector_store %arg11[%c0_53, %c0_54], %97 {strides = array<i32>} : memref<2x1xf32, #tpu.memory_space<vmem>>, vector<2x1xf32>,
      %cst_55 = arith.constant 0.000000e+00 : f32
      %99 = vector.broadcast %cst_55 : f32 to vector<2x32xf32>
      %c0_56 = arith.constant 0 : index
      %c0_57 = arith.constant 0 : index
      %100 = vector.load %arg12[%c0_56, %c0_57] : memref<2x32xf32, #tpu.memory_space<vmem>>, vector<2x32xf32>
      tpu.vector_store %arg12[%c0_56, %c0_57], %99 {strides = array<i32>} : memref<2x32xf32, #tpu.memory_space<vmem>>, vector<2x32xf32>,
    } else {
    }
    %c0 = arith.constant 0 : index
    %c0_1 = arith.constant 0 : index
    %3 = vector.load %arg1[%c0, %c0_1] : memref<128x32xbf16, #tpu.memory_space<vmem>>, vector<128x32xbf16>
    %c0_2 = arith.constant 0 : index
    %c0_3 = arith.constant 0 : index
    %4 = vector.load %arg2[%c0_2, %c0_3] : memref<32x1024xbf16, #tpu.memory_space<vmem>>, vector<32x1024xbf16>
    %cst = arith.constant dense<0.000000e+00> : vector<128x1024xf32>
    %5 = tpu.matmul %3, %4, %cst {dimension_numbers = #tpu.dot_dimension_numbers<[1], [0], [0], [1], [0, 0, 1, 1], [], []>} : vector<128x32xbf16>, vector<32x1024xbf16>, vector<128x1024xf32> -> vector<128x1024xf32>
    %c0_4 = arith.constant 0 : index
    %c0_5 = arith.constant 0 : index
    %6 = vector.load %arg3[%c0_4, %c0_5] : memref<1x1024xf32, #tpu.memory_space<vmem>>, vector<1x1024xf32>
    %7 = vector.broadcast %6 : vector<1x1024xf32> to vector<128x1024xf32>
    %8 = arith.addf %5, %7 : vector<128x1024xf32>
    %9 = vector.extract_strided_slice %8 {offsets = [0, 0], sizes = [128, 512], strides = [1, 1]} : vector<128x1024xf32> to vector<128x512xf32>
    %10 = math.tanh %9 : vector<128x512xf32>
    %11 = vector.extract_strided_slice %8 {offsets = [0, 512], sizes = [128, 512], strides = [1, 1]} : vector<128x1024xf32> to vector<128x512xf32>
    %cst_6 = arith.constant 5.000000e-01 : f32
    %12 = vector.broadcast %cst_6 : f32 to vector<128x512xf32>
    %13 = arith.mulf %12, %11 : vector<128x512xf32>
    %14 = math.tanh %13 : vector<128x512xf32>
    %cst_7 = arith.constant 1.000000e+00 : f32
    %15 = vector.broadcast %cst_7 : f32 to vector<128x512xf32>
    %16 = arith.addf %14, %15 : vector<128x512xf32>
    %cst_8 = arith.constant 5.000000e-01 : f32
    %17 = vector.broadcast %cst_8 : f32 to vector<128x512xf32>
    %18 = arith.mulf %17, %16 : vector<128x512xf32>
    %19 = arith.mulf %10, %18 : vector<128x512xf32>
    %20 = tpu.iota {dimensions = array<i32: 0>} : vector<128x1xi32>
    %c128_i32 = arith.constant 128 : i32
    %21 = arith.muli %arg0, %c128_i32 : i32
    %22 = vector.broadcast %21 : i32 to vector<128x1xi32>
    %23 = arith.addi %20, %22 : vector<128x1xi32>
    %c300_i32 = arith.constant 300 : i32
    %24 = vector.broadcast %c300_i32 : i32 to vector<128x1xi32>
    %25 = arith.cmpi slt, %23, %24 : vector<128x1xi32>
    %c0_9 = arith.constant 0 : index
    %c0_10 = arith.constant 0 : index
    %26 = vector.load %arg4[%c0_9, %c0_10] : memref<2x512xf32, #tpu.memory_space<vmem>>, vector<1x512xf32>
    %27 = vector.broadcast %26 : vector<1x512xf32> to vector<128x512xf32>
    %28 = arith.mulf %19, %27 : vector<128x512xf32>
    %cst_11 = arith.constant dense<0.000000e+00> : vector<128xf32>
    %29 = vector.multi_reduction <add>, %28, %cst_11 [1] : vector<128x512xf32> to vector<128xf32>
    %30 = vector.shape_cast %29 : vector<128xf32> to vector<128x1xf32>
    %c0_12 = arith.constant 0 : index
    %31 = memref.load %arg8[%c0_12] : memref<4xf32, #tpu.memory_space<smem>>
    %32 = vector.broadcast %31 : f32 to vector<128x1xf32>
    %33 = arith.addf %30, %32 : vector<128x1xf32>
    %cst_13 = arith.constant -1.000000e+30 : f32
    %34 = vector.broadcast %cst_13 : f32 to vector<128x1xf32>
    %35 = arith.select %25, %33, %34 : vector<128x1xi1>, vector<128x1xf32>
    %c0_14 = arith.constant 0 : index
    %c0_15 = arith.constant 0 : index
    %36 = vector.load %arg10[%c0_14, %c0_15] : memref<2x1xf32, #tpu.memory_space<vmem>>, vector<1x1xf32>
    %cst_16 = arith.constant dense<0xFF800000> : vector<1xf32>
    %37 = vector.multi_reduction <maximumf>, %35, %cst_16 [0] : vector<128x1xf32> to vector<1xf32>
    %38 = vector.shape_cast %37 : vector<1xf32> to vector<1x1xf32>
    %39 = arith.maximumf %36, %38 : vector<1x1xf32>
    %40 = arith.subf %36, %39 : vector<1x1xf32>
    %41 = math.exp %40 : vector<1x1xf32>
    %42 = vector.broadcast %39 : vector<1x1xf32> to vector<128x1xf32>
    %43 = arith.subf %35, %42 : vector<128x1xf32>
    %44 = math.exp %43 : vector<128x1xf32>
    %c0_17 = arith.constant 0 : index
    %c0_18 = arith.constant 0 : index
    %45 = vector.load %arg11[%c0_17, %c0_18] : memref<2x1xf32, #tpu.memory_space<vmem>>, vector<1x1xf32>
    %46 = arith.mulf %41, %45 : vector<1x1xf32>
    %cst_19 = arith.constant dense<0.000000e+00> : vector<1xf32>
    %47 = vector.multi_reduction <add>, %44, %cst_19 [0] : vector<128x1xf32> to vector<1xf32>
    %48 = vector.shape_cast %47 : vector<1xf32> to vector<1x1xf32>
    %49 = arith.addf %46, %48 : vector<1x1xf32>
    %c0_20 = arith.constant 0 : index
    %c0_21 = arith.constant 0 : index
    %50 = vector.load %arg11[%c0_20, %c0_21] : memref<2x1xf32, #tpu.memory_space<vmem>>, vector<1x1xf32>
    tpu.vector_store %arg11[%c0_20, %c0_21], %49 {strides = array<i32>} : memref<2x1xf32, #tpu.memory_space<vmem>>, vector<1x1xf32>,
    %51 = arith.truncf %44 : vector<128x1xf32> to vector<128x1xbf16>
    %cst_22 = arith.constant dense<0.000000e+00> : vector<1x32xf32>
    %52 = tpu.matmul %51, %3, %cst_22 {dimension_numbers = #tpu.dot_dimension_numbers<[0], [0], [1], [1], [0, 1, 1, 1], [], []>} : vector<128x1xbf16>, vector<128x32xbf16>, vector<1x32xf32> -> vector<1x32xf32>
    %c0_23 = arith.constant 0 : index
    %c0_24 = arith.constant 0 : index
    %53 = vector.load %arg12[%c0_23, %c0_24] : memref<2x32xf32, #tpu.memory_space<vmem>>, vector<1x32xf32>
    %54 = vector.broadcast %41 : vector<1x1xf32> to vector<1x32xf32>
    %55 = arith.mulf %54, %53 : vector<1x32xf32>
    %56 = arith.addf %55, %52 : vector<1x32xf32>
    %c0_25 = arith.constant 0 : index
    %c0_26 = arith.constant 0 : index
    %57 = vector.load %arg12[%c0_25, %c0_26] : memref<2x32xf32, #tpu.memory_space<vmem>>, vector<1x32xf32>
    tpu.vector_store %arg12[%c0_25, %c0_26], %56 {strides = array<i32>} : memref<2x32xf32, #tpu.memory_space<vmem>>, vector<1x32xf32>,
    %c0_27 = arith.constant 0 : index
    %c0_28 = arith.constant 0 : index
    %58 = vector.load %arg10[%c0_27, %c0_28] : memref<2x1xf32, #tpu.memory_space<vmem>>, vector<1x1xf32>
    tpu.vector_store %arg10[%c0_27, %c0_28], %39 {strides = array<i32>} : memref<2x1xf32, #tpu.memory_space<vmem>>, vector<1x1xf32>,
    %c1 = arith.constant 1 : index
    %c0_29 = arith.constant 0 : index
    %59 = vector.load %arg4[%c1, %c0_29] : memref<2x512xf32, #tpu.memory_space<vmem>>, vector<1x512xf32>
    %60 = vector.broadcast %59 : vector<1x512xf32> to vector<128x512xf32>
    %61 = arith.mulf %19, %60 : vector<128x512xf32>
    %cst_30 = arith.constant dense<0.000000e+00> : vector<128xf32>
    %62 = vector.multi_reduction <add>, %61, %cst_30 [1] : vector<128x512xf32> to vector<128xf32>
    %63 = vector.shape_cast %62 : vector<128xf32> to vector<128x1xf32>
    %c1_31 = arith.constant 1 : index
    %64 = memref.load %arg8[%c1_31] : memref<4xf32, #tpu.memory_space<smem>>
    %65 = vector.broadcast %64 : f32 to vector<128x1xf32>
    %66 = arith.addf %63, %65 : vector<128x1xf32>
    %cst_32 = arith.constant -1.000000e+30 : f32
    %67 = vector.broadcast %cst_32 : f32 to vector<128x1xf32>
    %68 = arith.select %25, %66, %67 : vector<128x1xi1>, vector<128x1xf32>
    %c1_33 = arith.constant 1 : index
    %c0_34 = arith.constant 0 : index
    %69 = vector.load %arg10[%c1_33, %c0_34] : memref<2x1xf32, #tpu.memory_space<vmem>>, vector<1x1xf32>
    %cst_35 = arith.constant dense<0xFF800000> : vector<1xf32>
    %70 = vector.multi_reduction <maximumf>, %68, %cst_35 [0] : vector<128x1xf32> to vector<1xf32>
    %71 = vector.shape_cast %70 : vector<1xf32> to vector<1x1xf32>
    %72 = arith.maximumf %69, %71 : vector<1x1xf32>
    %73 = arith.subf %69, %72 : vector<1x1xf32>
    %74 = math.exp %73 : vector<1x1xf32>
    %75 = vector.broadcast %72 : vector<1x1xf32> to vector<128x1xf32>
    %76 = arith.subf %68, %75 : vector<128x1xf32>
    %77 = math.exp %76 : vector<128x1xf32>
    %c1_36 = arith.constant 1 : index
    %c0_37 = arith.constant 0 : index
    %78 = vector.load %arg11[%c1_36, %c0_37] : memref<2x1xf32, #tpu.memory_space<vmem>>, vector<1x1xf32>
    %79 = arith.mulf %74, %78 : vector<1x1xf32>
    %cst_38 = arith.constant dense<0.000000e+00> : vector<1xf32>
    %80 = vector.multi_reduction <add>, %77, %cst_38 [0] : vector<128x1xf32> to vector<1xf32>
    %81 = vector.shape_cast %80 : vector<1xf32> to vector<1x1xf32>
    %82 = arith.addf %79, %81 : vector<1x1xf32>
    %c1_39 = arith.constant 1 : index
    %c0_40 = arith.constant 0 : index
    %83 = vector.load %arg11[%c1_39, %c0_40] : memref<2x1xf32, #tpu.memory_space<vmem>>, vector<1x1xf32>
    tpu.vector_store %arg11[%c1_39, %c0_40], %82 {strides = array<i32>} : memref<2x1xf32, #tpu.memory_space<vmem>>, vector<1x1xf32>,
    %84 = arith.truncf %77 : vector<128x1xf32> to vector<128x1xbf16>
    %cst_41 = arith.constant dense<0.000000e+00> : vector<1x32xf32>
    %85 = tpu.matmul %84, %3, %cst_41 {dimension_numbers = #tpu.dot_dimension_numbers<[0], [0], [1], [1], [0, 1, 1, 1], [], []>} : vector<128x1xbf16>, vector<128x32xbf16>, vector<1x32xf32> -> vector<1x32xf32>
    %c1_42 = arith.constant 1 : index
    %c0_43 = arith.constant 0 : index
    %86 = vector.load %arg12[%c1_42, %c0_43] : memref<2x32xf32, #tpu.memory_space<vmem>>, vector<1x32xf32>
    %87 = vector.broadcast %74 : vector<1x1xf32> to vector<1x32xf32>
    %88 = arith.mulf %87, %86 : vector<1x32xf32>
    %89 = arith.addf %88, %85 : vector<1x32xf32>
    %c1_44 = arith.constant 1 : index
    %c0_45 = arith.constant 0 : index
    %90 = vector.load %arg12[%c1_44, %c0_45] : memref<2x32xf32, #tpu.memory_space<vmem>>, vector<1x32xf32>
    tpu.vector_store %arg12[%c1_44, %c0_45], %89 {strides = array<i32>} : memref<2x32xf32, #tpu.memory_space<vmem>>, vector<1x32xf32>,
    %c1_46 = arith.constant 1 : index
    %c0_47 = arith.constant 0 : index
    %91 = vector.load %arg10[%c1_46, %c0_47] : memref<2x1xf32, #tpu.memory_space<vmem>>, vector<1x1xf32>
    tpu.vector_store %arg10[%c1_46, %c0_47], %72 {strides = array<i32>} : memref<2x1xf32, #tpu.memory_space<vmem>>, vector<1x1xf32>,
    %c2_i32 = arith.constant 2 : i32
    %92 = arith.cmpi eq, %arg0, %c2_i32 : i32
    %93 = arith.extui %92 : i1 to i32
    %c0_i32_48 = arith.constant 0 : i32
    %94 = arith.cmpi ne, %93, %c0_i32_48 : i32
    scf.if %94 {
      %c0_49 = arith.constant 0 : index
      %c0_50 = arith.constant 0 : index
      %95 = vector.load %arg11[%c0_49, %c0_50] : memref<2x1xf32, #tpu.memory_space<vmem>>, vector<2x1xf32>
      %96 = tpu.reciprocal %95 {approx = true} : vector<2x1xf32> -> vector<2x1xf32>
      %c0_51 = arith.constant 0 : index
      %c0_52 = arith.constant 0 : index
      %97 = vector.load %arg12[%c0_51, %c0_52] : memref<2x32xf32, #tpu.memory_space<vmem>>, vector<2x32xf32>
      %98 = vector.broadcast %96 : vector<2x1xf32> to vector<2x32xf32>
      %99 = arith.mulf %97, %98 : vector<2x32xf32>
      %c0_53 = arith.constant 0 : index
      %c0_54 = arith.constant 0 : index
      %100 = vector.load %arg5[%c0_53, %c0_54] : memref<2x32xf32, #tpu.memory_space<vmem>>, vector<2x32xf32>
      %101 = arith.mulf %99, %100 : vector<2x32xf32>
      %102 = vector.shape_cast %101 : vector<2x32xf32> to vector<1x2x32xf32>
      %cst_55 = arith.constant dense<0.000000e+00> : vector<1xf32>
      %103 = vector.multi_reduction <add>, %102, %cst_55 [1, 2] : vector<1x2x32xf32> to vector<1xf32>
      %104 = vector.shape_cast %103 : vector<1xf32> to vector<1x1x1xf32>
      %105 = vector.extract %104[0, 0, 0] : f32 from vector<1x1x1xf32>
      %c2 = arith.constant 2 : index
      %106 = memref.load %arg8[%c2] : memref<4xf32, #tpu.memory_space<smem>>
      %107 = arith.addf %105, %106 : f32
      %c3 = arith.constant 3 : index
      %108 = memref.load %arg8[%c3] : memref<4xf32, #tpu.memory_space<smem>>
      %109 = arith.mulf %107, %108 : f32
      %c0_56 = arith.constant 0 : index
      %c0_57 = arith.constant 0 : index
      %110 = vector.load %arg6[%c0_56, %c0_57] : memref<1x4xf32, #tpu.memory_space<vmem>>, vector<1x4xf32>
      %111 = vector.broadcast %109 : f32 to vector<1x4xf32>
      %112 = arith.subf %110, %111 : vector<1x4xf32>
      %cst_58 = arith.constant 5.000000e-01 : f32
      %113 = vector.broadcast %cst_58 : f32 to vector<1x4xf32>
      %114 = arith.mulf %113, %112 : vector<1x4xf32>
      %115 = math.tanh %114 : vector<1x4xf32>
      %cst_59 = arith.constant 1.000000e+00 : f32
      %116 = vector.broadcast %cst_59 : f32 to vector<1x4xf32>
      %117 = arith.addf %115, %116 : vector<1x4xf32>
      %cst_60 = arith.constant 5.000000e-01 : f32
      %118 = vector.broadcast %cst_60 : f32 to vector<1x4xf32>
      %119 = arith.mulf %118, %117 : vector<1x4xf32>
      %c0_61 = arith.constant 0 : index
      %c0_62 = arith.constant 0 : index
      %120 = vector.load %arg7[%c0_61, %c0_62] : memref<1x4xf32, #tpu.memory_space<vmem>>, vector<1x4xf32>
      %121 = vector.broadcast %109 : f32 to vector<1x4xf32>
      %122 = arith.subf %120, %121 : vector<1x4xf32>
      %cst_63 = arith.constant 5.000000e-01 : f32
      %123 = vector.broadcast %cst_63 : f32 to vector<1x4xf32>
      %124 = arith.mulf %123, %122 : vector<1x4xf32>
      %125 = math.tanh %124 : vector<1x4xf32>
      %cst_64 = arith.constant 1.000000e+00 : f32
      %126 = vector.broadcast %cst_64 : f32 to vector<1x4xf32>
      %127 = arith.addf %125, %126 : vector<1x4xf32>
      %cst_65 = arith.constant 5.000000e-01 : f32
      %128 = vector.broadcast %cst_65 : f32 to vector<1x4xf32>
      %129 = arith.mulf %128, %127 : vector<1x4xf32>
      %130 = arith.subf %119, %129 : vector<1x4xf32>
      %c0_66 = arith.constant 0 : index
      %c0_67 = arith.constant 0 : index
      %131 = vector.load %arg9[%c0_66, %c0_67] : memref<1x4xf32, #tpu.memory_space<vmem>>, vector<1x4xf32>
      tpu.vector_store %arg9[%c0_66, %c0_67], %130 {strides = array<i32>} : memref<1x4xf32, #tpu.memory_space<vmem>>, vector<1x4xf32>,
    } else {
    }
    return
  }
  func.func @transform_0(%arg0: i32) -> (i32, i32) {
    %c0_i32 = arith.constant 0 : i32
    %c0_i32_0 = arith.constant 0 : i32
    return %arg0, %c0_i32 : i32, i32
  }
  func.func @transform_1(%arg0: i32) -> (i32, i32) {
    %c0_i32 = arith.constant 0 : i32
    %c0_i32_0 = arith.constant 0 : i32
    %c0_i32_1 = arith.constant 0 : i32
    return %c0_i32, %c0_i32_0 : i32, i32
  }
  func.func @transform_2(%arg0: i32) -> (i32, i32) {
    %c0_i32 = arith.constant 0 : i32
    %c0_i32_0 = arith.constant 0 : i32
    %c0_i32_1 = arith.constant 0 : i32
    return %c0_i32, %c0_i32_0 : i32, i32
  }
  func.func @transform_3(%arg0: i32) -> (i32, i32) {
    %c0_i32 = arith.constant 0 : i32
    %c0_i32_0 = arith.constant 0 : i32
    %c0_i32_1 = arith.constant 0 : i32
    return %c0_i32, %c0_i32_0 : i32, i32
  }
  func.func @transform_4(%arg0: i32) -> (i32, i32) {
    %c0_i32 = arith.constant 0 : i32
    %c0_i32_0 = arith.constant 0 : i32
    %c0_i32_1 = arith.constant 0 : i32
    return %c0_i32, %c0_i32_0 : i32, i32
  }
  func.func @transform_5(%arg0: i32) -> (i32, i32) {
    %c0_i32 = arith.constant 0 : i32
    %c0_i32_0 = arith.constant 0 : i32
    %c0_i32_1 = arith.constant 0 : i32
    return %c0_i32, %c0_i32_0 : i32, i32
  }
  func.func @transform_6(%arg0: i32) -> (i32, i32) {
    %c0_i32 = arith.constant 0 : i32
    %c0_i32_0 = arith.constant 0 : i32
    %c0_i32_1 = arith.constant 0 : i32
    return %c0_i32, %c0_i32_0 : i32, i32
  }
  func.func @transform_7(%arg0: i32) -> i32 {
    %c0_i32 = arith.constant 0 : i32
    %c0_i32_0 = arith.constant 0 : i32
    return %c0_i32 : i32
  }
  func.func @transform_8(%arg0: i32) -> (i32, i32) {
    %c0_i32 = arith.constant 0 : i32
    %c0_i32_0 = arith.constant 0 : i32
    %c0_i32_1 = arith.constant 0 : i32
    return %c0_i32, %c0_i32_0 : i32, i32
  }
}

</mosaic_0001>

<llo_original>
// kernel: gated_attention_forward.1
$region0: #{gated_attention_forward.1}
  #allocation0 [shape = 'u32[]', space=smem, size = 0x4, offset = 0x4, fixed_abs, tag = 'smem constant byte address 0x4 - core index']
  #allocation1 [shape = 'u32[144,128]{1,0:T(1,128)}', space=vmem, size = 0x12000, scoped, tag = 'internal scratch']
  #allocation2 [shape = 'f32[2,1]{1,0:T(2,128)}', space=vmem, size = 0x400, scoped, tag = 'scratch operand']
  #allocation3 [shape = 'f32[2,1]{1,0:T(2,128)}', space=vmem, size = 0x400, scoped, tag = 'scratch operand']
  #allocation4 [shape = 'f32[2,32]{1,0:T(2,128)}', space=vmem, size = 0x400, scoped, tag = 'scratch operand']
  %s0 = inlined_call_operand.vmem [shape: bf16[384,32], index: 0, kind: input, shape index: {}]
  %s1 = inlined_call_operand.vmem [shape: bf16[32,1024], index: 1, kind: input, shape index: {}]
  %s2 = inlined_call_operand.vmem [shape: f32[1,1024], index: 2, kind: input, shape index: {}]
  %s3 = inlined_call_operand.vmem [shape: f32[2,512], index: 3, kind: input, shape index: {}]
  %s4 = inlined_call_operand.vmem [shape: f32[2,32], index: 4, kind: input, shape index: {}]
  %s5 = inlined_call_operand.vmem [shape: f32[1,4], index: 5, kind: input, shape index: {}]
  %s6 = inlined_call_operand.vmem [shape: f32[1,4], index: 6, kind: input, shape index: {}]
  %s7 = inlined_call_operand.vmem [shape: f32[4], index: 7, kind: input, shape index: {}]
  %s8 = inlined_call_operand.hbm [shape: f32[1,4], index: 8, kind: output, shape index: {}]
  %s9 = sld [smem:[#allocation0]]
  $region77: #{gated_attention_forward.1} parent=0
    _
  %s11 = ssub.s32 1, %s9
  %s12 = scalar_select 0, %s11, %s9
  $region1: #{gated_attention_forward.1} parent=0
    #allocation5 [shape = 'u8[512]{0}', space=smem, size = 0x200, scoped, tag = 'input window, operand 7, single buffered']
    #allocation6 [shape = 's32[2]{0}', space=sflag, size = 0x8, scoped, tag = 'scoped memory for gated_attention_forward.1']
    #allocation7 [shape = 's32[2]{0}', space=sflag, size = 0x8, scoped, tag = 'scoped memory for gated_attention_forward.1']
    #allocation8 [shape = 'u8[512]{0}', space=vmem, size = 0x400, scoped, tag = 'output window, operand 0, single buffered']
    %13 = vsyncpa [#allocation7], 0
    %14 = vsyncpa [#allocation6], 0
    loop: start=0, step=1, limit=5
    $region2: #{gated_attention_forward.1} parent=1 // loop_pre_header
      _
    $region3: #{gated_attention_forward.1} parent=1 // loop_header
      %s16 = sphi 0, %s20
      %p17 = scmp.ge.s32.totalorder %s16, 5
      %s26 = sphi 0, %s28
      %s29 = sphi 0, %s26
      %s30 = sphi 0, %s29
      %s46 = sphi 0, %s30
      %s50 = sphi 0, %s50
      %s52 = sphi 0, %s50
      %s53 = sphi 0, %s52
      %s67 = sphi 0, %s53
      %s71 = sphi 0, %s71
      %s73 = sphi 0, %s71
      %s74 = sphi 0, %s73
      %s88 = sphi 0, %s74
      %s92 = sphi 0, %s92
      %s94 = sphi 0, %s92
      %s95 = sphi 0, %s94
      %s109 = sphi 0, %s95
      %s113 = sphi 0, %s113
      %s115 = sphi 0, %s113
      %s116 = sphi 0, %s115
      %s130 = sphi 0, %s116
      %s134 = sphi 0, %s134
      %s136 = sphi 0, %s134
      %s137 = sphi 0, %s136
      %s151 = sphi 0, %s137
      %s155 = sphi 0, %s155
      %s157 = sphi 0, %s155
      %s158 = sphi 0, %s157
      %s172 = sphi 0, %s158
      %s176 = sphi 0, %s176
      %s178 = sphi 0, %s176
      %s179 = sphi 0, %s178
      %s193 = sphi 0, %s179
      %s197 = sphi 0, %s197
      %s199 = sphi 0, %s197
      %s200 = sphi 0, %s199
      %s214 = sphi 0, %s200
    $region4: #{gated_attention_forward.1} parent=1 // loop_header_branch
      %19 = sbr.rel (%p17) target = $region8
    $region5: #{gated_attention_forward.1} parent=1 // loop_body
      %s21 = ssub.s32 %s16, 1
      %s22 = ssub.s32 %s16, 2
      %s23 = sadd.s32 %s16, 1
      %s24 = ssub.s32 %s16, %s23
      %p25 = scmp.eq.s32.totalorder %s24, 0
      %s27 = sadd.s32 %s26, 1
      %s28 = scalar_select %p25, %s26, %s27
      %p31 = pneg %p25
      %p32 = scmp.eq.s32.totalorder %s16, 2
      %p33 = por %p31, %p32
      %p34 = scmp.ne.s32.totalorder %s26, %s29
      %p35 = scmp.eq.s32.totalorder %s16, 0
      %p36 = por %p34, %p35
      %p37 = scmp.ne.s32.totalorder %s26, %s29
      %p38 = scmp.eq.s32.totalorder %s21, 2
      %p39 = por %p37, %p38
      %p40 = scmp.ne.s32.totalorder %s29, %s30
      %p41 = scmp.eq.s32.totalorder %s21, 0
      %p42 = por %p40, %p41
      %p43 = scmp.ne.s32.totalorder %s29, %s30
      %p44 = scmp.eq.s32.totalorder %s22, 2
      %p45 = por %p43, %p44
      %p47 = scmp.ne.s32.totalorder %s30, %s46
      %p48 = scmp.eq.s32.totalorder %s22, 0
      %p49 = por %p47, %p48
      %s51 = sadd.s32 %s50, 1
      %p54 = scmp.eq.s32.totalorder %s16, 2
      %p55 = scmp.ne.s32.totalorder %s50, %s52
      %p56 = scmp.eq.s32.totalorder %s16, 0
      %p57 = por %p55, %p56
      %p58 = scmp.ne.s32.totalorder %s50, %s52
      %p59 = scmp.eq.s32.totalorder %s21, 2
      %p60 = por %p58, %p59
      %p61 = scmp.ne.s32.totalorder %s52, %s53
      %p62 = scmp.eq.s32.totalorder %s21, 0
      %p63 = por %p61, %p62
      %p64 = scmp.ne.s32.totalorder %s52, %s53
      %p65 = scmp.eq.s32.totalorder %s22, 2
      %p66 = por %p64, %p65
      %p68 = scmp.ne.s32.totalorder %s53, %s67
      %p69 = scmp.eq.s32.totalorder %s22, 0
      %p70 = por %p68, %p69
      %s72 = sadd.s32 %s71, 1
      %p75 = scmp.eq.s32.totalorder %s16, 2
      %p76 = scmp.ne.s32.totalorder %s71, %s73
      %p77 = scmp.eq.s32.totalorder %s16, 0
      %p78 = por %p76, %p77
      %p79 = scmp.ne.s32.totalorder %s71, %s73
      %p80 = scmp.eq.s32.totalorder %s21, 2
      %p81 = por %p79, %p80
      %p82 = scmp.ne.s32.totalorder %s73, %s74
      %p83 = scmp.eq.s32.totalorder %s21, 0
      %p84 = por %p82, %p83
      %p85 = scmp.ne.s32.totalorder %s73, %s74
      %p86 = scmp.eq.s32.totalorder %s22, 2
      %p87 = por %p85, %p86
      %p89 = scmp.ne.s32.totalorder %s74, %s88
      %p90 = scmp.eq.s32.totalorder %s22, 0
      %p91 = por %p89, %p90
      %s93 = sadd.s32 %s92, 1
      %p96 = scmp.eq.s32.totalorder %s16, 2
      %p97 = scmp.ne.s32.totalorder %s92, %s94
      %p98 = scmp.eq.s32.totalorder %s16, 0
      %p99 = por %p97, %p98
      %p100 = scmp.ne.s32.totalorder %s92, %s94
      %p101 = scmp.eq.s32.totalorder %s21, 2
      %p102 = por %p100, %p101
      %p103 = scmp.ne.s32.totalorder %s94, %s95
      %p104 = scmp.eq.s32.totalorder %s21, 0
      %p105 = por %p103, %p104
      %p106 = scmp.ne.s32.totalorder %s94, %s95
      %p107 = scmp.eq.s32.totalorder %s22, 2
      %p108 = por %p106, %p107
      %p110 = scmp.ne.s32.totalorder %s95, %s109
      %p111 = scmp.eq.s32.totalorder %s22, 0
      %p112 = por %p110, %p111
      %s114 = sadd.s32 %s113, 1
      %p117 = scmp.eq.s32.totalorder %s16, 2
      %p118 = scmp.ne.s32.totalorder %s113, %s115
      %p119 = scmp.eq.s32.totalorder %s16, 0
      %p120 = por %p118, %p119
      %p121 = scmp.ne.s32.totalorder %s113, %s115
      %p122 = scmp.eq.s32.totalorder %s21, 2
      %p123 = por %p121, %p122
      %p124 = scmp.ne.s32.totalorder %s115, %s116
      %p125 = scmp.eq.s32.totalorder %s21, 0
      %p126 = por %p124, %p125
      %p127 = scmp.ne.s32.totalorder %s115, %s116
      %p128 = scmp.eq.s32.totalorder %s22, 2
      %p129 = por %p127, %p128
      %p131 = scmp.ne.s32.totalorder %s116, %s130
      %p132 = scmp.eq.s32.totalorder %s22, 0
      %p133 = por %p131, %p132
      %s135 = sadd.s32 %s134, 1
      %p138 = scmp.eq.s32.totalorder %s16, 2
      %p139 = scmp.ne.s32.totalorder %s134, %s136
      %p140 = scmp.eq.s32.totalorder %s16, 0
      %p141 = por %p139, %p140
      %p142 = scmp.ne.s32.totalorder %s134, %s136
      %p143 = scmp.eq.s32.totalorder %s21, 2
      %p144 = por %p142, %p143
      %p145 = scmp.ne.s32.totalorder %s136, %s137
      %p146 = scmp.eq.s32.totalorder %s21, 0
      %p147 = por %p145, %p146
      %p148 = scmp.ne.s32.totalorder %s136, %s137
      %p149 = scmp.eq.s32.totalorder %s22, 2
      %p150 = por %p148, %p149
      %p152 = scmp.ne.s32.totalorder %s137, %s151
      %p153 = scmp.eq.s32.totalorder %s22, 0
      %p154 = por %p152, %p153
      %s156 = sadd.s32 %s155, 1
      %p159 = scmp.eq.s32.totalorder %s16, 2
      %p160 = scmp.ne.s32.totalorder %s155, %s157
      %p161 = scmp.eq.s32.totalorder %s16, 0
      %p162 = por %p160, %p161
      %p163 = scmp.ne.s32.totalorder %s155, %s157
      %p164 = scmp.eq.s32.totalorder %s21, 2
      %p165 = por %p163, %p164
      %p166 = scmp.ne.s32.totalorder %s157, %s158
      %p167 = scmp.eq.s32.totalorder %s21, 0
      %p168 = por %p166, %p167
      %p169 = scmp.ne.s32.totalorder %s157, %s158
      %p170 = scmp.eq.s32.totalorder %s22, 2
      %p171 = por %p169, %p170
      %p173 = scmp.ne.s32.totalorder %s158, %s172
      %p174 = scmp.eq.s32.totalorder %s22, 0
      %p175 = por %p173, %p174
      %s177 = sadd.s32 %s176, 1
      %p180 = scmp.eq.s32.totalorder %s16, 2
      %p181 = scmp.ne.s32.totalorder %s176, %s178
      %p182 = scmp.eq.s32.totalorder %s16, 0
      %p183 = por %p181, %p182
      %p184 = scmp.ne.s32.totalorder %s176, %s178
      %p185 = scmp.eq.s32.totalorder %s21, 2
      %p186 = por %p184, %p185
      %p187 = scmp.ne.s32.totalorder %s178, %s179
      %p188 = scmp.eq.s32.totalorder %s21, 0
      %p189 = por %p187, %p188
      %p190 = scmp.ne.s32.totalorder %s178, %s179
      %p191 = scmp.eq.s32.totalorder %s22, 2
      %p192 = por %p190, %p191
      %p194 = scmp.ne.s32.totalorder %s179, %s193
      %p195 = scmp.eq.s32.totalorder %s22, 0
      %p196 = por %p194, %p195
      %s198 = sadd.s32 %s197, 1
      %p201 = scmp.eq.s32.totalorder %s16, 2
      %p202 = scmp.ne.s32.totalorder %s197, %s199
      %p203 = scmp.eq.s32.totalorder %s16, 0
      %p204 = por %p202, %p203
      %p205 = scmp.ne.s32.totalorder %s197, %s199
      %p206 = scmp.eq.s32.totalorder %s21, 2
      %p207 = por %p205, %p206
      %p208 = scmp.ne.s32.totalorder %s199, %s200
      %p209 = scmp.eq.s32.totalorder %s21, 0
      %p210 = por %p208, %p209
      %p211 = scmp.ne.s32.totalorder %s199, %s200
      %p212 = scmp.eq.s32.totalorder %s22, 2
      %p213 = por %p211, %p212
      %p215 = scmp.ne.s32.totalorder %s200, %s214
      %p216 = scmp.eq.s32.totalorder %s22, 0
      %p217 = por %p215, %p216
      %p218 = scmp.le.s32.totalorder 1, %s16
      %p219 = scmp.lt.s32.totalorder %s16, 4
      %p220 = pnand %p218, %p219
      %p221 = pneg %p220
      // Predicated region
      $region9: #{gated_attention_forward.1} parent=5 // pred_check
        _
      $region10: #{gated_attention_forward.1} parent=5 // pred_check_branch
        %223 = sbr.rel (%p220) target = $region12
      $region11: #{gated_attention_forward.1} parent=5 // pred_region
        %s224 = ssub.s32 %s16, 1
        // Predicated region
        $region13: #{gated_attention_forward.1} parent=11 // pred_check
          %p225 = pneg %p63
        $region14: #{gated_attention_forward.1} parent=11 // pred_check_branch
          %227 = sbr.rel (%p225) target = $region16
        $region15: #{gated_attention_forward.1} parent=11 // pred_region
          _
        $region16: #{gated_attention_forward.1} parent=11 // pred_fallthru
          _
        // Predicated region
        $region17: #{gated_attention_forward.1} parent=11 // pred_check
          %p228 = pneg %p84
        $region18: #{gated_attention_forward.1} parent=11 // pred_check_branch
          %230 = sbr.rel (%p228) target = $region20
        $region19: #{gated_attention_forward.1} parent=11 // pred_region
          _
        $region20: #{gated_attention_forward.1} parent=11 // pred_fallthru
          _
        // Predicated region
        $region21: #{gated_attention_forward.1} parent=11 // pred_check
          %p231 = pneg %p105
        $region22: #{gated_attention_forward.1} parent=11 // pred_check_branch
          %233 = sbr.rel (%p231) target = $region24
        $region23: #{gated_attention_forward.1} parent=11 // pred_region
          _
        $region24: #{gated_attention_forward.1} parent=11 // pred_fallthru
          _
        // Predicated region
        $region25: #{gated_attention_forward.1} parent=11 // pred_check
          %p234 = pneg %p126
        $region26: #{gated_attention_forward.1} parent=11 // pred_check_branch
          %236 = sbr.rel (%p234) target = $region28
        $region27: #{gated_attention_forward.1} parent=11 // pred_region
          _
        $region28: #{gated_attention_forward.1} parent=11 // pred_fallthru
          _
        // Predicated region
        $region29: #{gated_attention_forward.1} parent=11 // pred_check
          %p237 = pneg %p147
        $region30: #{gated_attention_forward.1} parent=11 // pred_check_branch
          %239 = sbr.rel (%p237) target = $region32
        $region31: #{gated_attention_forward.1} parent=11 // pred_region
          _
        $region32: #{gated_attention_forward.1} parent=11 // pred_fallthru
          _
        // Predicated region
        $region33: #{gated_attention_forward.1} parent=11 // pred_check
          %p240 = pneg %p168
        $region34: #{gated_attention_forward.1} parent=11 // pred_check_branch
          %242 = sbr.rel (%p240) target = $region36
        $region35: #{gated_attention_forward.1} parent=11 // pred_region
          _
        $region36: #{gated_attention_forward.1} parent=11 // pred_fallthru
          _
        // Predicated region
        $region37: #{gated_attention_forward.1} parent=11 // pred_check
          %p243 = pneg %p189
        $region38: #{gated_attention_forward.1} parent=11 // pred_check_branch
          %245 = sbr.rel (%p243) target = $region40
        $region39: #{gated_attention_forward.1} parent=11 // pred_region
          %s247 = ssub.s32 16, 16
          %248 = vsyncadd [#allocation7], %s247
          %s250 = sshll.u32 %s7, 4
          %s251 = int_to_ptr.vmem [resolvable:$true] %s250
          %253 = dma.vmem_to_smem %s251, 16, [#allocation5], [#allocation7]
        $region40: #{gated_attention_forward.1} parent=11 // pred_fallthru
          _
      $region12: #{gated_attention_forward.1} parent=5 // pred_fallthru
        _
      %p254 = scmp.lt.s32.totalorder %s16, 3
      // Predicated region
      $region41: #{gated_attention_forward.1} parent=5 // pred_check
        %p255 = pneg %p254
      $region42: #{gated_attention_forward.1} parent=5 // pred_check_branch
        %257 = sbr.rel (%p255) target = $region44
      $region43: #{gated_attention_forward.1} parent=5 // pred_region
        // Predicated region
        $region45: #{gated_attention_forward.1} parent=43 // pred_check
          %p258 = pneg %p36
        $region46: #{gated_attention_forward.1} parent=43 // pred_check_branch
          %260 = sbr.rel (%p258) target = $region48
        $region47: #{gated_attention_forward.1} parent=43 // pred_region
          %s261 = smul.u32 16, %s16
          %p262 = scmp.lt.s32.totalorder %s261, 47
          %s263 = scalar_select %p262, %s261, 47
          %s264 = smul.addr %s263, 4
          %s265 = scalar_lea.vmem %s0, %s264
          %s266 = smul.u32 16, %s16
        $region48: #{gated_attention_forward.1} parent=43 // pred_fallthru
          _
      $region44: #{gated_attention_forward.1} parent=5 // pred_fallthru
        _
      %p267 = scmp.le.s32.totalorder 1, %s16
      %p268 = scmp.lt.s32.totalorder %s16, 4
      %p269 = pnand %p267, %p268
      %p270 = pneg %p269
      // Predicated region
      $region49: #{gated_attention_forward.1} parent=5 // pred_check
        _
      $region50: #{gated_attention_forward.1} parent=5 // pred_check_branch
        %272 = sbr.rel (%p269) target = $region52
      $region51: #{gated_attention_forward.1} parent=5 // pred_region
        %s273 = ssub.s32 %s16, 1
        // Predicated region
        $region53: #{gated_attention_forward.1} parent=51 // pred_check
          %p274 = pneg %p189
        $region54: #{gated_attention_forward.1} parent=51 // pred_check_branch
          %276 = sbr.rel (%p274) target = $region56
        $region55: #{gated_attention_forward.1} parent=51 // pred_region
          %277 = dma.done [#allocation7], 16
        $region56: #{gated_attention_forward.1} parent=51 // pred_fallthru
          _
        %278 = sfence
        %s279 = smul.u32 16, %s21
        %p280 = scmp.lt.s32.totalorder %s279, 47
        %s281 = scalar_select %p280, %s279, 47
        %s282 = smul.addr %s281, 4
        %s283 = scalar_lea.vmem %s0, %s282
        %p284 = pneg %p42
        %p285 = pneg %p39
        %p286 = pneg %p63
        %p287 = pneg %p60
        %p288 = pneg %p84
        %p289 = pneg %p81
        %p290 = pneg %p105
        %p291 = pneg %p102
        %p292 = pneg %p126
        %p293 = pneg %p123
        %p294 = pneg %p147
        %p295 = pneg %p144
        %p296 = pneg %p168
        %p297 = pneg %p165
        %p298 = pneg %p189
        %p299 = pneg %p186
        %p300 = pneg %p210
        %p301 = pneg %p207
        %s302 = smul.u32 16, %s21
        %p303 = scmp.lt.s32.totalorder %s302, 47
        %s304 = scalar_select %p303, %s302, 47
        %s305 = smul.addr %s304, 4
        %s306 = scalar_lea.vmem %s0, %s305
        %s307 = smul.u32 16, %s21
        %p309 = scmp.eq.s32.totalorder %s21, 0
        // Predicated region
        $region57: #{gated_attention_forward.1} parent=51 // pred_check
          %p310 = pneg %p309
        $region58: #{gated_attention_forward.1} parent=51 // pred_check_branch
          %312 = sbr.rel (%p310) target = $region60
        $region59: #{gated_attention_forward.1} parent=51 // pred_region
          %vm313 = vcmask 1024
          %314 = vst.msk [vmem:[#allocation2] sm:$0x3] %vm313, -1e+30
          %315 = vst.msk [vmem:[#allocation3] sm:$0x3] %vm313, 0.0
          %vm316 = vcmask 254976
          %317 = vst.msk [vmem:[#allocation4] sm:$0x3] %vm316, 0.0
        $region60: #{gated_attention_forward.1} parent=51 // pred_fallthru
          _
        %v318 = vld [vmem:[%s306] sm:$0xf]
        %v319 = vld [vmem:[%s306 + $0x4] sm:$0xf]
        %v320 = vld [vmem:[%s306 + $0x8] sm:$0xf]
        %v321 = vld [vmem:[%s306 + $0xc] sm:$0xf]
        %v322 = vld [vmem:[%s306 + $0x10] sm:$0xf]
        %v323 = vld [vmem:[%s306 + $0x14] sm:$0xf]
        %v324 = vld [vmem:[%s306 + $0x18] sm:$0xf]
        %v325 = vld [vmem:[%s306 + $0x1c] sm:$0xf]
        %v326 = vld [vmem:[%s306 + $0x20] sm:$0xf]
        %v327 = vld [vmem:[%s306 + $0x24] sm:$0xf]
        %v328 = vld [vmem:[%s306 + $0x28] sm:$0xf]
        %v329 = vld [vmem:[%s306 + $0x2c] sm:$0xf]
        %v330 = vld [vmem:[%s306 + $0x30] sm:$0xf]
        %v331 = vld [vmem:[%s306 + $0x34] sm:$0xf]
        %v332 = vld [vmem:[%s306 + $0x38] sm:$0xf]
        %v333 = vld [vmem:[%s306 + $0x3c] sm:$0xf]
        %v334 = vld [vmem:[%s1] sm:$0xff]
        %v335 = vld [vmem:[%s1 + $0x8] sm:$0xff]
        %v336 = vld [vmem:[%s1 + $0x10] sm:$0xff]
        %v337 = vld [vmem:[%s1 + $0x18] sm:$0xff]
        %v338 = vld [vmem:[%s1 + $0x20] sm:$0xff]
        %v339 = vld [vmem:[%s1 + $0x28] sm:$0xff]
        %v340 = vld [vmem:[%s1 + $0x30] sm:$0xff]
        %v341 = vld [vmem:[%s1 + $0x38] sm:$0xff]
        %v342 = vld [vmem:[%s1 + $0x40] sm:$0xff]
        %v343 = vld [vmem:[%s1 + $0x48] sm:$0xff]
        %v344 = vld [vmem:[%s1 + $0x50] sm:$0xff]
        %v345 = vld [vmem:[%s1 + $0x58] sm:$0xff]
        %v346 = vld [vmem:[%s1 + $0x60] sm:$0xff]
        %v347 = vld [vmem:[%s1 + $0x68] sm:$0xff]
        %v348 = vld [vmem:[%s1 + $0x70] sm:$0xff]
        %v349 = vld [vmem:[%s1 + $0x78] sm:$0xff]
        %v350 = vld [vmem:[%s2] sm:$0xff]
        %v352 = vlaneseq
        %v353 = vshrl.u32 %v352, 7
        %v354 = vsub.s32 0, %v353
        %v355 = vrot.slane %v350, %v354
        %v356 = vlaneseq
        %v357 = vshrl.u32 %v356, 7
        %v358 = vsub.s32 1, %v357
        %v359 = vrot.slane %v350, %v358
        %v360 = vlaneseq
        %v361 = vshrl.u32 %v360, 7
        %v362 = vsub.s32 2, %v361
        %v363 = vrot.slane %v350, %v362
        %v364 = vlaneseq
        %v365 = vshrl.u32 %v364, 7
        %v366 = vsub.s32 3, %v365
        %v367 = vrot.slane %v350, %v366
        %v368 = vlaneseq
        %v369 = vshrl.u32 %v368, 7
        %v370 = vsub.s32 4, %v369
        %v371 = vrot.slane %v350, %v370
        %v372 = vlaneseq
        %v373 = vshrl.u32 %v372, 7
        %v374 = vsub.s32 5, %v373
        %v375 = vrot.slane %v350, %v374
        %v376 = vlaneseq
        %v377 = vshrl.u32 %v376, 7
        %v378 = vsub.s32 6, %v377
        %v379 = vrot.slane %v350, %v378
        %v380 = vlaneseq
        %v381 = vshrl.u32 %v380, 7
        %v382 = vsub.s32 7, %v381
        %v383 = vrot.slane %v350, %v382
        %v408 = vunpack.c.l.b16 %v318
        %v409 = vunpack.c.l.b16 %v319
        %v410 = vunpack.c.l.b16 %v320
        %v411 = vunpack.c.l.b16 %v321
        %v412 = vunpack.c.l.b16 %v322
        %v413 = vunpack.c.l.b16 %v323
        %v414 = vunpack.c.l.b16 %v324
        %v415 = vunpack.c.l.b16 %v325
        %v416 = vunpack.c.l.b16 %v326
        %v417 = vunpack.c.l.b16 %v327
        %v418 = vunpack.c.l.b16 %v328
        %v419 = vunpack.c.l.b16 %v329
        %v420 = vunpack.c.l.b16 %v330
        %v421 = vunpack.c.l.b16 %v331
        %v422 = vunpack.c.l.b16 %v332
        %v423 = vunpack.c.l.b16 %v333
        %v424 = vpack.c.b16 %v409, %v408
        %v425 = vpack.c.b16 %v411, %v410
        %v426 = vpack.c.b16 %v413, %v412
        %v427 = vpack.c.b16 %v415, %v414
        %v428 = vpack.c.b16 %v417, %v416
        %v429 = vpack.c.b16 %v419, %v418
        %v430 = vpack.c.b16 %v421, %v420
        %v431 = vpack.c.b16 %v423, %v422
        %v448 = vunpack.c.l.b16 %v334
        %v449 = vunpack.c.h.b16 %v334
        %v450 = vunpack.c.l.b16 %v335
        %v451 = vunpack.c.h.b16 %v335
        %v452 = vunpack.c.l.b16 %v336
        %v453 = vunpack.c.h.b16 %v336
        %v454 = vunpack.c.l.b16 %v337
        %v455 = vunpack.c.h.b16 %v337
        %v456 = vunpack.c.l.b16 %v338
        %v457 = vunpack.c.h.b16 %v338
        %v458 = vunpack.c.l.b16 %v339
        %v459 = vunpack.c.h.b16 %v339
        %v460 = vunpack.c.l.b16 %v340
        %v461 = vunpack.c.h.b16 %v340
        %v462 = vunpack.c.l.b16 %v341
        %v463 = vunpack.c.h.b16 %v341
        %v464 = vunpack.c.l.b16 %v342
        %v465 = vunpack.c.h.b16 %v342
        %v466 = vunpack.c.l.b16 %v343
        %v467 = vunpack.c.h.b16 %v343
        %v468 = vunpack.c.l.b16 %v344
        %v469 = vunpack.c.h.b16 %v344
        %v470 = vunpack.c.l.b16 %v345
        %v471 = vunpack.c.h.b16 %v345
        %v472 = vunpack.c.l.b16 %v346
        %v473 = vunpack.c.h.b16 %v346
        %v474 = vunpack.c.l.b16 %v347
        %v475 = vunpack.c.h.b16 %v347
        %v476 = vunpack.c.l.b16 %v348
        %v477 = vunpack.c.h.b16 %v348
        %v478 = vunpack.c.l.b16 %v349
        %v479 = vunpack.c.h.b16 %v349
        %v480 = vpack.c.b16 %v456, %v448
        %v481 = vpack.c.b16 %v457, %v449
        %v482 = vpack.c.b16 %v458, %v450
        %v483 = vpack.c.b16 %v459, %v451
        %v484 = vpack.c.b16 %v460, %v452
        %v485 = vpack.c.b16 %v461, %v453
        %v486 = vpack.c.b16 %v462, %v454
        %v487 = vpack.c.b16 %v463, %v455
        %v488 = vpack.c.b16 %v472, %v464
        %v489 = vpack.c.b16 %v473, %v465
        %v490 = vpack.c.b16 %v474, %v466
        %v491 = vpack.c.b16 %v475, %v467
        %v492 = vpack.c.b16 %v476, %v468
        %v493 = vpack.c.b16 %v477, %v469
        %v494 = vpack.c.b16 %v478, %v470
        %v495 = vpack.c.b16 %v479, %v471
        %vm512 = vcmask 261120
        %v514 = vsel %vm512, %v424, 0
        %v517 = vsel %vm512, %v425, 0
        %v520 = vsel %vm512, %v426, 0
        %v523 = vsel %vm512, %v427, 0
        %v526 = vsel %vm512, %v428, 0
        %v529 = vsel %vm512, %v429, 0
        %v532 = vsel %vm512, %v430, 0
        %v535 = vsel %vm512, %v431, 0
        %537 = vmatprep.subr.bf16.mxu0 %v481
        %538 = vmatpush1.bf16.msra.mxu0 %v480
        %539 = vmatprep.subr.bf16.mxu0 %v489
        %540 = vmatpush1.bf16.msra.mxu0 %v488
        %541 = vmatprep.subr.bf16.mxu0 0
        %542 = vmatpush1.bf16.msra.mxu0 0
        %543 = vmatprep.subr.bf16.mxu0 0
        %544 = vmatpush1.bf16.msra.mxu0 0
        %545 = vmatprep.subr.bf16.mxu0 0
        %546 = vmatpush1.bf16.msra.mxu0 0
        %547 = vmatprep.subr.bf16.mxu0 0
        %548 = vmatpush1.bf16.msra.mxu0 0
        %549 = vmatprep.subr.bf16.mxu0 0
        %550 = vmatpush1.bf16.msra.mxu0 0
        %551 = vmatprep.subr.bf16.mxu0 0
        %552 = vmatpush1.bf16.msra.mxu0 0
        %553 = vmatprep.subr.bf16.mxu0 0
        %554 = vmatpush1.bf16.msra.mxu0 0
        %555 = vmatprep.subr.bf16.mxu0 0
        %556 = vmatpush1.bf16.msra.mxu0 0
        %557 = vmatprep.subr.bf16.mxu0 0
        %558 = vmatpush1.bf16.msra.mxu0 0
        %559 = vmatprep.subr.bf16.mxu0 0
        %560 = vmatpush1.bf16.msra.mxu0 0
        %561 = vmatprep.subr.bf16.mxu0 0
        %562 = vmatpush1.bf16.msra.mxu0 0
        %563 = vmatprep.subr.bf16.mxu0 0
        %564 = vmatpush1.bf16.msra.mxu0 0
        %565 = vmatprep.subr.bf16.mxu0 0
        %566 = vmatpush1.bf16.msra.mxu0 0
        %567 = vmatprep.subr.bf16.mxu0 0
        %568 = vmatpush1.bf16.msra.mxu0 0
        %569 = vmatprep.mubr.bf16.mxu0 0
        %570 = vmatmul.mubr.bf16.gmra.mrb[0].mxu0 %v514
        %v571 = vpop.f32.mrb[0].mxu0
        %v572 = vadd.f32 %v355, %v571
        %v573 = vpop.f32.mrb[0].mxu0
        %v574 = vadd.f32 %v359, %v573
        %v575 = vpop.f32.mrb[0].mxu0
        %v576 = vadd.f32 %v355, %v575
        %v577 = vpop.f32.mrb[0].mxu0
        %v578 = vadd.f32 %v359, %v577
        %579 = vmatprep.mubr.bf16.mxu0 0
        %580 = vmatmul.mubr.bf16.gmra.mrb[0].mxu0 %v517
        %v581 = vpop.f32.mrb[0].mxu0
        %v582 = vadd.f32 %v355, %v581
        %v583 = vpop.f32.mrb[0].mxu0
        %v584 = vadd.f32 %v359, %v583
        %v585 = vpop.f32.mrb[0].mxu0
        %v586 = vadd.f32 %v355, %v585
        %v587 = vpop.f32.mrb[0].mxu0
        %v588 = vadd.f32 %v359, %v587
        %589 = vmatprep.mubr.bf16.mxu0 0
        %590 = vmatmul.mubr.bf16.gmra.mrb[0].mxu0 %v520
        %v591 = vpop.f32.mrb[0].mxu0
        %v592 = vadd.f32 %v355, %v591
        %v593 = vpop.f32.mrb[0].mxu0
        %v594 = vadd.f32 %v359, %v593
        %v595 = vpop.f32.mrb[0].mxu0
        %v596 = vadd.f32 %v355, %v595
        %v597 = vpop.f32.mrb[0].mxu0
        %v598 = vadd.f32 %v359, %v597
        %599 = vmatprep.mubr.bf16.mxu0 0
        %600 = vmatmul.mubr.bf16.gmra.mrb[0].mxu0 %v523
        %v601 = vpop.f32.mrb[0].mxu0
        %v602 = vadd.f32 %v355, %v601
        %v603 = vpop.f32.mrb[0].mxu0
        %v604 = vadd.f32 %v359, %v603
        %v605 = vpop.f32.mrb[0].mxu0
        %v606 = vadd.f32 %v355, %v605
        %v607 = vpop.f32.mrb[0].mxu0
        %v608 = vadd.f32 %v359, %v607
        %609 = vmatprep.mubr.bf16.mxu0 0
        %610 = vmatmul.mubr.bf16.gmra.mrb[0].mxu0 %v526
        %v611 = vpop.f32.mrb[0].mxu0
        %v612 = vadd.f32 %v355, %v611
        %v613 = vpop.f32.mrb[0].mxu0
        %v614 = vadd.f32 %v359, %v613
        %v615 = vpop.f32.mrb[0].mxu0
        %v616 = vadd.f32 %v355, %v615
        %v617 = vpop.f32.mrb[0].mxu0
        %v618 = vadd.f32 %v359, %v617
        %619 = vmatprep.mubr.bf16.mxu0 0
        %620 = vmatmul.mubr.bf16.gmra.mrb[0].mxu0 %v529
        %v621 = vpop.f32.mrb[0].mxu0
        %v622 = vadd.f32 %v355, %v621
        %v623 = vpop.f32.mrb[0].mxu0
        %v624 = vadd.f32 %v359, %v623
        %v625 = vpop.f32.mrb[0].mxu0
        %v626 = vadd.f32 %v355, %v625
        %v627 = vpop.f32.mrb[0].mxu0
        %v628 = vadd.f32 %v359, %v627
        %629 = vmatprep.mubr.bf16.mxu0 0
        %630 = vmatmul.mubr.bf16.gmra.mrb[0].mxu0 %v532
        %v631 = vpop.f32.mrb[0].mxu0
        %v632 = vadd.f32 %v355, %v631
        %v633 = vpop.f32.mrb[0].mxu0
        %v634 = vadd.f32 %v359, %v633
        %v635 = vpop.f32.mrb[0].mxu0
        %v636 = vadd.f32 %v355, %v635
        %v637 = vpop.f32.mrb[0].mxu0
        %v638 = vadd.f32 %v359, %v637
        %639 = vmatprep.mubr.bf16.mxu0 0
        %640 = vmatmul.mubr.bf16.gmra.mrb[0].mxu0 %v535
        %v641 = vpop.f32.mrb[0].mxu0
        %v642 = vadd.f32 %v355, %v641
        %v643 = vpop.f32.mrb[0].mxu0
        %v644 = vadd.f32 %v359, %v643
        %v645 = vpop.f32.mrb[0].mxu0
        %v646 = vadd.f32 %v355, %v645
        %v647 = vpop.f32.mrb[0].mxu0
        %v648 = vadd.f32 %v359, %v647
        %649 = vdwg.mxu0
        %650 = vmatprep.subr.bf16.mxu0 %v483
        %651 = vmatpush1.bf16.msra.mxu0 %v482
        %652 = vmatprep.subr.bf16.mxu0 %v491
        %653 = vmatpush1.bf16.msra.mxu0 %v490
        %654 = vmatprep.subr.bf16.mxu0 0
        %655 = vmatpush1.bf16.msra.mxu0 0
        %656 = vmatprep.subr.bf16.mxu0 0
        %657 = vmatpush1.bf16.msra.mxu0 0
        %658 = vmatprep.subr.bf16.mxu0 0
        %659 = vmatpush1.bf16.msra.mxu0 0
        %660 = vmatprep.subr.bf16.mxu0 0
        %661 = vmatpush1.bf16.msra.mxu0 0
        %662 = vmatprep.subr.bf16.mxu0 0
        %663 = vmatpush1.bf16.msra.mxu0 0
        %664 = vmatprep.subr.bf16.mxu0 0
        %665 = vmatpush1.bf16.msra.mxu0 0
        %666 = vmatprep.subr.bf16.mxu0 0
        %667 = vmatpush1.bf16.msra.mxu0 0
        %668 = vmatprep.subr.bf16.mxu0 0
        %669 = vmatpush1.bf16.msra.mxu0 0
        %670 = vmatprep.subr.bf16.mxu0 0
        %671 = vmatpush1.bf16.msra.mxu0 0
        %672 = vmatprep.subr.bf16.mxu0 0
        %673 = vmatpush1.bf16.msra.mxu0 0
        %674 = vmatprep.subr.bf16.mxu0 0
        %675 = vmatpush1.bf16.msra.mxu0 0
        %676 = vmatprep.subr.bf16.mxu0 0
        %677 = vmatpush1.bf16.msra.mxu0 0
        %678 = vmatprep.subr.bf16.mxu0 0
        %679 = vmatpush1.bf16.msra.mxu0 0
        %680 = vmatprep.subr.bf16.mxu0 0
        %681 = vmatpush1.bf16.msra.mxu0 0
        %682 = vmatprep.mubr.bf16.mxu0 0
        %683 = vmatmul.mubr.bf16.gmra.mrb[0].mxu0 %v514
        %v684 = vpop.f32.mrb[0].mxu0
        %v685 = vadd.f32 %v363, %v684
        %v686 = vpop.f32.mrb[0].mxu0
        %v687 = vadd.f32 %v367, %v686
        %v688 = vpop.f32.mrb[0].mxu0
        %v689 = vadd.f32 %v363, %v688
        %v690 = vpop.f32.mrb[0].mxu0
        %v691 = vadd.f32 %v367, %v690
        %692 = vmatprep.mubr.bf16.mxu0 0
        %693 = vmatmul.mubr.bf16.gmra.mrb[0].mxu0 %v517
        %v694 = vpop.f32.mrb[0].mxu0
        %v695 = vadd.f32 %v363, %v694
        %v696 = vpop.f32.mrb[0].mxu0
        %v697 = vadd.f32 %v367, %v696
        %v698 = vpop.f32.mrb[0].mxu0
        %v699 = vadd.f32 %v363, %v698
        %v700 = vpop.f32.mrb[0].mxu0
        %v701 = vadd.f32 %v367, %v700
        %702 = vmatprep.mubr.bf16.mxu0 0
        %703 = vmatmul.mubr.bf16.gmra.mrb[0].mxu0 %v520
        %v704 = vpop.f32.mrb[0].mxu0
        %v705 = vadd.f32 %v363, %v704
        %v706 = vpop.f32.mrb[0].mxu0
        %v707 = vadd.f32 %v367, %v706
        %v708 = vpop.f32.mrb[0].mxu0
        %v709 = vadd.f32 %v363, %v708
        %v710 = vpop.f32.mrb[0].mxu0
        %v711 = vadd.f32 %v367, %v710
        %712 = vmatprep.mubr.bf16.mxu0 0
        %713 = vmatmul.mubr.bf16.gmra.mrb[0].mxu0 %v523
        %v714 = vpop.f32.mrb[0].mxu0
        %v715 = vadd.f32 %v363, %v714
        %v716 = vpop.f32.mrb[0].mxu0
        %v717 = vadd.f32 %v367, %v716
        %v718 = vpop.f32.mrb[0].mxu0
        %v719 = vadd.f32 %v363, %v718
        %v720 = vpop.f32.mrb[0].mxu0
        %v721 = vadd.f32 %v367, %v720
        %722 = vmatprep.mubr.bf16.mxu0 0
        %723 = vmatmul.mubr.bf16.gmra.mrb[0].mxu0 %v526
        %v724 = vpop.f32.mrb[0].mxu0
        %v725 = vadd.f32 %v363, %v724
        %v726 = vpop.f32.mrb[0].mxu0
        %v727 = vadd.f32 %v367, %v726
        %v728 = vpop.f32.mrb[0].mxu0
        %v729 = vadd.f32 %v363, %v728
        %v730 = vpop.f32.mrb[0].mxu0
        %v731 = vadd.f32 %v367, %v730
        %732 = vmatprep.mubr.bf16.mxu0 0
        %733 = vmatmul.mubr.bf16.gmra.mrb[0].mxu0 %v529
        %v734 = vpop.f32.mrb[0].mxu0
        %v735 = vadd.f32 %v363, %v734
        %v736 = vpop.f32.mrb[0].mxu0
        %v737 = vadd.f32 %v367, %v736
        %v738 = vpop.f32.mrb[0].mxu0
        %v739 = vadd.f32 %v363, %v738
        %v740 = vpop.f32.mrb[0].mxu0
        %v741 = vadd.f32 %v367, %v740
        %742 = vmatprep.mubr.bf16.mxu0 0
        %743 = vmatmul.mubr.bf16.gmra.mrb[0].mxu0 %v532
        %v744 = vpop.f32.mrb[0].mxu0
        %v745 = vadd.f32 %v363, %v744
        %v746 = vpop.f32.mrb[0].mxu0
        %v747 = vadd.f32 %v367, %v746
        %v748 = vpop.f32.mrb[0].mxu0
        %v749 = vadd.f32 %v363, %v748
        %v750 = vpop.f32.mrb[0].mxu0
        %v751 = vadd.f32 %v367, %v750
        %752 = vmatprep.mubr.bf16.mxu0 0
        %753 = vmatmul.mubr.bf16.gmra.mrb[0].mxu0 %v535
        %v754 = vpop.f32.mrb[0].mxu0
        %v755 = vadd.f32 %v363, %v754
        %v756 = vpop.f32.mrb[0].mxu0
        %v757 = vadd.f32 %v367, %v756
        %v758 = vpop.f32.mrb[0].mxu0
        %v759 = vadd.f32 %v363, %v758
        %v760 = vpop.f32.mrb[0].mxu0
        %v761 = vadd.f32 %v367, %v760
        %762 = vdwg.mxu0
        %763 = vmatprep.subr.bf16.mxu0 %v485
        %764 = vmatpush1.bf16.msra.mxu0 %v484
        %765 = vmatprep.subr.bf16.mxu0 %v493
        %766 = vmatpush1.bf16.msra.mxu0 %v492
        %767 = vmatprep.subr.bf16.mxu0 0
        %768 = vmatpush1.bf16.msra.mxu0 0
        %769 = vmatprep.subr.bf16.mxu0 0
        %770 = vmatpush1.bf16.msra.mxu0 0
        %771 = vmatprep.subr.bf16.mxu0 0
        %772 = vmatpush1.bf16.msra.mxu0 0
        %773 = vmatprep.subr.bf16.mxu0 0
        %774 = vmatpush1.bf16.msra.mxu0 0
        %775 = vmatprep.subr.bf16.mxu0 0
        %776 = vmatpush1.bf16.msra.mxu0 0
        %777 = vmatprep.subr.bf16.mxu0 0
        %778 = vmatpush1.bf16.msra.mxu0 0
        %779 = vmatprep.subr.bf16.mxu0 0
        %780 = vmatpush1.bf16.msra.mxu0 0
        %781 = vmatprep.subr.bf16.mxu0 0
        %782 = vmatpush1.bf16.msra.mxu0 0
        %783 = vmatprep.subr.bf16.mxu0 0
        %784 = vmatpush1.bf16.msra.mxu0 0
        %785 = vmatprep.subr.bf16.mxu0 0
        %786 = vmatpush1.bf16.msra.mxu0 0
        %787 = vmatprep.subr.bf16.mxu0 0
        %788 = vmatpush1.bf16.msra.mxu0 0
        %789 = vmatprep.subr.bf16.mxu0 0
        %790 = vmatpush1.bf16.msra.mxu0 0
        %791 = vmatprep.subr.bf16.mxu0 0
        %792 = vmatpush1.bf16.msra.mxu0 0
        %793 = vmatprep.subr.bf16.mxu0 0
        %794 = vmatpush1.bf16.msra.mxu0 0
        %795 = vmatprep.mubr.bf16.mxu0 0
        %796 = vmatmul.mubr.bf16.gmra.mrb[0].mxu0 %v514
        %v797 = vpop.f32.mrb[0].mxu0
        %v798 = vadd.f32 %v371, %v797
        %v799 = vpop.f32.mrb[0].mxu0
        %v800 = vadd.f32 %v375, %v799
        %v801 = vpop.f32.mrb[0].mxu0
        %v802 = vadd.f32 %v371, %v801
        %v803 = vpop.f32.mrb[0].mxu0
        %v804 = vadd.f32 %v375, %v803
        %805 = vmatprep.mubr.bf16.mxu0 0
        %806 = vmatmul.mubr.bf16.gmra.mrb[0].mxu0 %v517
        %v807 = vpop.f32.mrb[0].mxu0
        %v808 = vadd.f32 %v371, %v807
        %v809 = vpop.f32.mrb[0].mxu0
        %v810 = vadd.f32 %v375, %v809
        %v811 = vpop.f32.mrb[0].mxu0
        %v812 = vadd.f32 %v371, %v811
        %v813 = vpop.f32.mrb[0].mxu0
        %v814 = vadd.f32 %v375, %v813
        %815 = vmatprep.mubr.bf16.mxu0 0
        %816 = vmatmul.mubr.bf16.gmra.mrb[0].mxu0 %v520
        %v817 = vpop.f32.mrb[0].mxu0
        %v818 = vadd.f32 %v371, %v817
        %v819 = vpop.f32.mrb[0].mxu0
        %v820 = vadd.f32 %v375, %v819
        %v821 = vpop.f32.mrb[0].mxu0
        %v822 = vadd.f32 %v371, %v821
        %v823 = vpop.f32.mrb[0].mxu0
        %v824 = vadd.f32 %v375, %v823
        %825 = vmatprep.mubr.bf16.mxu0 0
        %826 = vmatmul.mubr.bf16.gmra.mrb[0].mxu0 %v523
        %v827 = vpop.f32.mrb[0].mxu0
        %v828 = vadd.f32 %v371, %v827
        %v829 = vpop.f32.mrb[0].mxu0
        %v830 = vadd.f32 %v375, %v829
        %v831 = vpop.f32.mrb[0].mxu0
        %v832 = vadd.f32 %v371, %v831
        %v833 = vpop.f32.mrb[0].mxu0
        %v834 = vadd.f32 %v375, %v833
        %835 = vmatprep.mubr.bf16.mxu0 0
        %836 = vmatmul.mubr.bf16.gmra.mrb[0].mxu0 %v526
        %v837 = vpop.f32.mrb[0].mxu0
        %v838 = vadd.f32 %v371, %v837
        %v839 = vpop.f32.mrb[0].mxu0
        %v840 = vadd.f32 %v375, %v839
        %v841 = vpop.f32.mrb[0].mxu0
        %v842 = vadd.f32 %v371, %v841
        %v843 = vpop.f32.mrb[0].mxu0
        %v844 = vadd.f32 %v375, %v843
        %845 = vmatprep.mubr.bf16.mxu0 0
        %846 = vmatmul.mubr.bf16.gmra.mrb[0].mxu0 %v529
        %v847 = vpop.f32.mrb[0].mxu0
        %v848 = vadd.f32 %v371, %v847
        %v849 = vpop.f32.mrb[0].mxu0
        %v850 = vadd.f32 %v375, %v849
        %v851 = vpop.f32.mrb[0].mxu0
        %v852 = vadd.f32 %v371, %v851
        %v853 = vpop.f32.mrb[0].mxu0
        %v854 = vadd.f32 %v375, %v853
        %855 = vmatprep.mubr.bf16.mxu0 0
        %856 = vmatmul.mubr.bf16.gmra.mrb[0].mxu0 %v532
        %v857 = vpop.f32.mrb[0].mxu0
        %v858 = vadd.f32 %v371, %v857
        %v859 = vpop.f32.mrb[0].mxu0
        %v860 = vadd.f32 %v375, %v859
        %v861 = vpop.f32.mrb[0].mxu0
        %v862 = vadd.f32 %v371, %v861
        %v863 = vpop.f32.mrb[0].mxu0
        %v864 = vadd.f32 %v375, %v863
        %865 = vmatprep.mubr.bf16.mxu0 0
        %866 = vmatmul.mubr.bf16.gmra.mrb[0].mxu0 %v535
        %v867 = vpop.f32.mrb[0].mxu0
        %v868 = vadd.f32 %v371, %v867
        %v869 = vpop.f32.mrb[0].mxu0
        %v870 = vadd.f32 %v375, %v869
        %v871 = vpop.f32.mrb[0].mxu0
        %v872 = vadd.f32 %v371, %v871
        %v873 = vpop.f32.mrb[0].mxu0
        %v874 = vadd.f32 %v375, %v873
        %875 = vdwg.mxu0
        %876 = vmatprep.subr.bf16.mxu0 %v487
        %877 = vmatpush1.bf16.msra.mxu0 %v486
        %878 = vmatprep.subr.bf16.mxu0 %v495
        %879 = vmatpush1.bf16.msra.mxu0 %v494
        %880 = vmatprep.subr.bf16.mxu0 0
        %881 = vmatpush1.bf16.msra.mxu0 0
        %882 = vmatprep.subr.bf16.mxu0 0
        %883 = vmatpush1.bf16.msra.mxu0 0
        %884 = vmatprep.subr.bf16.mxu0 0
        %885 = vmatpush1.bf16.msra.mxu0 0
        %886 = vmatprep.subr.bf16.mxu0 0
        %887 = vmatpush1.bf16.msra.mxu0 0
        %888 = vmatprep.subr.bf16.mxu0 0
        %889 = vmatpush1.bf16.msra.mxu0 0
        %890 = vmatprep.subr.bf16.mxu0 0
        %891 = vmatpush1.bf16.msra.mxu0 0
        %892 = vmatprep.subr.bf16.mxu0 0
        %893 = vmatpush1.bf16.msra.mxu0 0
        %894 = vmatprep.subr.bf16.mxu0 0
        %895 = vmatpush1.bf16.msra.mxu0 0
        %896 = vmatprep.subr.bf16.mxu0 0
        %897 = vmatpush1.bf16.msra.mxu0 0
        %898 = vmatprep.subr.bf16.mxu0 0
        %899 = vmatpush1.bf16.msra.mxu0 0
        %900 = vmatprep.subr.bf16.mxu0 0
        %901 = vmatpush1.bf16.msra.mxu0 0
        %902 = vmatprep.subr.bf16.mxu0 0
        %903 = vmatpush1.bf16.msra.mxu0 0
        %904 = vmatprep.subr.bf16.mxu0 0
        %905 = vmatpush1.bf16.msra.mxu0 0
        %906 = vmatprep.subr.bf16.mxu0 0
        %907 = vmatpush1.bf16.msra.mxu0 0
        %908 = vmatprep.mubr.bf16.mxu0 0
        %909 = vmatmul.mubr.bf16.gmra.mrb[0].mxu0 %v514
        %v910 = vpop.f32.mrb[0].mxu0
        %v911 = vadd.f32 %v379, %v910
        %v912 = vpop.f32.mrb[0].mxu0
        %v913 = vadd.f32 %v383, %v912
        %v914 = vpop.f32.mrb[0].mxu0
        %v915 = vadd.f32 %v379, %v914
        %v916 = vpop.f32.mrb[0].mxu0
        %v917 = vadd.f32 %v383, %v916
        %918 = vmatprep.mubr.bf16.mxu0 0
        %919 = vmatmul.mubr.bf16.gmra.mrb[0].mxu0 %v517
        %v920 = vpop.f32.mrb[0].mxu0
        %v921 = vadd.f32 %v379, %v920
        %v922 = vpop.f32.mrb[0].mxu0
        %v923 = vadd.f32 %v383, %v922
        %v924 = vpop.f32.mrb[0].mxu0
        %v925 = vadd.f32 %v379, %v924
        %v926 = vpop.f32.mrb[0].mxu0
        %v927 = vadd.f32 %v383, %v926
        %928 = vmatprep.mubr.bf16.mxu0 0
        %929 = vmatmul.mubr.bf16.gmra.mrb[0].mxu0 %v520
        %v930 = vpop.f32.mrb[0].mxu0
        %v931 = vadd.f32 %v379, %v930
        %v932 = vpop.f32.mrb[0].mxu0
        %v933 = vadd.f32 %v383, %v932
        %v934 = vpop.f32.mrb[0].mxu0
        %v935 = vadd.f32 %v379, %v934
        %v936 = vpop.f32.mrb[0].mxu0
        %v937 = vadd.f32 %v383, %v936
        %938 = vmatprep.mubr.bf16.mxu0 0
        %939 = vmatmul.mubr.bf16.gmra.mrb[0].mxu0 %v523
        %v940 = vpop.f32.mrb[0].mxu0
        %v941 = vadd.f32 %v379, %v940
        %v942 = vpop.f32.mrb[0].mxu0
        %v943 = vadd.f32 %v383, %v942
        %v944 = vpop.f32.mrb[0].mxu0
        %v945 = vadd.f32 %v379, %v944
        %v946 = vpop.f32.mrb[0].mxu0
        %v947 = vadd.f32 %v383, %v946
        %948 = vmatprep.mubr.bf16.mxu0 0
        %949 = vmatmul.mubr.bf16.gmra.mrb[0].mxu0 %v526
        %v950 = vpop.f32.mrb[0].mxu0
        %v951 = vadd.f32 %v379, %v950
        %v952 = vpop.f32.mrb[0].mxu0
        %v953 = vadd.f32 %v383, %v952
        %v954 = vpop.f32.mrb[0].mxu0
        %v955 = vadd.f32 %v379, %v954
        %v956 = vpop.f32.mrb[0].mxu0
        %v957 = vadd.f32 %v383, %v956
        %958 = vmatprep.mubr.bf16.mxu0 0
        %959 = vmatmul.mubr.bf16.gmra.mrb[0].mxu0 %v529
        %v960 = vpop.f32.mrb[0].mxu0
        %v961 = vadd.f32 %v379, %v960
        %v962 = vpop.f32.mrb[0].mxu0
        %v963 = vadd.f32 %v383, %v962
        %v964 = vpop.f32.mrb[0].mxu0
        %v965 = vadd.f32 %v379, %v964
        %v966 = vpop.f32.mrb[0].mxu0
        %v967 = vadd.f32 %v383, %v966
        %968 = vmatprep.mubr.bf16.mxu0 0
        %969 = vmatmul.mubr.bf16.gmra.mrb[0].mxu0 %v532
        %v970 = vpop.f32.mrb[0].mxu0
        %v971 = vadd.f32 %v379, %v970
        %v972 = vpop.f32.mrb[0].mxu0
        %v973 = vadd.f32 %v383, %v972
        %v974 = vpop.f32.mrb[0].mxu0
        %v975 = vadd.f32 %v379, %v974
        %v976 = vpop.f32.mrb[0].mxu0
        %v977 = vadd.f32 %v383, %v976
        %978 = vmatprep.mubr.bf16.mxu0 0
        %979 = vmatmul.mubr.bf16.gmra.mrb[0].mxu0 %v535
        %v980 = vpop.f32.mrb[0].mxu0
        %v981 = vadd.f32 %v379, %v980
        %v982 = vpop.f32.mrb[0].mxu0
        %v983 = vadd.f32 %v383, %v982
        %v984 = vpop.f32.mrb[0].mxu0
        %v985 = vadd.f32 %v379, %v984
        %v986 = vpop.f32.mrb[0].mxu0
        %v987 = vadd.f32 %v383, %v986
        %988 = vdwg.mxu0
        %v989 = vtanh.pop %v572
        %v990 = vtanh.pop %v574
        %v991 = vtanh.pop %v685
        %v992 = vtanh.pop %v687
        %v993 = vtanh.pop %v576
        %v994 = vtanh.pop %v578
        %v995 = vtanh.pop %v689
        %v996 = vtanh.pop %v691
        %v997 = vtanh.pop %v582
        %v998 = vtanh.pop %v584
        %v999 = vtanh.pop %v695
        %v1000 = vtanh.pop %v697
        %v1001 = vtanh.pop %v586
        %v1002 = vtanh.pop %v588
        %v1003 = vtanh.pop %v699
        %v1004 = vtanh.pop %v701
        %v1005 = vtanh.pop %v592
        %v1006 = vtanh.pop %v594
        %v1007 = vtanh.pop %v705
        %v1008 = vtanh.pop %v707
        %v1009 = vtanh.pop %v596
        %v1010 = vtanh.pop %v598
        %v1011 = vtanh.pop %v709
        %v1012 = vtanh.pop %v711
        %v1013 = vtanh.pop %v602
        %v1014 = vtanh.pop %v604
        %v1015 = vtanh.pop %v715
        %v1016 = vtanh.pop %v717
        %v1017 = vtanh.pop %v606
        %v1018 = vtanh.pop %v608
        %v1019 = vtanh.pop %v719
        %v1020 = vtanh.pop %v721
        %v1021 = vtanh.pop %v612
        %v1022 = vtanh.pop %v614
        %v1023 = vtanh.pop %v725
        %v1024 = vtanh.pop %v727
        %v1025 = vtanh.pop %v616
        %v1026 = vtanh.pop %v618
        %v1027 = vtanh.pop %v729
        %v1028 = vtanh.pop %v731
        %v1029 = vtanh.pop %v622
        %v1030 = vtanh.pop %v624
        %v1031 = vtanh.pop %v735
        %v1032 = vtanh.pop %v737
        %v1033 = vtanh.pop %v626
        %v1034 = vtanh.pop %v628
        %v1035 = vtanh.pop %v739
        %v1036 = vtanh.pop %v741
        %v1037 = vtanh.pop %v632
        %v1038 = vtanh.pop %v634
        %v1039 = vtanh.pop %v745
        %v1040 = vtanh.pop %v747
        %v1041 = vtanh.pop %v636
        %v1042 = vtanh.pop %v638
        %v1043 = vtanh.pop %v749
        %v1044 = vtanh.pop %v751
        %v1045 = vtanh.pop %v642
        %v1046 = vtanh.pop %v644
        %v1047 = vtanh.pop %v755
        %v1048 = vtanh.pop %v757
        %v1049 = vtanh.pop %v646
        %v1050 = vtanh.pop %v648
        %v1051 = vtanh.pop %v759
        %v1052 = vtanh.pop %v761
        %v1053 = vmul.f32 %v798, 0.5
        %v1054 = vmul.f32 %v800, 0.5
        %v1055 = vmul.f32 %v911, 0.5
        %v1056 = vmul.f32 %v913, 0.5
        %v1057 = vmul.f32 %v802, 0.5
        %v1058 = vmul.f32 %v804, 0.5
        %v1059 = vmul.f32 %v915, 0.5
        %v1060 = vmul.f32 %v917, 0.5
        %v1061 = vmul.f32 %v808, 0.5
        %v1062 = vmul.f32 %v810, 0.5
        %v1063 = vmul.f32 %v921, 0.5
        %v1064 = vmul.f32 %v923, 0.5
        %v1065 = vmul.f32 %v812, 0.5
        %v1066 = vmul.f32 %v814, 0.5
        %v1067 = vmul.f32 %v925, 0.5
        %v1068 = vmul.f32 %v927, 0.5
        %v1069 = vmul.f32 %v818, 0.5
        %v1070 = vmul.f32 %v820, 0.5
        %v1071 = vmul.f32 %v931, 0.5
        %v1072 = vmul.f32 %v933, 0.5
        %v1073 = vmul.f32 %v822, 0.5
        %v1074 = vmul.f32 %v824, 0.5
        %v1075 = vmul.f32 %v935, 0.5
        %v1076 = vmul.f32 %v937, 0.5
        %v1077 = vmul.f32 %v828, 0.5
        %v1078 = vmul.f32 %v830, 0.5
        %v1079 = vmul.f32 %v941, 0.5
        %v1080 = vmul.f32 %v943, 0.5
        %v1081 = vmul.f32 %v832, 0.5
        %v1082 = vmul.f32 %v834, 0.5
        %v1083 = vmul.f32 %v945, 0.5
        %v1084 = vmul.f32 %v947, 0.5
        %v1085 = vmul.f32 %v838, 0.5
        %v1086 = vmul.f32 %v840, 0.5
        %v1087 = vmul.f32 %v951, 0.5
        %v1088 = vmul.f32 %v953, 0.5
        %v1089 = vmul.f32 %v842, 0.5
        %v1090 = vmul.f32 %v844, 0.5
        %v1091 = vmul.f32 %v955, 0.5
        %v1092 = vmul.f32 %v957, 0.5
        %v1093 = vmul.f32 %v848, 0.5
        %v1094 = vmul.f32 %v850, 0.5
        %v1095 = vmul.f32 %v961, 0.5
        %v1096 = vmul.f32 %v963, 0.5
        %v1097 = vmul.f32 %v852, 0.5
        %v1098 = vmul.f32 %v854, 0.5
        %v1099 = vmul.f32 %v965, 0.5
        %v1100 = vmul.f32 %v967, 0.5
        %v1101 = vmul.f32 %v858, 0.5
        %v1102 = vmul.f32 %v860, 0.5
        %v1103 = vmul.f32 %v971, 0.5
        %v1104 = vmul.f32 %v973, 0.5
        %v1105 = vmul.f32 %v862, 0.5
        %v1106 = vmul.f32 %v864, 0.5
        %v1107 = vmul.f32 %v975, 0.5
        %v1108 = vmul.f32 %v977, 0.5
        %v1109 = vmul.f32 %v868, 0.5
        %v1110 = vmul.f32 %v870, 0.5
        %v1111 = vmul.f32 %v981, 0.5
        %v1112 = vmul.f32 %v983, 0.5
        %v1113 = vmul.f32 %v872, 0.5
        %v1114 = vmul.f32 %v874, 0.5
        %v1115 = vmul.f32 %v985, 0.5
        %v1116 = vmul.f32 %v987, 0.5
        %v1117 = vtanh.pop %v1053
        %v1118 = vtanh.pop %v1054
        %v1119 = vtanh.pop %v1055
        %v1120 = vtanh.pop %v1056
        %v1121 = vtanh.pop %v1057
        %v1122 = vtanh.pop %v1058
        %v1123 = vtanh.pop %v1059
        %v1124 = vtanh.pop %v1060
        %v1125 = vtanh.pop %v1061
        %v1126 = vtanh.pop %v1062
        %v1127 = vtanh.pop %v1063
        %v1128 = vtanh.pop %v1064
        %v1129 = vtanh.pop %v1065
        %v1130 = vtanh.pop %v1066
        %v1131 = vtanh.pop %v1067
        %v1132 = vtanh.pop %v1068
        %v1133 = vtanh.pop %v1069
        %v1134 = vtanh.pop %v1070
        %v1135 = vtanh.pop %v1071
        %v1136 = vtanh.pop %v1072
        %v1137 = vtanh.pop %v1073
        %v1138 = vtanh.pop %v1074
        %v1139 = vtanh.pop %v1075
        %v1140 = vtanh.pop %v1076
        %v1141 = vtanh.pop %v1077
        %v1142 = vtanh.pop %v1078
        %v1143 = vtanh.pop %v1079
        %v1144 = vtanh.pop %v1080
        %v1145 = vtanh.pop %v1081
        %v1146 = vtanh.pop %v1082
        %v1147 = vtanh.pop %v1083
        %v1148 = vtanh.pop %v1084
        %v1149 = vtanh.pop %v1085
        %v1150 = vtanh.pop %v1086
        %v1151 = vtanh.pop %v1087
        %v1152 = vtanh.pop %v1088
        %v1153 = vtanh.pop %v1089
        %v1154 = vtanh.pop %v1090
        %v1155 = vtanh.pop %v1091
        %v1156 = vtanh.pop %v1092
        %v1157 = vtanh.pop %v1093
        %v1158 = vtanh.pop %v1094
        %v1159 = vtanh.pop %v1095
        %v1160 = vtanh.pop %v1096
        %v1161 = vtanh.pop %v1097
        %v1162 = vtanh.pop %v1098
        %v1163 = vtanh.pop %v1099
        %v1164 = vtanh.pop %v1100
        %v1165 = vtanh.pop %v1101
        %v1166 = vtanh.pop %v1102
        %v1167 = vtanh.pop %v1103
        %v1168 = vtanh.pop %v1104
        %v1169 = vtanh.pop %v1105
        %v1170 = vtanh.pop %v1106
        %v1171 = vtanh.pop %v1107
        %v1172 = vtanh.pop %v1108
        %v1173 = vtanh.pop %v1109
        %v1174 = vtanh.pop %v1110
        %v1175 = vtanh.pop %v1111
        %v1176 = vtanh.pop %v1112
        %v1177 = vtanh.pop %v1113
        %v1178 = vtanh.pop %v1114
        %v1179 = vtanh.pop %v1115
        %v1180 = vtanh.pop %v1116
        %v1181 = vadd.f32 %v1117, 1.0
        %v1182 = vadd.f32 %v1118, 1.0
        %v1183 = vadd.f32 %v1119, 1.0
        %v1184 = vadd.f32 %v1120, 1.0
        %v1185 = vadd.f32 %v1121, 1.0
        %v1186 = vadd.f32 %v1122, 1.0
        %v1187 = vadd.f32 %v1123, 1.0
        %v1188 = vadd.f32 %v1124, 1.0
        %v1189 = vadd.f32 %v1125, 1.0
        %v1190 = vadd.f32 %v1126, 1.0
        %v1191 = vadd.f32 %v1127, 1.0
        %v1192 = vadd.f32 %v1128, 1.0
        %v1193 = vadd.f32 %v1129, 1.0
        %v1194 = vadd.f32 %v1130, 1.0
        %v1195 = vadd.f32 %v1131, 1.0
        %v1196 = vadd.f32 %v1132, 1.0
        %v1197 = vadd.f32 %v1133, 1.0
        %v1198 = vadd.f32 %v1134, 1.0
        %v1199 = vadd.f32 %v1135, 1.0
        %v1200 = vadd.f32 %v1136, 1.0
        %v1201 = vadd.f32 %v1137, 1.0
        %v1202 = vadd.f32 %v1138, 1.0
        %v1203 = vadd.f32 %v1139, 1.0
        %v1204 = vadd.f32 %v1140, 1.0
        %v1205 = vadd.f32 %v1141, 1.0
        %v1206 = vadd.f32 %v1142, 1.0
        %v1207 = vadd.f32 %v1143, 1.0
        %v1208 = vadd.f32 %v1144, 1.0
        %v1209 = vadd.f32 %v1145, 1.0
        %v1210 = vadd.f32 %v1146, 1.0
        %v1211 = vadd.f32 %v1147, 1.0
        %v1212 = vadd.f32 %v1148, 1.0
        %v1213 = vadd.f32 %v1149, 1.0
        %v1214 = vadd.f32 %v1150, 1.0
        %v1215 = vadd.f32 %v1151, 1.0
        %v1216 = vadd.f32 %v1152, 1.0
        %v1217 = vadd.f32 %v1153, 1.0
        %v1218 = vadd.f32 %v1154, 1.0
        %v1219 = vadd.f32 %v1155, 1.0
        %v1220 = vadd.f32 %v1156, 1.0
        %v1221 = vadd.f32 %v1157, 1.0
        %v1222 = vadd.f32 %v1158, 1.0
        %v1223 = vadd.f32 %v1159, 1.0
        %v1224 = vadd.f32 %v1160, 1.0
        %v1225 = vadd.f32 %v1161, 1.0
        %v1226 = vadd.f32 %v1162, 1.0
        %v1227 = vadd.f32 %v1163, 1.0
        %v1228 = vadd.f32 %v1164, 1.0
        %v1229 = vadd.f32 %v1165, 1.0
        %v1230 = vadd.f32 %v1166, 1.0
        %v1231 = vadd.f32 %v1167, 1.0
        %v1232 = vadd.f32 %v1168, 1.0
        %v1233 = vadd.f32 %v1169, 1.0
        %v1234 = vadd.f32 %v1170, 1.0
        %v1235 = vadd.f32 %v1171, 1.0
        %v1236 = vadd.f32 %v1172, 1.0
        %v1237 = vadd.f32 %v1173, 1.0
        %v1238 = vadd.f32 %v1174, 1.0
        %v1239 = vadd.f32 %v1175, 1.0
        %v1240 = vadd.f32 %v1176, 1.0
        %v1241 = vadd.f32 %v1177, 1.0
        %v1242 = vadd.f32 %v1178, 1.0
        %v1243 = vadd.f32 %v1179, 1.0
        %v1244 = vadd.f32 %v1180, 1.0
        %v1245 = vmul.f32 %v1181, 0.5
        %v1246 = vmul.f32 %v1182, 0.5
        %v1247 = vmul.f32 %v1183, 0.5
        %v1248 = vmul.f32 %v1184, 0.5
        %v1249 = vmul.f32 %v1185, 0.5
        %v1250 = vmul.f32 %v1186, 0.5
        %v1251 = vmul.f32 %v1187, 0.5
        %v1252 = vmul.f32 %v1188, 0.5
        %v1253 = vmul.f32 %v1189, 0.5
        %v1254 = vmul.f32 %v1190, 0.5
        %v1255 = vmul.f32 %v1191, 0.5
        %v1256 = vmul.f32 %v1192, 0.5
        %v1257 = vmul.f32 %v1193, 0.5
        %v1258 = vmul.f32 %v1194, 0.5
        %v1259 = vmul.f32 %v1195, 0.5
        %v1260 = vmul.f32 %v1196, 0.5
        %v1261 = vmul.f32 %v1197, 0.5
        %v1262 = vmul.f32 %v1198, 0.5
        %v1263 = vmul.f32 %v1199, 0.5
        %v1264 = vmul.f32 %v1200, 0.5
        %v1265 = vmul.f32 %v1201, 0.5
        %v1266 = vmul.f32 %v1202, 0.5
        %v1267 = vmul.f32 %v1203, 0.5
        %v1268 = vmul.f32 %v1204, 0.5
        %v1269 = vmul.f32 %v1205, 0.5
        %v1270 = vmul.f32 %v1206, 0.5
        %v1271 = vmul.f32 %v1207, 0.5
        %v1272 = vmul.f32 %v1208, 0.5
        %v1273 = vmul.f32 %v1209, 0.5
        %v1274 = vmul.f32 %v1210, 0.5
        %v1275 = vmul.f32 %v1211, 0.5
        %v1276 = vmul.f32 %v1212, 0.5
        %v1277 = vmul.f32 %v1213, 0.5
        %v1278 = vmul.f32 %v1214, 0.5
        %v1279 = vmul.f32 %v1215, 0.5
        %v1280 = vmul.f32 %v1216, 0.5
        %v1281 = vmul.f32 %v1217, 0.5
        %v1282 = vmul.f32 %v1218, 0.5
        %v1283 = vmul.f32 %v1219, 0.5
        %v1284 = vmul.f32 %v1220, 0.5
        %v1285 = vmul.f32 %v1221, 0.5
        %v1286 = vmul.f32 %v1222, 0.5
        %v1287 = vmul.f32 %v1223, 0.5
        %v1288 = vmul.f32 %v1224, 0.5
        %v1289 = vmul.f32 %v1225, 0.5
        %v1290 = vmul.f32 %v1226, 0.5
        %v1291 = vmul.f32 %v1227, 0.5
        %v1292 = vmul.f32 %v1228, 0.5
        %v1293 = vmul.f32 %v1229, 0.5
        %v1294 = vmul.f32 %v1230, 0.5
        %v1295 = vmul.f32 %v1231, 0.5
        %v1296 = vmul.f32 %v1232, 0.5
        %v1297 = vmul.f32 %v1233, 0.5
        %v1298 = vmul.f32 %v1234, 0.5
        %v1299 = vmul.f32 %v1235, 0.5
        %v1300 = vmul.f32 %v1236, 0.5
        %v1301 = vmul.f32 %v1237, 0.5
        %v1302 = vmul.f32 %v1238, 0.5
        %v1303 = vmul.f32 %v1239, 0.5
        %v1304 = vmul.f32 %v1240, 0.5
        %v1305 = vmul.f32 %v1241, 0.5
        %v1306 = vmul.f32 %v1242, 0.5
        %v1307 = vmul.f32 %v1243, 0.5
        %v1308 = vmul.f32 %v1244, 0.5
        %v1309 = vmul.f32 %v989, %v1245
        %v1310 = vmul.f32 %v990, %v1246
        %v1311 = vmul.f32 %v991, %v1247
        %v1312 = vmul.f32 %v992, %v1248
        %v1313 = vmul.f32 %v993, %v1249
        %v1314 = vmul.f32 %v994, %v1250
        %v1315 = vmul.f32 %v995, %v1251
        %v1316 = vmul.f32 %v996, %v1252
        %v1317 = vmul.f32 %v997, %v1253
        %v1318 = vmul.f32 %v998, %v1254
        %v1319 = vmul.f32 %v999, %v1255
        %v1320 = vmul.f32 %v1000, %v1256
        %v1321 = vmul.f32 %v1001, %v1257
        %v1322 = vmul.f32 %v1002, %v1258
        %v1323 = vmul.f32 %v1003, %v1259
        %v1324 = vmul.f32 %v1004, %v1260
        %v1325 = vmul.f32 %v1005, %v1261
        %v1326 = vmul.f32 %v1006, %v1262
        %v1327 = vmul.f32 %v1007, %v1263
        %v1328 = vmul.f32 %v1008, %v1264
        %v1329 = vmul.f32 %v1009, %v1265
        %v1330 = vmul.f32 %v1010, %v1266
        %v1331 = vmul.f32 %v1011, %v1267
        %v1332 = vmul.f32 %v1012, %v1268
        %v1333 = vmul.f32 %v1013, %v1269
        %v1334 = vmul.f32 %v1014, %v1270
        %v1335 = vmul.f32 %v1015, %v1271
        %v1336 = vmul.f32 %v1016, %v1272
        %v1337 = vmul.f32 %v1017, %v1273
        %v1338 = vmul.f32 %v1018, %v1274
        %v1339 = vmul.f32 %v1019, %v1275
        %v1340 = vmul.f32 %v1020, %v1276
        %v1341 = vmul.f32 %v1021, %v1277
        %v1342 = vmul.f32 %v1022, %v1278
        %v1343 = vmul.f32 %v1023, %v1279
        %v1344 = vmul.f32 %v1024, %v1280
        %v1345 = vmul.f32 %v1025, %v1281
        %v1346 = vmul.f32 %v1026, %v1282
        %v1347 = vmul.f32 %v1027, %v1283
        %v1348 = vmul.f32 %v1028, %v1284
        %v1349 = vmul.f32 %v1029, %v1285
        %v1350 = vmul.f32 %v1030, %v1286
        %v1351 = vmul.f32 %v1031, %v1287
        %v1352 = vmul.f32 %v1032, %v1288
        %v1353 = vmul.f32 %v1033, %v1289
        %v1354 = vmul.f32 %v1034, %v1290
        %v1355 = vmul.f32 %v1035, %v1291
        %v1356 = vmul.f32 %v1036, %v1292
        %v1357 = vmul.f32 %v1037, %v1293
        %v1358 = vmul.f32 %v1038, %v1294
        %v1359 = vmul.f32 %v1039, %v1295
        %v1360 = vmul.f32 %v1040, %v1296
        %v1361 = vmul.f32 %v1041, %v1297
        %v1362 = vmul.f32 %v1042, %v1298
        %v1363 = vmul.f32 %v1043, %v1299
        %v1364 = vmul.f32 %v1044, %v1300
        %v1365 = vmul.f32 %v1045, %v1301
        %v1366 = vmul.f32 %v1046, %v1302
        %v1367 = vmul.f32 %v1047, %v1303
        %v1368 = vmul.f32 %v1048, %v1304
        %v1369 = vmul.f32 %v1049, %v1305
        %v1370 = vmul.f32 %v1050, %v1306
        %v1371 = vmul.f32 %v1051, %v1307
        %v1372 = vmul.f32 %v1052, %v1308
        %v1373 = vlaneseq
        %v1374 = vshrl.u32 %v1373, 7
        %v1375 = vadd.s32 %v1374, 8
        %v1376 = vadd.s32 %v1374, 16
        %v1377 = vadd.s32 %v1374, 24
        %v1378 = vadd.s32 %v1374, 32
        %v1379 = vadd.s32 %v1374, 40
        %v1380 = vadd.s32 %v1374, 48
        %v1381 = vadd.s32 %v1374, 56
        %v1382 = vadd.s32 %v1374, 64
        %v1383 = vadd.s32 %v1374, 72
        %v1384 = vadd.s32 %v1374, 80
        %v1385 = vadd.s32 %v1374, 88
        %v1386 = vadd.s32 %v1374, 96
        %v1387 = vadd.s32 %v1374, 104
        %v1388 = vadd.s32 %v1374, 112
        %v1389 = vadd.s32 %v1374, 120
        %s1390 = smul.u32 %s21, 128
        %v1391 = vstv %s1390
        %v1392 = vadd.s32 %v1374, %v1391
        %v1393 = vadd.s32 %v1375, %v1391
        %v1394 = vadd.s32 %v1376, %v1391
        %v1395 = vadd.s32 %v1377, %v1391
        %v1396 = vadd.s32 %v1378, %v1391
        %v1397 = vadd.s32 %v1379, %v1391
        %v1398 = vadd.s32 %v1380, %v1391
        %v1399 = vadd.s32 %v1381, %v1391
        %v1400 = vadd.s32 %v1382, %v1391
        %v1401 = vadd.s32 %v1383, %v1391
        %v1402 = vadd.s32 %v1384, %v1391
        %v1403 = vadd.s32 %v1385, %v1391
        %v1404 = vadd.s32 %v1386, %v1391
        %v1405 = vadd.s32 %v1387, %v1391
        %v1406 = vadd.s32 %v1388, %v1391
        %v1407 = vadd.s32 %v1389, %v1391
        %vm1408 = vcmp.lt.s32.totalorder %v1392, 300
        %vm1409 = vcmp.lt.s32.totalorder %v1393, 300
        %vm1410 = vcmp.lt.s32.totalorder %v1394, 300
        %vm1411 = vcmp.lt.s32.totalorder %v1395, 300
        %vm1412 = vcmp.lt.s32.totalorder %v1396, 300
        %vm1413 = vcmp.lt.s32.totalorder %v1397, 300
        %vm1414 = vcmp.lt.s32.totalorder %v1398, 300
        %vm1415 = vcmp.lt.s32.totalorder %v1399, 300
        %vm1416 = vcmp.lt.s32.totalorder %v1400, 300
        %vm1417 = vcmp.lt.s32.totalorder %v1401, 300
        %vm1418 = vcmp.lt.s32.totalorder %v1402, 300
        %vm1419 = vcmp.lt.s32.totalorder %v1403, 300
        %vm1420 = vcmp.lt.s32.totalorder %v1404, 300
        %vm1421 = vcmp.lt.s32.totalorder %v1405, 300
        %vm1422 = vcmp.lt.s32.totalorder %v1406, 300
        %vm1423 = vcmp.lt.s32.totalorder %v1407, 300
        %v1424 = vld [vmem:[%s3] ss:$2 sm:$0xf]
        %v1426 = vlaneseq
        %v1427 = vshrl.u32 %v1426, 7
        %v1428 = vsub.s32 0, %v1427
        %v1429 = vrot.slane %v1424, %v1428
        %v1430 = vlaneseq
        %v1431 = vshrl.u32 %v1430, 7
        %v1432 = vsub.s32 1, %v1431
        %v1433 = vrot.slane %v1424, %v1432
        %v1434 = vlaneseq
        %v1435 = vshrl.u32 %v1434, 7
        %v1436 = vsub.s32 2, %v1435
        %v1437 = vrot.slane %v1424, %v1436
        %v1438 = vlaneseq
        %v1439 = vshrl.u32 %v1438, 7
        %v1440 = vsub.s32 3, %v1439
        %v1441 = vrot.slane %v1424, %v1440
        %v1446 = vmul.f32 %v1309, %v1429
        %v1447 = vmul.f32 %v1310, %v1433
        %v1448 = vmul.f32 %v1311, %v1437
        %v1449 = vmul.f32 %v1312, %v1441
        %v1450 = vmul.f32 %v1313, %v1429
        %v1451 = vmul.f32 %v1314, %v1433
        %v1452 = vmul.f32 %v1315, %v1437
        %v1453 = vmul.f32 %v1316, %v1441
        %v1454 = vmul.f32 %v1317, %v1429
        %v1455 = vmul.f32 %v1318, %v1433
        %v1456 = vmul.f32 %v1319, %v1437
        %v1457 = vmul.f32 %v1320, %v1441
        %v1458 = vmul.f32 %v1321, %v1429
        %v1459 = vmul.f32 %v1322, %v1433
        %v1460 = vmul.f32 %v1323, %v1437
        %v1461 = vmul.f32 %v1324, %v1441
        %v1462 = vmul.f32 %v1325, %v1429
        %v1463 = vmul.f32 %v1326, %v1433
        %v1464 = vmul.f32 %v1327, %v1437
        %v1465 = vmul.f32 %v1328, %v1441
        %v1466 = vmul.f32 %v1329, %v1429
        %v1467 = vmul.f32 %v1330, %v1433
        %v1468 = vmul.f32 %v1331, %v1437
        %v1469 = vmul.f32 %v1332, %v1441
        %v1470 = vmul.f32 %v1333, %v1429
        %v1471 = vmul.f32 %v1334, %v1433
        %v1472 = vmul.f32 %v1335, %v1437
        %v1473 = vmul.f32 %v1336, %v1441
        %v1474 = vmul.f32 %v1337, %v1429
        %v1475 = vmul.f32 %v1338, %v1433
        %v1476 = vmul.f32 %v1339, %v1437
        %v1477 = vmul.f32 %v1340, %v1441
        %v1478 = vmul.f32 %v1341, %v1429
        %v1479 = vmul.f32 %v1342, %v1433
        %v1480 = vmul.f32 %v1343, %v1437
        %v1481 = vmul.f32 %v1344, %v1441
        %v1482 = vmul.f32 %v1345, %v1429
        %v1483 = vmul.f32 %v1346, %v1433
        %v1484 = vmul.f32 %v1347, %v1437
        %v1485 = vmul.f32 %v1348, %v1441
        %v1486 = vmul.f32 %v1349, %v1429
        %v1487 = vmul.f32 %v1350, %v1433
        %v1488 = vmul.f32 %v1351, %v1437
        %v1489 = vmul.f32 %v1352, %v1441
        %v1490 = vmul.f32 %v1353, %v1429
        %v1491 = vmul.f32 %v1354, %v1433
        %v1492 = vmul.f32 %v1355, %v1437
        %v1493 = vmul.f32 %v1356, %v1441
        %v1494 = vmul.f32 %v1357, %v1429
        %v1495 = vmul.f32 %v1358, %v1433
        %v1496 = vmul.f32 %v1359, %v1437
        %v1497 = vmul.f32 %v1360, %v1441
        %v1498 = vmul.f32 %v1361, %v1429
        %v1499 = vmul.f32 %v1362, %v1433
        %v1500 = vmul.f32 %v1363, %v1437
        %v1501 = vmul.f32 %v1364, %v1441
        %v1502 = vmul.f32 %v1365, %v1429
        %v1503 = vmul.f32 %v1366, %v1433
        %v1504 = vmul.f32 %v1367, %v1437
        %v1505 = vmul.f32 %v1368, %v1441
        %v1506 = vmul.f32 %v1369, %v1429
        %v1507 = vmul.f32 %v1370, %v1433
        %v1508 = vmul.f32 %v1371, %v1437
        %v1509 = vmul.f32 %v1372, %v1441
        %v1510 = vadd.f32 %v1446, %v1447
        %v1511 = vadd.f32 %v1510, %v1448
        %v1512 = vadd.f32 %v1511, %v1449
        %1513 = vadd.xlane.f32.xlu0 %v1512
        %v1514 = vpop.xlane.xlu0 %1513
        %v1515 = vadd.f32 %v1450, %v1451
        %v1516 = vadd.f32 %v1515, %v1452
        %v1517 = vadd.f32 %v1516, %v1453
        %1518 = vadd.xlane.f32.xlu0 %v1517
        %v1519 = vpop.xlane.xlu0 %1518
        %v1520 = vadd.f32 %v1454, %v1455
        %v1521 = vadd.f32 %v1520, %v1456
        %v1522 = vadd.f32 %v1521, %v1457
        %1523 = vadd.xlane.f32.xlu0 %v1522
        %v1524 = vpop.xlane.xlu0 %1523
        %v1525 = vadd.f32 %v1458, %v1459
        %v1526 = vadd.f32 %v1525, %v1460
        %v1527 = vadd.f32 %v1526, %v1461
        %1528 = vadd.xlane.f32.xlu0 %v1527
        %v1529 = vpop.xlane.xlu0 %1528
        %v1530 = vadd.f32 %v1462, %v1463
        %v1531 = vadd.f32 %v1530, %v1464
        %v1532 = vadd.f32 %v1531, %v1465
        %1533 = vadd.xlane.f32.xlu0 %v1532
        %v1534 = vpop.xlane.xlu0 %1533
        %v1535 = vadd.f32 %v1466, %v1467
        %v1536 = vadd.f32 %v1535, %v1468
        %v1537 = vadd.f32 %v1536, %v1469
        %1538 = vadd.xlane.f32.xlu0 %v1537
        %v1539 = vpop.xlane.xlu0 %1538
        %v1540 = vadd.f32 %v1470, %v1471
        %v1541 = vadd.f32 %v1540, %v1472
        %v1542 = vadd.f32 %v1541, %v1473
        %1543 = vadd.xlane.f32.xlu0 %v1542
        %v1544 = vpop.xlane.xlu0 %1543
        %v1545 = vadd.f32 %v1474, %v1475
        %v1546 = vadd.f32 %v1545, %v1476
        %v1547 = vadd.f32 %v1546, %v1477
        %1548 = vadd.xlane.f32.xlu0 %v1547
        %v1549 = vpop.xlane.xlu0 %1548
        %v1550 = vadd.f32 %v1478, %v1479
        %v1551 = vadd.f32 %v1550, %v1480
        %v1552 = vadd.f32 %v1551, %v1481
        %1553 = vadd.xlane.f32.xlu0 %v1552
        %v1554 = vpop.xlane.xlu0 %1553
        %v1555 = vadd.f32 %v1482, %v1483
        %v1556 = vadd.f32 %v1555, %v1484
        %v1557 = vadd.f32 %v1556, %v1485
        %1558 = vadd.xlane.f32.xlu0 %v1557
        %v1559 = vpop.xlane.xlu0 %1558
        %v1560 = vadd.f32 %v1486, %v1487
        %v1561 = vadd.f32 %v1560, %v1488
        %v1562 = vadd.f32 %v1561, %v1489
        %1563 = vadd.xlane.f32.xlu0 %v1562
        %v1564 = vpop.xlane.xlu0 %1563
        %v1565 = vadd.f32 %v1490, %v1491
        %v1566 = vadd.f32 %v1565, %v1492
        %v1567 = vadd.f32 %v1566, %v1493
        %1568 = vadd.xlane.f32.xlu0 %v1567
        %v1569 = vpop.xlane.xlu0 %1568
        %v1570 = vadd.f32 %v1494, %v1495
        %v1571 = vadd.f32 %v1570, %v1496
        %v1572 = vadd.f32 %v1571, %v1497
        %1573 = vadd.xlane.f32.xlu0 %v1572
        %v1574 = vpop.xlane.xlu0 %1573
        %v1575 = vadd.f32 %v1498, %v1499
        %v1576 = vadd.f32 %v1575, %v1500
        %v1577 = vadd.f32 %v1576, %v1501
        %1578 = vadd.xlane.f32.xlu0 %v1577
        %v1579 = vpop.xlane.xlu0 %1578
        %v1580 = vadd.f32 %v1502, %v1503
        %v1581 = vadd.f32 %v1580, %v1504
        %v1582 = vadd.f32 %v1581, %v1505
        %1583 = vadd.xlane.f32.xlu0 %v1582
        %v1584 = vpop.xlane.xlu0 %1583
        %v1585 = vadd.f32 %v1506, %v1507
        %v1586 = vadd.f32 %v1585, %v1508
        %v1587 = vadd.f32 %v1586, %v1509
        %1588 = vadd.xlane.f32.xlu0 %v1587
        %v1589 = vpop.xlane.xlu0 %1588
        %s1590 = sld [smem:[#allocation5]]
        %v1591 = vstv %s1590
        %v1592 = vadd.f32 %v1514, %v1591
        %v1593 = vadd.f32 %v1519, %v1591
        %v1594 = vadd.f32 %v1524, %v1591
        %v1595 = vadd.f32 %v1529, %v1591
        %v1596 = vadd.f32 %v1534, %v1591
        %v1597 = vadd.f32 %v1539, %v1591
        %v1598 = vadd.f32 %v1544, %v1591
        %v1599 = vadd.f32 %v1549, %v1591
        %v1600 = vadd.f32 %v1554, %v1591
        %v1601 = vadd.f32 %v1559, %v1591
        %v1602 = vadd.f32 %v1564, %v1591
        %v1603 = vadd.f32 %v1569, %v1591
        %v1604 = vadd.f32 %v1574, %v1591
        %v1605 = vadd.f32 %v1579, %v1591
        %v1606 = vadd.f32 %v1584, %v1591
        %v1607 = vadd.f32 %v1589, %v1591
        %v1608 = vsel %vm1408, %v1592, -1e+30
        %v1609 = vsel %vm1409, %v1593, -1e+30
        %v1610 = vsel %vm1410, %v1594, -1e+30
        %v1611 = vsel %vm1411, %v1595, -1e+30
        %v1612 = vsel %vm1412, %v1596, -1e+30
        %v1613 = vsel %vm1413, %v1597, -1e+30
        %v1614 = vsel %vm1414, %v1598, -1e+30
        %v1615 = vsel %vm1415, %v1599, -1e+30
        %v1616 = vsel %vm1416, %v1600, -1e+30
        %v1617 = vsel %vm1417, %v1601, -1e+30
        %v1618 = vsel %vm1418, %v1602, -1e+30
        %v1619 = vsel %vm1419, %v1603, -1e+30
        %v1620 = vsel %vm1420, %v1604, -1e+30
        %v1621 = vsel %vm1421, %v1605, -1e+30
        %v1622 = vsel %vm1422, %v1606, -1e+30
        %v1623 = vsel %vm1423, %v1607, -1e+30
        %v1624 = vld [vmem:[#allocation2] sm:$0x1]
        %v1625 = vmax.f32 %v1608, %v1612
        %v1626 = vmax.f32 %v1609, %v1613
        %v1627 = vmax.f32 %v1610, %v1614
        %v1628 = vmax.f32 %v1611, %v1615
        %v1629 = vmax.f32 %v1625, %v1616
        %v1630 = vmax.f32 %v1626, %v1617
        %v1631 = vmax.f32 %v1627, %v1618
        %v1632 = vmax.f32 %v1628, %v1619
        %v1633 = vmax.f32 %v1629, %v1620
        %v1634 = vmax.f32 %v1630, %v1621
        %v1635 = vmax.f32 %v1631, %v1622
        %v1636 = vmax.f32 %v1632, %v1623
        %v1637 = vmax.f32 %v1633, %v1634
        %v1638 = vmax.f32 %v1635, %v1636
        %v1639 = vmax.f32 %v1637, %v1638
        %v1640 = vrot.slane %v1639, 4
        %v1641 = vmax.f32 %v1639, %v1640
        %v1642 = vrot.slane %v1641, 2
        %v1643 = vmax.f32 %v1641, %v1642
        %v1644 = vrot.slane %v1643, 1
        %v1645 = vmax.f32 %v1643, %v1644
        %v1646 = vmax.f32 %v1624, %v1645
        %v1647 = vsub.f32 %v1624, %v1646
        %v1648 = vmul.f32 %v1647, 1.442695
        %v1649 = vpow.pop %v1648
        %v1650 = vlaneseq
        %v1651 = vshrl.u32 %v1650, 7
        %v1652 = vsub.s32 0, %v1651
        %v1653 = vrot.slane %v1646, %v1652
        %v1654 = vsub.f32 %v1608, %v1653
        %v1655 = vsub.f32 %v1609, %v1653
        %v1656 = vsub.f32 %v1610, %v1653
        %v1657 = vsub.f32 %v1611, %v1653
        %v1658 = vsub.f32 %v1612, %v1653
        %v1659 = vsub.f32 %v1613, %v1653
        %v1660 = vsub.f32 %v1614, %v1653
        %v1661 = vsub.f32 %v1615, %v1653
        %v1662 = vsub.f32 %v1616, %v1653
        %v1663 = vsub.f32 %v1617, %v1653
        %v1664 = vsub.f32 %v1618, %v1653
        %v1665 = vsub.f32 %v1619, %v1653
        %v1666 = vsub.f32 %v1620, %v1653
        %v1667 = vsub.f32 %v1621, %v1653
        %v1668 = vsub.f32 %v1622, %v1653
        %v1669 = vsub.f32 %v1623, %v1653
        %v1670 = vmul.f32 %v1654, 1.442695
        %v1671 = vpow.pop %v1670
        %v1672 = vmul.f32 %v1655, 1.442695
        %v1673 = vpow.pop %v1672
        %v1674 = vmul.f32 %v1656, 1.442695
        %v1675 = vpow.pop %v1674
        %v1676 = vmul.f32 %v1657, 1.442695
        %v1677 = vpow.pop %v1676
        %v1678 = vmul.f32 %v1658, 1.442695
        %v1679 = vpow.pop %v1678
        %v1680 = vmul.f32 %v1659, 1.442695
        %v1681 = vpow.pop %v1680
        %v1682 = vmul.f32 %v1660, 1.442695
        %v1683 = vpow.pop %v1682
        %v1684 = vmul.f32 %v1661, 1.442695
        %v1685 = vpow.pop %v1684
        %v1686 = vmul.f32 %v1662, 1.442695
        %v1687 = vpow.pop %v1686
        %v1688 = vmul.f32 %v1663, 1.442695
        %v1689 = vpow.pop %v1688
        %v1690 = vmul.f32 %v1664, 1.442695
        %v1691 = vpow.pop %v1690
        %v1692 = vmul.f32 %v1665, 1.442695
        %v1693 = vpow.pop %v1692
        %v1694 = vmul.f32 %v1666, 1.442695
        %v1695 = vpow.pop %v1694
        %v1696 = vmul.f32 %v1667, 1.442695
        %v1697 = vpow.pop %v1696
        %v1698 = vmul.f32 %v1668, 1.442695
        %v1699 = vpow.pop %v1698
        %v1700 = vmul.f32 %v1669, 1.442695
        %v1701 = vpow.pop %v1700
        %v1702 = vld [vmem:[#allocation3] sm:$0x1]
        %v1703 = vmul.f32 %v1649, %v1702
        %vm1704 = vcmask 7168
        %v1705 = vsel %vm1704, %v1671, 0.0
        %v1706 = vsel %vm1704, %v1673, 0.0
        %v1707 = vadd.f32 %v1705, %v1706
        %v1708 = vsel %vm1704, %v1675, 0.0
        %v1709 = vadd.f32 %v1707, %v1708
        %v1710 = vsel %vm1704, %v1677, 0.0
        %v1711 = vadd.f32 %v1709, %v1710
        %v1712 = vsel %vm1704, %v1679, 0.0
        %v1713 = vadd.f32 %v1711, %v1712
        %v1714 = vsel %vm1704, %v1681, 0.0
        %v1715 = vadd.f32 %v1713, %v1714
        %v1716 = vsel %vm1704, %v1683, 0.0
        %v1717 = vadd.f32 %v1715, %v1716
        %v1718 = vsel %vm1704, %v1685, 0.0
        %v1719 = vadd.f32 %v1717, %v1718
        %v1720 = vsel %vm1704, %v1687, 0.0
        %v1721 = vadd.f32 %v1719, %v1720
        %v1722 = vsel %vm1704, %v1689, 0.0
        %v1723 = vadd.f32 %v1721, %v1722
        %v1724 = vsel %vm1704, %v1691, 0.0
        %v1725 = vadd.f32 %v1723, %v1724
        %v1726 = vsel %vm1704, %v1693, 0.0
        %v1727 = vadd.f32 %v1725, %v1726
        %v1728 = vsel %vm1704, %v1695, 0.0
        %v1729 = vadd.f32 %v1727, %v1728
        %v1730 = vsel %vm1704, %v1697, 0.0
        %v1731 = vadd.f32 %v1729, %v1730
        %v1732 = vsel %vm1704, %v1699, 0.0
        %v1733 = vadd.f32 %v1731, %v1732
        %v1734 = vsel %vm1704, %v1701, 0.0
        %v1735 = vadd.f32 %v1733, %v1734
        %v1736 = vrot.slane %v1735, 4
        %v1737 = vadd.f32 %v1735, %v1736
        %v1738 = vrot.slane %v1737, 2
        %v1739 = vadd.f32 %v1737, %v1738
        %v1740 = vrot.slane %v1739, 1
        %v1741 = vadd.f32 %v1739, %v1740
        %v1742 = vadd.f32 %v1703, %v1741
        %vm1743 = vcmask 0
        %1744 = vst.msk [vmem:[#allocation3] sm:$0x1] %vm1743, %v1742
        %v1745 = vpack.c.bf16 %v1673, %v1671
        %v1746 = vpack.c.bf16 %v1677, %v1675
        %v1747 = vpack.c.bf16 %v1681, %v1679
        %v1748 = vpack.c.bf16 %v1685, %v1683
        %v1749 = vpack.c.bf16 %v1689, %v1687
        %v1750 = vpack.c.bf16 %v1693, %v1691
        %v1751 = vpack.c.bf16 %v1697, %v1695
        %v1752 = vpack.c.bf16 %v1701, %v1699
        %1753 = vxpose.xlu0.c.b16.start [1/8] %v1745, 128
        %1754 = vxpose.xlu0.c.b16.cont [2/8] %v1746, 128
        %1755 = vxpose.xlu0.c.b16.cont [3/8] %v1747, 128
        %1756 = vxpose.xlu0.c.b16.cont [4/8] %v1748, 128
        %1757 = vxpose.xlu0.c.b16.cont [5/8] %v1749, 128
        %1758 = vxpose.xlu0.c.b16.cont [6/8] %v1750, 128
        %1759 = vxpose.xlu0.c.b16.cont [7/8] %v1751, 128
        %1760 = vxpose.xlu0.c.b16.end [8/8] %v1752, 128
        %v1761 = vpop.trf.xlu0
        %v1762 = vpop.trf.xlu0
        %v1763 = vpop.trf.xlu0
        %v1764 = vpop.trf.xlu0
        %v1765 = vpop.trf.xlu0
        %v1766 = vpop.trf.xlu0
        %v1767 = vpop.trf.xlu0
        %v1768 = vpop.trf.xlu0
        %1777 = vmatprep.subr.bf16.mxu0 0
        %1778 = vmatpush1.bf16.msra.mxu0 %v424
        %1779 = vmatprep.subr.bf16.mxu0 0
        %1780 = vmatpush1.bf16.msra.mxu0 %v425
        %1781 = vmatprep.subr.bf16.mxu0 0
        %1782 = vmatpush1.bf16.msra.mxu0 %v426
        %1783 = vmatprep.subr.bf16.mxu0 0
        %1784 = vmatpush1.bf16.msra.mxu0 %v427
        %1785 = vmatprep.subr.bf16.mxu0 0
        %1786 = vmatpush1.bf16.msra.mxu0 %v428
        %1787 = vmatprep.subr.bf16.mxu0 0
        %1788 = vmatpush1.bf16.msra.mxu0 %v429
        %1789 = vmatprep.subr.bf16.mxu0 0
        %1790 = vmatpush1.bf16.msra.mxu0 %v430
        %1791 = vmatprep.subr.bf16.mxu0 0
        %1792 = vmatpush1.bf16.msra.mxu0 %v431
        %1793 = vmatprep.subr.bf16.mxu0 0
        %1794 = vmatpush1.bf16.msra.mxu0 0
        %1795 = vmatprep.subr.bf16.mxu0 0
        %1796 = vmatpush1.bf16.msra.mxu0 0
        %1797 = vmatprep.subr.bf16.mxu0 0
        %1798 = vmatpush1.bf16.msra.mxu0 0
        %1799 = vmatprep.subr.bf16.mxu0 0
        %1800 = vmatpush1.bf16.msra.mxu0 0
        %1801 = vmatprep.subr.bf16.mxu0 0
        %1802 = vmatpush1.bf16.msra.mxu0 0
        %1803 = vmatprep.subr.bf16.mxu0 0
        %1804 = vmatpush1.bf16.msra.mxu0 0
        %1805 = vmatprep.subr.bf16.mxu0 0
        %1806 = vmatpush1.bf16.msra.mxu0 0
        %1807 = vmatprep.subr.bf16.mxu0 0
        %1808 = vmatpush1.bf16.msra.mxu0 0
        %1809 = vmatprep.mubr.bf16.mxu0 0
        %1810 = vmatmul.mubr.bf16.gmra.mrb[0].mxu0 %v1761
        %v1811 = vpop.f32.mrb[0].mxu0
        %v1812 = vadd.f32 0.0, %v1811
        %v1813 = vpop.f32.mrb[0].mxu0
        %v1814 = vpop.f32.mrb[0].mxu0
        %v1815 = vpop.f32.mrb[0].mxu0
        %1816 = vdwg.mxu0
        %v1817 = vld [vmem:[#allocation4] sm:$0x1]
        %1819 = vset.pattern.permute.xlu0 0
        %1820 = vperm.xlu0 %1819, %v1649
        %v1821 = vpop.permute.xlu0 %1820
        %v1823 = vmul.f32 %v1821, %v1817
        %v1824 = vadd.f32 %v1823, %v1812
        %vm1825 = vcmask 253952
        %1826 = vst.msk [vmem:[#allocation4] sm:$0x1] %vm1825, %v1824
        %1827 = vst.msk [vmem:[#allocation2] sm:$0x1] %vm1743, %v1646
        %s1828 = scalar_lea.vmem %s3, 1
        %v1829 = vld [vmem:[%s1828] ss:$2 sm:$0xf]
        %v1831 = vlaneseq
        %v1832 = vshrl.u32 %v1831, 7
        %v1833 = vsub.s32 0, %v1832
        %v1834 = vrot.slane %v1829, %v1833
        %v1835 = vlaneseq
        %v1836 = vshrl.u32 %v1835, 7
        %v1837 = vsub.s32 1, %v1836
        %v1838 = vrot.slane %v1829, %v1837
        %v1839 = vlaneseq
        %v1840 = vshrl.u32 %v1839, 7
        %v1841 = vsub.s32 2, %v1840
        %v1842 = vrot.slane %v1829, %v1841
        %v1843 = vlaneseq
        %v1844 = vshrl.u32 %v1843, 7
        %v1845 = vsub.s32 3, %v1844
        %v1846 = vrot.slane %v1829, %v1845
        %v1851 = vmul.f32 %v1309, %v1834
        %v1852 = vmul.f32 %v1310, %v1838
        %v1853 = vmul.f32 %v1311, %v1842
        %v1854 = vmul.f32 %v1312, %v1846
        %v1855 = vmul.f32 %v1313, %v1834
        %v1856 = vmul.f32 %v1314, %v1838
        %v1857 = vmul.f32 %v1315, %v1842
        %v1858 = vmul.f32 %v1316, %v1846
        %v1859 = vmul.f32 %v1317, %v1834
        %v1860 = vmul.f32 %v1318, %v1838
        %v1861 = vmul.f32 %v1319, %v1842
        %v1862 = vmul.f32 %v1320, %v1846
        %v1863 = vmul.f32 %v1321, %v1834
        %v1864 = vmul.f32 %v1322, %v1838
        %v1865 = vmul.f32 %v1323, %v1842
        %v1866 = vmul.f32 %v1324, %v1846
        %v1867 = vmul.f32 %v1325, %v1834
        %v1868 = vmul.f32 %v1326, %v1838
        %v1869 = vmul.f32 %v1327, %v1842
        %v1870 = vmul.f32 %v1328, %v1846
        %v1871 = vmul.f32 %v1329, %v1834
        %v1872 = vmul.f32 %v1330, %v1838
        %v1873 = vmul.f32 %v1331, %v1842
        %v1874 = vmul.f32 %v1332, %v1846
        %v1875 = vmul.f32 %v1333, %v1834
        %v1876 = vmul.f32 %v1334, %v1838
        %v1877 = vmul.f32 %v1335, %v1842
        %v1878 = vmul.f32 %v1336, %v1846
        %v1879 = vmul.f32 %v1337, %v1834
        %v1880 = vmul.f32 %v1338, %v1838
        %v1881 = vmul.f32 %v1339, %v1842
        %v1882 = vmul.f32 %v1340, %v1846
        %v1883 = vmul.f32 %v1341, %v1834
        %v1884 = vmul.f32 %v1342, %v1838
        %v1885 = vmul.f32 %v1343, %v1842
        %v1886 = vmul.f32 %v1344, %v1846
        %v1887 = vmul.f32 %v1345, %v1834
        %v1888 = vmul.f32 %v1346, %v1838
        %v1889 = vmul.f32 %v1347, %v1842
        %v1890 = vmul.f32 %v1348, %v1846
        %v1891 = vmul.f32 %v1349, %v1834
        %v1892 = vmul.f32 %v1350, %v1838
        %v1893 = vmul.f32 %v1351, %v1842
        %v1894 = vmul.f32 %v1352, %v1846
        %v1895 = vmul.f32 %v1353, %v1834
        %v1896 = vmul.f32 %v1354, %v1838
        %v1897 = vmul.f32 %v1355, %v1842
        %v1898 = vmul.f32 %v1356, %v1846
        %v1899 = vmul.f32 %v1357, %v1834
        %v1900 = vmul.f32 %v1358, %v1838
        %v1901 = vmul.f32 %v1359, %v1842
        %v1902 = vmul.f32 %v1360, %v1846
        %v1903 = vmul.f32 %v1361, %v1834
        %v1904 = vmul.f32 %v1362, %v1838
        %v1905 = vmul.f32 %v1363, %v1842
        %v1906 = vmul.f32 %v1364, %v1846
        %v1907 = vmul.f32 %v1365, %v1834
        %v1908 = vmul.f32 %v1366, %v1838
        %v1909 = vmul.f32 %v1367, %v1842
        %v1910 = vmul.f32 %v1368, %v1846
        %v1911 = vmul.f32 %v1369, %v1834
        %v1912 = vmul.f32 %v1370, %v1838
        %v1913 = vmul.f32 %v1371, %v1842
        %v1914 = vmul.f32 %v1372, %v1846
        %v1915 = vadd.f32 %v1851, %v1852
        %v1916 = vadd.f32 %v1915, %v1853
        %v1917 = vadd.f32 %v1916, %v1854
        %1918 = vadd.xlane.f32.xlu0 %v1917
        %v1919 = vpop.xlane.xlu0 %1918
        %v1920 = vadd.f32 %v1855, %v1856
        %v1921 = vadd.f32 %v1920, %v1857
        %v1922 = vadd.f32 %v1921, %v1858
        %1923 = vadd.xlane.f32.xlu0 %v1922
        %v1924 = vpop.xlane.xlu0 %1923
        %v1925 = vadd.f32 %v1859, %v1860
        %v1926 = vadd.f32 %v1925, %v1861
        %v1927 = vadd.f32 %v1926, %v1862
        %1928 = vadd.xlane.f32.xlu0 %v1927
        %v1929 = vpop.xlane.xlu0 %1928
        %v1930 = vadd.f32 %v1863, %v1864
        %v1931 = vadd.f32 %v1930, %v1865
        %v1932 = vadd.f32 %v1931, %v1866
        %1933 = vadd.xlane.f32.xlu0 %v1932
        %v1934 = vpop.xlane.xlu0 %1933
        %v1935 = vadd.f32 %v1867, %v1868
        %v1936 = vadd.f32 %v1935, %v1869
        %v1937 = vadd.f32 %v1936, %v1870
        %1938 = vadd.xlane.f32.xlu0 %v1937
        %v1939 = vpop.xlane.xlu0 %1938
        %v1940 = vadd.f32 %v1871, %v1872
        %v1941 = vadd.f32 %v1940, %v1873
        %v1942 = vadd.f32 %v1941, %v1874
        %1943 = vadd.xlane.f32.xlu0 %v1942
        %v1944 = vpop.xlane.xlu0 %1943
        %v1945 = vadd.f32 %v1875, %v1876
        %v1946 = vadd.f32 %v1945, %v1877
        %v1947 = vadd.f32 %v1946, %v1878
        %1948 = vadd.xlane.f32.xlu0 %v1947
        %v1949 = vpop.xlane.xlu0 %1948
        %v1950 = vadd.f32 %v1879, %v1880
        %v1951 = vadd.f32 %v1950, %v1881
        %v1952 = vadd.f32 %v1951, %v1882
        %1953 = vadd.xlane.f32.xlu0 %v1952
        %v1954 = vpop.xlane.xlu0 %1953
        %v1955 = vadd.f32 %v1883, %v1884
        %v1956 = vadd.f32 %v1955, %v1885
        %v1957 = vadd.f32 %v1956, %v1886
        %1958 = vadd.xlane.f32.xlu0 %v1957
        %v1959 = vpop.xlane.xlu0 %1958
        %v1960 = vadd.f32 %v1887, %v1888
        %v1961 = vadd.f32 %v1960, %v1889
        %v1962 = vadd.f32 %v1961, %v1890
        %1963 = vadd.xlane.f32.xlu0 %v1962
        %v1964 = vpop.xlane.xlu0 %1963
        %v1965 = vadd.f32 %v1891, %v1892
        %v1966 = vadd.f32 %v1965, %v1893
        %v1967 = vadd.f32 %v1966, %v1894
        %1968 = vadd.xlane.f32.xlu0 %v1967
        %v1969 = vpop.xlane.xlu0 %1968
        %v1970 = vadd.f32 %v1895, %v1896
        %v1971 = vadd.f32 %v1970, %v1897
        %v1972 = vadd.f32 %v1971, %v1898
        %1973 = vadd.xlane.f32.xlu0 %v1972
        %v1974 = vpop.xlane.xlu0 %1973
        %v1975 = vadd.f32 %v1899, %v1900
        %v1976 = vadd.f32 %v1975, %v1901
        %v1977 = vadd.f32 %v1976, %v1902
        %1978 = vadd.xlane.f32.xlu0 %v1977
        %v1979 = vpop.xlane.xlu0 %1978
        %v1980 = vadd.f32 %v1903, %v1904
        %v1981 = vadd.f32 %v1980, %v1905
        %v1982 = vadd.f32 %v1981, %v1906
        %1983 = vadd.xlane.f32.xlu0 %v1982
        %v1984 = vpop.xlane.xlu0 %1983
        %v1985 = vadd.f32 %v1907, %v1908
        %v1986 = vadd.f32 %v1985, %v1909
        %v1987 = vadd.f32 %v1986, %v1910
        %1988 = vadd.xlane.f32.xlu0 %v1987
        %v1989 = vpop.xlane.xlu0 %1988
        %v1990 = vadd.f32 %v1911, %v1912
        %v1991 = vadd.f32 %v1990, %v1913
        %v1992 = vadd.f32 %v1991, %v1914
        %1993 = vadd.xlane.f32.xlu0 %v1992
        %v1994 = vpop.xlane.xlu0 %1993
        %s1995 = sld [smem:[#allocation5 + $0x1]]
        %v1996 = vstv %s1995
        %v1997 = vadd.f32 %v1919, %v1996
        %v1998 = vadd.f32 %v1924, %v1996
        %v1999 = vadd.f32 %v1929, %v1996
        %v2000 = vadd.f32 %v1934, %v1996
        %v2001 = vadd.f32 %v1939, %v1996
        %v2002 = vadd.f32 %v1944, %v1996
        %v2003 = vadd.f32 %v1949, %v1996
        %v2004 = vadd.f32 %v1954, %v1996
        %v2005 = vadd.f32 %v1959, %v1996
        %v2006 = vadd.f32 %v1964, %v1996
        %v2007 = vadd.f32 %v1969, %v1996
        %v2008 = vadd.f32 %v1974, %v1996
        %v2009 = vadd.f32 %v1979, %v1996
        %v2010 = vadd.f32 %v1984, %v1996
        %v2011 = vadd.f32 %v1989, %v1996
        %v2012 = vadd.f32 %v1994, %v1996
        %v2013 = vsel %vm1408, %v1997, -1e+30
        %v2014 = vsel %vm1409, %v1998, -1e+30
        %v2015 = vsel %vm1410, %v1999, -1e+30
        %v2016 = vsel %vm1411, %v2000, -1e+30
        %v2017 = vsel %vm1412, %v2001, -1e+30
        %v2018 = vsel %vm1413, %v2002, -1e+30
        %v2019 = vsel %vm1414, %v2003, -1e+30
        %v2020 = vsel %vm1415, %v2004, -1e+30
        %v2021 = vsel %vm1416, %v2005, -1e+30
        %v2022 = vsel %vm1417, %v2006, -1e+30
        %v2023 = vsel %vm1418, %v2007, -1e+30
        %v2024 = vsel %vm1419, %v2008, -1e+30
        %v2025 = vsel %vm1420, %v2009, -1e+30
        %v2026 = vsel %vm1421, %v2010, -1e+30
        %v2027 = vsel %vm1422, %v2011, -1e+30
        %v2028 = vsel %vm1423, %v2012, -1e+30
        %v2029 = vld [vmem:[#allocation2 + $0x1] sm:$0x1]
        %v2030 = vmax.f32 %v2013, %v2017
        %v2031 = vmax.f32 %v2014, %v2018
        %v2032 = vmax.f32 %v2015, %v2019
        %v2033 = vmax.f32 %v2016, %v2020
        %v2034 = vmax.f32 %v2030, %v2021
        %v2035 = vmax.f32 %v2031, %v2022
        %v2036 = vmax.f32 %v2032, %v2023
        %v2037 = vmax.f32 %v2033, %v2024
        %v2038 = vmax.f32 %v2034, %v2025
        %v2039 = vmax.f32 %v2035, %v2026
        %v2040 = vmax.f32 %v2036, %v2027
        %v2041 = vmax.f32 %v2037, %v2028
        %v2042 = vmax.f32 %v2038, %v2039
        %v2043 = vmax.f32 %v2040, %v2041
        %v2044 = vmax.f32 %v2042, %v2043
        %v2045 = vrot.slane %v2044, 4
        %v2046 = vmax.f32 %v2044, %v2045
        %v2047 = vrot.slane %v2046, 2
        %v2048 = vmax.f32 %v2046, %v2047
        %v2049 = vrot.slane %v2048, 1
        %v2050 = vmax.f32 %v2048, %v2049
        %v2051 = vmax.f32 %v2029, %v2050
        %v2052 = vsub.f32 %v2029, %v2051
        %v2053 = vmul.f32 %v2052, 1.442695
        %v2054 = vpow.pop %v2053
        %v2055 = vlaneseq
        %v2056 = vshrl.u32 %v2055, 7
        %v2057 = vsub.s32 0, %v2056
        %v2058 = vrot.slane %v2051, %v2057
        %v2059 = vsub.f32 %v2013, %v2058
        %v2060 = vsub.f32 %v2014, %v2058
        %v2061 = vsub.f32 %v2015, %v2058
        %v2062 = vsub.f32 %v2016, %v2058
        %v2063 = vsub.f32 %v2017, %v2058
        %v2064 = vsub.f32 %v2018, %v2058
        %v2065 = vsub.f32 %v2019, %v2058
        %v2066 = vsub.f32 %v2020, %v2058
        %v2067 = vsub.f32 %v2021, %v2058
        %v2068 = vsub.f32 %v2022, %v2058
        %v2069 = vsub.f32 %v2023, %v2058
        %v2070 = vsub.f32 %v2024, %v2058
        %v2071 = vsub.f32 %v2025, %v2058
        %v2072 = vsub.f32 %v2026, %v2058
        %v2073 = vsub.f32 %v2027, %v2058
        %v2074 = vsub.f32 %v2028, %v2058
        %v2075 = vmul.f32 %v2059, 1.442695
        %v2076 = vpow.pop %v2075
        %v2077 = vmul.f32 %v2060, 1.442695
        %v2078 = vpow.pop %v2077
        %v2079 = vmul.f32 %v2061, 1.442695
        %v2080 = vpow.pop %v2079
        %v2081 = vmul.f32 %v2062, 1.442695
        %v2082 = vpow.pop %v2081
        %v2083 = vmul.f32 %v2063, 1.442695
        %v2084 = vpow.pop %v2083
        %v2085 = vmul.f32 %v2064, 1.442695
        %v2086 = vpow.pop %v2085
        %v2087 = vmul.f32 %v2065, 1.442695
        %v2088 = vpow.pop %v2087
        %v2089 = vmul.f32 %v2066, 1.442695
        %v2090 = vpow.pop %v2089
        %v2091 = vmul.f32 %v2067, 1.442695
        %v2092 = vpow.pop %v2091
        %v2093 = vmul.f32 %v2068, 1.442695
        %v2094 = vpow.pop %v2093
        %v2095 = vmul.f32 %v2069, 1.442695
        %v2096 = vpow.pop %v2095
        %v2097 = vmul.f32 %v2070, 1.442695
        %v2098 = vpow.pop %v2097
        %v2099 = vmul.f32 %v2071, 1.442695
        %v2100 = vpow.pop %v2099
        %v2101 = vmul.f32 %v2072, 1.442695
        %v2102 = vpow.pop %v2101
        %v2103 = vmul.f32 %v2073, 1.442695
        %v2104 = vpow.pop %v2103
        %v2105 = vmul.f32 %v2074, 1.442695
        %v2106 = vpow.pop %v2105
        %v2107 = vld [vmem:[#allocation3 + $0x1] sm:$0x1]
        %v2108 = vmul.f32 %v2054, %v2107
        %v2109 = vsel %vm1704, %v2076, 0.0
        %v2110 = vsel %vm1704, %v2078, 0.0
        %v2111 = vadd.f32 %v2109, %v2110
        %v2112 = vsel %vm1704, %v2080, 0.0
        %v2113 = vadd.f32 %v2111, %v2112
        %v2114 = vsel %vm1704, %v2082, 0.0
        %v2115 = vadd.f32 %v2113, %v2114
        %v2116 = vsel %vm1704, %v2084, 0.0
        %v2117 = vadd.f32 %v2115, %v2116
        %v2118 = vsel %vm1704, %v2086, 0.0
        %v2119 = vadd.f32 %v2117, %v2118
        %v2120 = vsel %vm1704, %v2088, 0.0
        %v2121 = vadd.f32 %v2119, %v2120
        %v2122 = vsel %vm1704, %v2090, 0.0
        %v2123 = vadd.f32 %v2121, %v2122
        %v2124 = vsel %vm1704, %v2092, 0.0
        %v2125 = vadd.f32 %v2123, %v2124
        %v2126 = vsel %vm1704, %v2094, 0.0
        %v2127 = vadd.f32 %v2125, %v2126
        %v2128 = vsel %vm1704, %v2096, 0.0
        %v2129 = vadd.f32 %v2127, %v2128
        %v2130 = vsel %vm1704, %v2098, 0.0
        %v2131 = vadd.f32 %v2129, %v2130
        %v2132 = vsel %vm1704, %v2100, 0.0
        %v2133 = vadd.f32 %v2131, %v2132
        %v2134 = vsel %vm1704, %v2102, 0.0
        %v2135 = vadd.f32 %v2133, %v2134
        %v2136 = vsel %vm1704, %v2104, 0.0
        %v2137 = vadd.f32 %v2135, %v2136
        %v2138 = vsel %vm1704, %v2106, 0.0
        %v2139 = vadd.f32 %v2137, %v2138
        %v2140 = vrot.slane %v2139, 4
        %v2141 = vadd.f32 %v2139, %v2140
        %v2142 = vrot.slane %v2141, 2
        %v2143 = vadd.f32 %v2141, %v2142
        %v2144 = vrot.slane %v2143, 1
        %v2145 = vadd.f32 %v2143, %v2144
        %v2146 = vadd.f32 %v2108, %v2145
        %2147 = vst.msk [vmem:[#allocation3 + $0x1] sm:$0x1] %vm1743, %v2146
        %v2148 = vpack.c.bf16 %v2078, %v2076
        %v2149 = vpack.c.bf16 %v2082, %v2080
        %v2150 = vpack.c.bf16 %v2086, %v2084
        %v2151 = vpack.c.bf16 %v2090, %v2088
        %v2152 = vpack.c.bf16 %v2094, %v2092
        %v2153 = vpack.c.bf16 %v2098, %v2096
        %v2154 = vpack.c.bf16 %v2102, %v2100
        %v2155 = vpack.c.bf16 %v2106, %v2104
        %2156 = vxpose.xlu0.c.b16.start [1/8] %v2148, 128
        %2157 = vxpose.xlu0.c.b16.cont [2/8] %v2149, 128
        %2158 = vxpose.xlu0.c.b16.cont [3/8] %v2150, 128
        %2159 = vxpose.xlu0.c.b16.cont [4/8] %v2151, 128
        %2160 = vxpose.xlu0.c.b16.cont [5/8] %v2152, 128
        %2161 = vxpose.xlu0.c.b16.cont [6/8] %v2153, 128
        %2162 = vxpose.xlu0.c.b16.cont [7/8] %v2154, 128
        %2163 = vxpose.xlu0.c.b16.end [8/8] %v2155, 128
        %v2164 = vpop.trf.xlu0
        %v2165 = vpop.trf.xlu0
        %v2166 = vpop.trf.xlu0
        %v2167 = vpop.trf.xlu0
        %v2168 = vpop.trf.xlu0
        %v2169 = vpop.trf.xlu0
        %v2170 = vpop.trf.xlu0
        %v2171 = vpop.trf.xlu0
        %2172 = vmatprep.subr.bf16.mxu0 0
        %2173 = vmatpush1.bf16.msra.mxu0 %v424
        %2174 = vmatprep.subr.bf16.mxu0 0
        %2175 = vmatpush1.bf16.msra.mxu0 %v425
        %2176 = vmatprep.subr.bf16.mxu0 0
        %2177 = vmatpush1.bf16.msra.mxu0 %v426
        %2178 = vmatprep.subr.bf16.mxu0 0
        %2179 = vmatpush1.bf16.msra.mxu0 %v427
        %2180 = vmatprep.subr.bf16.mxu0 0
        %2181 = vmatpush1.bf16.msra.mxu0 %v428
        %2182 = vmatprep.subr.bf16.mxu0 0
        %2183 = vmatpush1.bf16.msra.mxu0 %v429
        %2184 = vmatprep.subr.bf16.mxu0 0
        %2185 = vmatpush1.bf16.msra.mxu0 %v430
        %2186 = vmatprep.subr.bf16.mxu0 0
        %2187 = vmatpush1.bf16.msra.mxu0 %v431
        %2188 = vmatprep.subr.bf16.mxu0 0
        %2189 = vmatpush1.bf16.msra.mxu0 0
        %2190 = vmatprep.subr.bf16.mxu0 0
        %2191 = vmatpush1.bf16.msra.mxu0 0
        %2192 = vmatprep.subr.bf16.mxu0 0
        %2193 = vmatpush1.bf16.msra.mxu0 0
        %2194 = vmatprep.subr.bf16.mxu0 0
        %2195 = vmatpush1.bf16.msra.mxu0 0
        %2196 = vmatprep.subr.bf16.mxu0 0
        %2197 = vmatpush1.bf16.msra.mxu0 0
        %2198 = vmatprep.subr.bf16.mxu0 0
        %2199 = vmatpush1.bf16.msra.mxu0 0
        %2200 = vmatprep.subr.bf16.mxu0 0
        %2201 = vmatpush1.bf16.msra.mxu0 0
        %2202 = vmatprep.subr.bf16.mxu0 0
        %2203 = vmatpush1.bf16.msra.mxu0 0
        %2204 = vmatprep.mubr.bf16.mxu0 0
        %2205 = vmatmul.mubr.bf16.gmra.mrb[0].mxu0 %v2164
        %v2206 = vpop.f32.mrb[0].mxu0
        %v2207 = vadd.f32 0.0, %v2206
        %v2208 = vpop.f32.mrb[0].mxu0
        %v2209 = vpop.f32.mrb[0].mxu0
        %v2210 = vpop.f32.mrb[0].mxu0
        %2211 = vdwg.mxu0
        %v2212 = vld [vmem:[#allocation4 + $0x1] sm:$0x1]
        %2214 = vset.pattern.permute.xlu0 0
        %2215 = vperm.xlu0 %2214, %v2054
        %v2216 = vpop.permute.xlu0 %2215
        %v2218 = vmul.f32 %v2216, %v2212
        %v2219 = vadd.f32 %v2218, %v2207
        %2220 = vst.msk [vmem:[#allocation4 + $0x1] sm:$0x1] %vm1825, %v2219
        %2221 = vst.msk [vmem:[#allocation2 + $0x1] sm:$0x1] %vm1743, %v2051
        %p2222 = scmp.eq.s32.totalorder %s21, 2
        // Predicated region
        $region61: #{gated_attention_forward.1} parent=51 // pred_check
          %p2223 = pneg %p2222
        $region62: #{gated_attention_forward.1} parent=51 // pred_check_branch
          %2225 = sbr.rel (%p2223) target = $region64
        $region63: #{gated_attention_forward.1} parent=51 // pred_region
          %v2226 = vld [vmem:[#allocation3] sm:$0x3]
          %v2227 = vrcp.pop %v2226
          %v2228 = vld [vmem:[#allocation4] sm:$0x3]
          %2230 = vset.pattern.permute.xlu0 0
          %2231 = vperm.xlu0 %2230, %v2227
          %v2232 = vpop.permute.xlu0 %2231
          %v2234 = vmul.f32 %v2228, %v2232
          %v2235 = vld [vmem:[%s4] sm:$0x3]
          %v2236 = vmul.f32 %v2234, %v2235
          %vm2237 = vcmask 254976
          %v2238 = vsel %vm2237, %v2236, 0.0
          %2239 = vadd.xlane.f32.xlu0 %v2238
          %v2240 = vpop.xlane.xlu0 %2239
          %v2241 = vrot.slane %v2240, 4
          %v2242 = vadd.f32 %v2240, %v2241
          %v2243 = vrot.slane %v2242, 2
          %v2244 = vadd.f32 %v2242, %v2243
          %v2245 = vrot.slane %v2244, 1
          %v2246 = vadd.f32 %v2244, %v2245
          %s2247 = vtos %v2246
          %s2248 = sld [smem:[#allocation5 + $0x2]]
          %s2249 = sadd.f32 %s2247, %s2248
          %s2250 = sld [smem:[#allocation5 + $0x3]]
          %s2251 = smul.f32 %s2249, %s2250
          %v2252 = vld [vmem:[%s5] sm:$0x1]
          %v2253 = vstv %s2251
          %v2254 = vsub.f32 %v2252, %v2253
          %v2255 = vmul.f32 %v2254, 0.5
          %v2256 = vtanh.pop %v2255
          %v2257 = vadd.f32 %v2256, 1.0
          %v2258 = vmul.f32 %v2257, 0.5
          %v2259 = vld [vmem:[%s6] sm:$0x1]
          %v2260 = vsub.f32 %v2259, %v2253
          %v2261 = vmul.f32 %v2260, 0.5
          %v2262 = vtanh.pop %v2261
          %v2263 = vadd.f32 %v2262, 1.0
          %v2264 = vmul.f32 %v2263, 0.5
          %v2265 = vsub.f32 %v2258, %v2264
          %vm2266 = vcmask 24576
          %2267 = vst.msk [vmem:[#allocation8] sm:$0x1] %vm2266, %v2265
        $region64: #{gated_attention_forward.1} parent=51 // pred_fallthru
          _
        // Predicated region
        $region65: #{gated_attention_forward.1} parent=51 // pred_check
          %p2268 = pneg %p207
        $region66: #{gated_attention_forward.1} parent=51 // pred_check_branch
          %2270 = sbr.rel (%p2268) target = $region68
        $region67: #{gated_attention_forward.1} parent=51 // pred_region
          %s2272 = ssub.s32 16, 16
          %2273 = vsyncadd [#allocation6], %s2272
          %s2275 = sshll.u32 [#allocation8], 4
          %s2276 = int_to_ptr.vmem [resolvable:$true] %s2275
          %2278 = dma.vmem_to_hbm [thread:$0]  %s2276, 16, %s8, [#allocation6]
        $region68: #{gated_attention_forward.1} parent=51 // pred_fallthru
          _
        // Predicated region
        $region69: #{gated_attention_forward.1} parent=51 // pred_check
          %p2279 = pneg %p207
        $region70: #{gated_attention_forward.1} parent=51 // pred_check_branch
          %2281 = sbr.rel (%p2279) target = $region72
        $region71: #{gated_attention_forward.1} parent=51 // pred_region
          %2282 = dma.done [#allocation6], 16
        $region72: #{gated_attention_forward.1} parent=51 // pred_fallthru
          _
      $region52: #{gated_attention_forward.1} parent=5 // pred_fallthru
        _
      %p2283 = scmp.le.s32.totalorder 2, %s16
      // Predicated region
      $region73: #{gated_attention_forward.1} parent=5 // pred_check
        %p2284 = pneg %p2283
      $region74: #{gated_attention_forward.1} parent=5 // pred_check_branch
        %2286 = sbr.rel (%p2284) target = $region76
      $region75: #{gated_attention_forward.1} parent=5 // pred_region
        %s2287 = ssub.s32 %s16, 2
      $region76: #{gated_attention_forward.1} parent=5 // pred_fallthru
        _
    $region6: #{gated_attention_forward.1} parent=1 // loop_footer
      %s20 = sadd.s32 1, %s16
    $region7: #{gated_attention_forward.1} parent=1 // loop_footer_branch
      %15 = sbr.rel target = $region3
    $region8: #{gated_attention_forward.1} parent=1 // loop_exit
      _
    %2288 = vsyncpa [#allocation6], 1
    %s2289 = scalar_lea.sflag [#allocation6], 1
    %2290 = vsyncpa %s2289, 1
    %2291 = vsyncpa [#allocation7], 1
    %s2292 = scalar_lea.sflag [#allocation7], 1
    %2293 = vsyncpa %s2292, 1

// kernel: gated_attention_forward.1
$region0: #{gated_attention_forward.1}
  #allocation0 [shape = 'u32[]', space=smem, size = 0x4, offset = 0x4, fixed_abs, tag = 'smem constant byte address 0x4 - core index']
  #allocation1 [shape = 'u32[144,128]{1,0:T(1,128)}', space=vmem, size = 0x12000, scoped, tag = 'internal scratch']
  #allocation2 [shape = 'f32[2,1]{1,0:T(2,128)}', space=vmem, size = 0x400, scoped, tag = 'scratch operand']
  #allocation3 [shape = 'f32[2,1]{1,0:T(2,128)}', space=vmem, size = 0x400, scoped, tag = 'scratch operand']
  #allocation4 [shape = 'f32[2,32]{1,0:T(2,128)}', space=vmem, size = 0x400, scoped, tag = 'scratch operand']
  %s0 = inlined_call_operand.vmem [shape: bf16[384,32], index: 0, kind: input, shape index: {}]
  %s1 = inlined_call_operand.vmem [shape: bf16[32,1024], index: 1, kind: input, shape index: {}]
  %s2 = inlined_call_operand.vmem [shape: f32[1,1024], index: 2, kind: input, shape index: {}]
  %s3 = inlined_call_operand.vmem [shape: f32[2,512], index: 3, kind: input, shape index: {}]
  %s4 = inlined_call_operand.vmem [shape: f32[2,32], index: 4, kind: input, shape index: {}]
  %s5 = inlined_call_operand.vmem [shape: f32[1,4], index: 5, kind: input, shape index: {}]
  %s6 = inlined_call_operand.vmem [shape: f32[1,4], index: 6, kind: input, shape index: {}]
  %s7 = inlined_call_operand.vmem [shape: f32[4], index: 7, kind: input, shape index: {}]
  %s8 = inlined_call_operand.hbm [shape: f32[1,4], index: 8, kind: output, shape index: {}]
  %s9 = sld [smem:[#allocation0]]
  $region77: #{gated_attention_forward.1} parent=0
    _
  %s11 = ssub.s32 1, %s9
  %s12 = scalar_select 0, %s11, %s9
  $region1: #{gated_attention_forward.1} parent=0
    #allocation5 [shape = 'u8[512]{0}', space=smem, size = 0x200, scoped, tag = 'input window, operand 7, single buffered']
    #allocation6 [shape = 's32[2]{0}', space=sflag, size = 0x8, scoped, tag = 'scoped memory for gated_attention_forward.1']
    #allocation7 [shape = 's32[2]{0}', space=sflag, size = 0x8, scoped, tag = 'scoped memory for gated_attention_forward.1']
    #allocation8 [shape = 'u8[512]{0}', space=vmem, size = 0x400, scoped, tag = 'output window, operand 0, single buffered']
    %13 = vsyncpa [#allocation7], 0
    %14 = vsyncpa [#allocation6], 0
    loop: start=0, step=1, limit=5
    $region2: #{gated_attention_forward.1} parent=1 // loop_pre_header
      _
    $region3: #{gated_attention_forward.1} parent=1 // loop_header
      %s16 = sphi 0, %s20
      %p17 = scmp.ge.s32.totalorder %s16, 5
      %s26 = sphi 0, %s28
      %s29 = sphi 0, %s26
      %s30 = sphi 0, %s29
      %s46 = sphi 0, %s30
      %s50 = sphi 0, %s50
      %s52 = sphi 0, %s50
      %s53 = sphi 0, %s52
      %s67 = sphi 0, %s53
      %s71 = sphi 0, %s71
      %s73 = sphi 0, %s71
      %s74 = sphi 0, %s73
      %s88 = sphi 0, %s74
      %s92 = sphi 0, %s92
      %s94 = sphi 0, %s92
      %s95 = sphi 0, %s94
      %s109 = sphi 0, %s95
      %s113 = sphi 0, %s113
      %s115 = sphi 0, %s113
      %s116 = sphi 0, %s115
      %s130 = sphi 0, %s116
      %s134 = sphi 0, %s134
      %s136 = sphi 0, %s134
      %s137 = sphi 0, %s136
      %s151 = sphi 0, %s137
      %s155 = sphi 0, %s155
      %s157 = sphi 0, %s155
      %s158 = sphi 0, %s157
      %s172 = sphi 0, %s158
      %s176 = sphi 0, %s176
      %s178 = sphi 0, %s176
      %s179 = sphi 0, %s178
      %s193 = sphi 0, %s179
      %s197 = sphi 0, %s197
      %s199 = sphi 0, %s197
      %s200 = sphi 0, %s199
      %s214 = sphi 0, %s200
    $region4: #{gated_attention_forward.1} parent=1 // loop_header_branch
      %19 = sbr.rel (%p17) target = $region8
    $region5: #{gated_attention_forward.1} parent=1 // loop_body
      %s21 = ssub.s32 %s16, 1
      %s22 = ssub.s32 %s16, 2
      %s23 = sadd.s32 %s16, 1
      %s24 = ssub.s32 %s16, %s23
      %p25 = scmp.eq.s32.totalorder %s24, 0
      %s27 = sadd.s32 %s26, 1
      %s28 = scalar_select %p25, %s26, %s27
      %p31 = pneg %p25
      %p32 = scmp.eq.s32.totalorder %s16, 2
      %p33 = por %p31, %p32
      %p34 = scmp.ne.s32.totalorder %s26, %s29
      %p35 = scmp.eq.s32.totalorder %s16, 0
      %p36 = por %p34, %p35
      %p37 = scmp.ne.s32.totalorder %s26, %s29
      %p38 = scmp.eq.s32.totalorder %s21, 2
      %p39 = por %p37, %p38
      %p40 = scmp.ne.s32.totalorder %s29, %s30
      %p41 = scmp.eq.s32.totalorder %s21, 0
      %p42 = por %p40, %p41
      %p43 = scmp.ne.s32.totalorder %s29, %s30
      %p44 = scmp.eq.s32.totalorder %s22, 2
      %p45 = por %p43, %p44
      %p47 = scmp.ne.s32.totalorder %s30, %s46
      %p48 = scmp.eq.s32.totalorder %s22, 0
      %p49 = por %p47, %p48
      %s51 = sadd.s32 %s50, 1
      %p54 = scmp.eq.s32.totalorder %s16, 2
      %p55 = scmp.ne.s32.totalorder %s50, %s52
      %p56 = scmp.eq.s32.totalorder %s16, 0
      %p57 = por %p55, %p56
      %p58 = scmp.ne.s32.totalorder %s50, %s52
      %p59 = scmp.eq.s32.totalorder %s21, 2
      %p60 = por %p58, %p59
      %p61 = scmp.ne.s32.totalorder %s52, %s53
      %p62 = scmp.eq.s32.totalorder %s21, 0
      %p63 = por %p61, %p62
      %p64 = scmp.ne.s32.totalorder %s52, %s53
      %p65 = scmp.eq.s32.totalorder %s22, 2
      %p66 = por %p64, %p65
      %p68 = scmp.ne.s32.totalorder %s53, %s67
      %p69 = scmp.eq.s32.totalorder %s22, 0
      %p70 = por %p68, %p69
      %s72 = sadd.s32 %s71, 1
      %p75 = scmp.eq.s32.totalorder %s16, 2
      %p76 = scmp.ne.s32.totalorder %s71, %s73
      %p77 = scmp.eq.s32.totalorder %s16, 0
      %p78 = por %p76, %p77
      %p79 = scmp.ne.s32.totalorder %s71, %s73
      %p80 = scmp.eq.s32.totalorder %s21, 2
      %p81 = por %p79, %p80
      %p82 = scmp.ne.s32.totalorder %s73, %s74
      %p83 = scmp.eq.s32.totalorder %s21, 0
      %p84 = por %p82, %p83
      %p85 = scmp.ne.s32.totalorder %s73, %s74
      %p86 = scmp.eq.s32.totalorder %s22, 2
      %p87 = por %p85, %p86
      %p89 = scmp.ne.s32.totalorder %s74, %s88
      %p90 = scmp.eq.s32.totalorder %s22, 0
      %p91 = por %p89, %p90
      %s93 = sadd.s32 %s92, 1
      %p96 = scmp.eq.s32.totalorder %s16, 2
      %p97 = scmp.ne.s32.totalorder %s92, %s94
      %p98 = scmp.eq.s32.totalorder %s16, 0
      %p99 = por %p97, %p98
      %p100 = scmp.ne.s32.totalorder %s92, %s94
      %p101 = scmp.eq.s32.totalorder %s21, 2
      %p102 = por %p100, %p101
      %p103 = scmp.ne.s32.totalorder %s94, %s95
      %p104 = scmp.eq.s32.totalorder %s21, 0
      %p105 = por %p103, %p104
      %p106 = scmp.ne.s32.totalorder %s94, %s95
      %p107 = scmp.eq.s32.totalorder %s22, 2
      %p108 = por %p106, %p107
      %p110 = scmp.ne.s32.totalorder %s95, %s109
      %p111 = scmp.eq.s32.totalorder %s22, 0
      %p112 = por %p110, %p111
      %s114 = sadd.s32 %s113, 1
      %p117 = scmp.eq.s32.totalorder %s16, 2
      %p118 = scmp.ne.s32.totalorder %s113, %s115
      %p119 = scmp.eq.s32.totalorder %s16, 0
      %p120 = por %p118, %p119
      %p121 = scmp.ne.s32.totalorder %s113, %s115
      %p122 = scmp.eq.s32.totalorder %s21, 2
      %p123 = por %p121, %p122
      %p124 = scmp.ne.s32.totalorder %s115, %s116
      %p125 = scmp.eq.s32.totalorder %s21, 0
      %p126 = por %p124, %p125
      %p127 = scmp.ne.s32.totalorder %s115, %s116
      %p128 = scmp.eq.s32.totalorder %s22, 2
      %p129 = por %p127, %p128
      %p131 = scmp.ne.s32.totalorder %s116, %s130
      %p132 = scmp.eq.s32.totalorder %s22, 0
      %p133 = por %p131, %p132
      %s135 = sadd.s32 %s134, 1
      %p138 = scmp.eq.s32.totalorder %s16, 2
      %p139 = scmp.ne.s32.totalorder %s134, %s136
      %p140 = scmp.eq.s32.totalorder %s16, 0
      %p141 = por %p139, %p140
      %p142 = scmp.ne.s32.totalorder %s134, %s136
      %p143 = scmp.eq.s32.totalorder %s21, 2
      %p144 = por %p142, %p143
      %p145 = scmp.ne.s32.totalorder %s136, %s137
      %p146 = scmp.eq.s32.totalorder %s21, 0
      %p147 = por %p145, %p146
      %p148 = scmp.ne.s32.totalorder %s136, %s137
      %p149 = scmp.eq.s32.totalorder %s22, 2
      %p150 = por %p148, %p149
      %p152 = scmp.ne.s32.totalorder %s137, %s151
      %p153 = scmp.eq.s32.totalorder %s22, 0
      %p154 = por %p152, %p153
      %s156 = sadd.s32 %s155, 1
      %p159 = scmp.eq.s32.totalorder %s16, 2
      %p160 = scmp.ne.s32.totalorder %s155, %s157
      %p161 = scmp.eq.s32.totalorder %s16, 0
      %p162 = por %p160, %p161
      %p163 = scmp.ne.s32.totalorder %s155, %s157
      %p164 = scmp.eq.s32.totalorder %s21, 2
      %p165 = por %p163, %p164
      %p166 = scmp.ne.s32.totalorder %s157, %s158
      %p167 = scmp.eq.s32.totalorder %s21, 0
      %p168 = por %p166, %p167
      %p169 = scmp.ne.s32.totalorder %s157, %s158
      %p170 = scmp.eq.s32.totalorder %s22, 2
      %p171 = por %p169, %p170
      %p173 = scmp.ne.s32.totalorder %s158, %s172
      %p174 = scmp.eq.s32.totalorder %s22, 0
      %p175 = por %p173, %p174
      %s177 = sadd.s32 %s176, 1
      %p180 = scmp.eq.s32.totalorder %s16, 2
      %p181 = scmp.ne.s32.totalorder %s176, %s178
      %p182 = scmp.eq.s32.totalorder %s16, 0
      %p183 = por %p181, %p182
      %p184 = scmp.ne.s32.totalorder %s176, %s178
      %p185 = scmp.eq.s32.totalorder %s21, 2
      %p186 = por %p184, %p185
      %p187 = scmp.ne.s32.totalorder %s178, %s179
      %p188 = scmp.eq.s32.totalorder %s21, 0
      %p189 = por %p187, %p188
      %p190 = scmp.ne.s32.totalorder %s178, %s179
      %p191 = scmp.eq.s32.totalorder %s22, 2
      %p192 = por %p190, %p191
      %p194 = scmp.ne.s32.totalorder %s179, %s193
      %p195 = scmp.eq.s32.totalorder %s22, 0
      %p196 = por %p194, %p195
      %s198 = sadd.s32 %s197, 1
      %p201 = scmp.eq.s32.totalorder %s16, 2
      %p202 = scmp.ne.s32.totalorder %s197, %s199
      %p203 = scmp.eq.s32.totalorder %s16, 0
      %p204 = por %p202, %p203
      %p205 = scmp.ne.s32.totalorder %s197, %s199
      %p206 = scmp.eq.s32.totalorder %s21, 2
      %p207 = por %p205, %p206
      %p208 = scmp.ne.s32.totalorder %s199, %s200
      %p209 = scmp.eq.s32.totalorder %s21, 0
      %p210 = por %p208, %p209
      %p211 = scmp.ne.s32.totalorder %s199, %s200
      %p212 = scmp.eq.s32.totalorder %s22, 2
      %p213 = por %p211, %p212
      %p215 = scmp.ne.s32.totalorder %s200, %s214
      %p216 = scmp.eq.s32.totalorder %s22, 0
      %p217 = por %p215, %p216
      %p218 = scmp.le.s32.totalorder 1, %s16
      %p219 = scmp.lt.s32.totalorder %s16, 4
      %p220 = pnand %p218, %p219
      %p221 = pneg %p220
      // Predicated region
      $region9: #{gated_attention_forward.1} parent=5 // pred_check
        _
      $region10: #{gated_attention_forward.1} parent=5 // pred_check_branch
        %223 = sbr.rel (%p220) target = $region12
      $region11: #{gated_attention_forward.1} parent=5 // pred_region
        %s224 = ssub.s32 %s16, 1
        // Predicated region
        $region13: #{gated_attention_forward.1} parent=11 // pred_check
          %p225 = pneg %p63
        $region14: #{gated_attention_forward.1} parent=11 // pred_check_branch
          %227 = sbr.rel (%p225) target = $region16
        $region15: #{gated_attention_forward.1} parent=11 // pred_region
          _
        $region16: #{gated_attention_forward.1} parent=11 // pred_fallthru
          _
        // Predicated region
        $region17: #{gated_attention_forward.1} parent=11 // pred_check
          %p228 = pneg %p84
        $region18: #{gated_attention_forward.1} parent=11 // pred_check_branch
          %230 = sbr.rel (%p228) target = $region20
        $region19: #{gated_attention_forward.1} parent=11 // pred_region
          _
        $region20: #{gated_attention_forward.1} parent=11 // pred_fallthru
          _
        // Predicated region
        $region21: #{gated_attention_forward.1} parent=11 // pred_check
          %p231 = pneg %p105
        $region22: #{gated_attention_forward.1} parent=11 // pred_check_branch
          %233 = sbr.rel (%p231) target = $region24
        $region23: #{gated_attention_forward.1} parent=11 // pred_region
          _
        $region24: #{gated_attention_forward.1} parent=11 // pred_fallthru
          _
        // Predicated region
        $region25: #{gated_attention_forward.1} parent=11 // pred_check
          %p234 = pneg %p126
        $region26: #{gated_attention_forward.1} parent=11 // pred_check_branch
          %236 = sbr.rel (%p234) target = $region28
        $region27: #{gated_attention_forward.1} parent=11 // pred_region
          _
        $region28: #{gated_attention_forward.1} parent=11 // pred_fallthru
          _
        // Predicated region
        $region29: #{gated_attention_forward.1} parent=11 // pred_check
          %p237 = pneg %p147
        $region30: #{gated_attention_forward.1} parent=11 // pred_check_branch
          %239 = sbr.rel (%p237) target = $region32
        $region31: #{gated_attention_forward.1} parent=11 // pred_region
          _
        $region32: #{gated_attention_forward.1} parent=11 // pred_fallthru
          _
        // Predicated region
        $region33: #{gated_attention_forward.1} parent=11 // pred_check
          %p240 = pneg %p168
        $region34: #{gated_attention_forward.1} parent=11 // pred_check_branch
          %242 = sbr.rel (%p240) target = $region36
        $region35: #{gated_attention_forward.1} parent=11 // pred_region
          _
        $region36: #{gated_attention_forward.1} parent=11 // pred_fallthru
          _
        // Predicated region
        $region37: #{gated_attention_forward.1} parent=11 // pred_check
          %p243 = pneg %p189
        $region38: #{gated_attention_forward.1} parent=11 // pred_check_branch
          %245 = sbr.rel (%p243) target = $region40
        $region39: #{gated_attention_forward.1} parent=11 // pred_region
          %s247 = ssub.s32 16, 16
          %248 = vsyncadd [#allocation7], %s247
          %s250 = sshll.u32 %s7, 4
          %s251 = int_to_ptr.vmem [resolvable:$true] %s250
          %253 = dma.vmem_to_smem %s251, 16, [#allocation5], [#allocation7]
        $region40: #{gated_attention_forward.1} parent=11 // pred_fallthru
          _
      $region12: #{gated_attention_forward.1} parent=5 // pred_fallthru
        _
      %p254 = scmp.lt.s32.totalorder %s16, 3
      // Predicated region
      $region41: #{gated_attention_forward.1} parent=5 // pred_check
        %p255 = pneg %p254
      $region42: #{gated_attention_forward.1} parent=5 // pred_check_branch
        %257 = sbr.rel (%p255) target = $region44
      $region43: #{gated_attention_forward.1} parent=5 // pred_region
        // Predicated region
        $region45: #{gated_attention_forward.1} parent=43 // pred_check
          %p258 = pneg %p36
        $region46: #{gated_attention_forward.1} parent=43 // pred_check_branch
          %260 = sbr.rel (%p258) target = $region48
        $region47: #{gated_attention_forward.1} parent=43 // pred_region
          %s261 = smul.u32 16, %s16
          %p262 = scmp.lt.s32.totalorder %s261, 47
          %s263 = scalar_select %p262, %s261, 47
          %s264 = smul.addr %s263, 4
          %s265 = scalar_lea.vmem %s0, %s264
          %s266 = smul.u32 16, %s16
        $region48: #{gated_attention_forward.1} parent=43 // pred_fallthru
          _
      $region44: #{gated_attention_forward.1} parent=5 // pred_fallthru
        _
      %p267 = scmp.le.s32.totalorder 1, %s16
      %p268 = scmp.lt.s32.totalorder %s16, 4
      %p269 = pnand %p267, %p268
      %p270 = pneg %p269
      // Predicated region
      $region49: #{gated_attention_forward.1} parent=5 // pred_check
        _
      $region50: #{gated_attention_forward.1} parent=5 // pred_check_branch
        %272 = sbr.rel (%p269) target = $region52
      $region51: #{gated_attention_forward.1} parent=5 // pred_region
        %s273 = ssub.s32 %s16, 1
        // Predicated region
        $region53: #{gated_attention_forward.1} parent=51 // pred_check
          %p274 = pneg %p189
        $region54: #{gated_attention_forward.1} parent=51 // pred_check_branch
          %276 = sbr.rel (%p274) target = $region56
        $region55: #{gated_attention_forward.1} parent=51 // pred_region
          %277 = dma.done [#allocation7], 16
        $region56: #{gated_attention_forward.1} parent=51 // pred_fallthru
          _
        %278 = sfence
        %s279 = smul.u32 16, %s21
        %p280 = scmp.lt.s32.totalorder %s279, 47
        %s281 = scalar_select %p280, %s279, 47
        %s282 = smul.addr %s281, 4
        %s283 = scalar_lea.vmem %s0, %s282
        %p284 = pneg %p42
        %p285 = pneg %p39
        %p286 = pneg %p63
        %p287 = pneg %p60
        %p288 = pneg %p84
        %p289 = pneg %p81
        %p290 = pneg %p105
        %p291 = pneg %p102
        %p292 = pneg %p126
        %p293 = pneg %p123
        %p294 = pneg %p147
        %p295 = pneg %p144
        %p296 = pneg %p168
        %p297 = pneg %p165
        %p298 = pneg %p189
        %p299 = pneg %p186
        %p300 = pneg %p210
        %p301 = pneg %p207
        %s302 = smul.u32 16, %s21
        %p303 = scmp.lt.s32.totalorder %s302, 47
        %s304 = scalar_select %p303, %s302, 47
        %s305 = smul.addr %s304, 4
        %s306 = scalar_lea.vmem %s0, %s305
        %s307 = smul.u32 16, %s21
        %p309 = scmp.eq.s32.totalorder %s21, 0
        // Predicated region
        $region57: #{gated_attention_forward.1} parent=51 // pred_check
          %p310 = pneg %p309
        $region58: #{gated_attention_forward.1} parent=51 // pred_check_branch
          %312 = sbr.rel (%p310) target = $region60
        $region59: #{gated_attention_forward.1} parent=51 // pred_region
          %vm313 = vcmask 1024
          %314 = vst.msk [vmem:[#allocation2] sm:$0x3] %vm313, -1e+30
          %315 = vst.msk [vmem:[#allocation3] sm:$0x3] %vm313, 0.0
          %vm316 = vcmask 254976
          %317 = vst.msk [vmem:[#allocation4] sm:$0x3] %vm316, 0.0
        $region60: #{gated_attention_forward.1} parent=51 // pred_fallthru
          _
        %v318 = vld [vmem:[%s306] sm:$0xf]
        %v319 = vld [vmem:[%s306 + $0x4] sm:$0xf]
        %v320 = vld [vmem:[%s306 + $0x8] sm:$0xf]
        %v321 = vld [vmem:[%s306 + $0xc] sm:$0xf]
        %v322 = vld [vmem:[%s306 + $0x10] sm:$0xf]
        %v323 = vld [vmem:[%s306 + $0x14] sm:$0xf]
        %v324 = vld [vmem:[%s306 + $0x18] sm:$0xf]
        %v325 = vld [vmem:[%s306 + $0x1c] sm:$0xf]
        %v326 = vld [vmem:[%s306 + $0x20] sm:$0xf]
        %v327 = vld [vmem:[%s306 + $0x24] sm:$0xf]
        %v328 = vld [vmem:[%s306 + $0x28] sm:$0xf]
        %v329 = vld [vmem:[%s306 + $0x2c] sm:$0xf]
        %v330 = vld [vmem:[%s306 + $0x30] sm:$0xf]
        %v331 = vld [vmem:[%s306 + $0x34] sm:$0xf]
        %v332 = vld [vmem:[%s306 + $0x38] sm:$0xf]
        %v333 = vld [vmem:[%s306 + $0x3c] sm:$0xf]
        %v334 = vld [vmem:[%s1] sm:$0xff]
        %v335 = vld [vmem:[%s1 + $0x8] sm:$0xff]
        %v336 = vld [vmem:[%s1 + $0x10] sm:$0xff]
        %v337 = vld [vmem:[%s1 + $0x18] sm:$0xff]
        %v338 = vld [vmem:[%s1 + $0x20] sm:$0xff]
        %v339 = vld [vmem:[%s1 + $0x28] sm:$0xff]
        %v340 = vld [vmem:[%s1 + $0x30] sm:$0xff]
        %v341 = vld [vmem:[%s1 + $0x38] sm:$0xff]
        %v342 = vld [vmem:[%s1 + $0x40] sm:$0xff]
        %v343 = vld [vmem:[%s1 + $0x48] sm:$0xff]
        %v344 = vld [vmem:[%s1 + $0x50] sm:$0xff]
        %v345 = vld [vmem:[%s1 + $0x58] sm:$0xff]
        %v346 = vld [vmem:[%s1 + $0x60] sm:$0xff]
        %v347 = vld [vmem:[%s1 + $0x68] sm:$0xff]
        %v348 = vld [vmem:[%s1 + $0x70] sm:$0xff]
        %v349 = vld [vmem:[%s1 + $0x78] sm:$0xff]
        %v350 = vld [vmem:[%s2] sm:$0xff]
        %v352 = vlaneseq
        %v353 = vshrl.u32 %v352, 7
        %v354 = vsub.s32 0, %v353
        %v355 = vrot.slane %v350, %v354
        %v356 = vlaneseq
        %v357 = vshrl.u32 %v356, 7
        %v358 = vsub.s32 1, %v357
        %v359 = vrot.slane %v350, %v358
        %v360 = vlaneseq
        %v361 = vshrl.u32 %v360, 7
        %v362 = vsub.s32 2, %v361
        %v363 = vrot.slane %v350, %v362
        %v364 = vlaneseq
        %v365 = vshrl.u32 %v364, 7
        %v366 = vsub.s32 3, %v365
        %v367 = vrot.slane %v350, %v366
        %v368 = vlaneseq
        %v369 = vshrl.u32 %v368, 7
        %v370 = vsub.s32 4, %v369
        %v371 = vrot.slane %v350, %v370
        %v372 = vlaneseq
        %v373 = vshrl.u32 %v372, 7
        %v374 = vsub.s32 5, %v373
        %v375 = vrot.slane %v350, %v374
        %v376 = vlaneseq
        %v377 = vshrl.u32 %v376, 7
        %v378 = vsub.s32 6, %v377
        %v379 = vrot.slane %v350, %v378
        %v380 = vlaneseq
        %v381 = vshrl.u32 %v380, 7
        %v382 = vsub.s32 7, %v381
        %v383 = vrot.slane %v350, %v382
        %v408 = vunpack.c.l.b16 %v318
        %v409 = vunpack.c.l.b16 %v319
        %v410 = vunpack.c.l.b16 %v320
        %v411 = vunpack.c.l.b16 %v321
        %v412 = vunpack.c.l.b16 %v322
        %v413 = vunpack.c.l.b16 %v323
        %v414 = vunpack.c.l.b16 %v324
        %v415 = vunpack.c.l.b16 %v325
        %v416 = vunpack.c.l.b16 %v326
        %v417 = vunpack.c.l.b16 %v327
        %v418 = vunpack.c.l.b16 %v328
        %v419 = vunpack.c.l.b16 %v329
        %v420 = vunpack.c.l.b16 %v330
        %v421 = vunpack.c.l.b16 %v331
        %v422 = vunpack.c.l.b16 %v332
        %v423 = vunpack.c.l.b16 %v333
        %v424 = vpack.c.b16 %v409, %v408
        %v425 = vpack.c.b16 %v411, %v410
        %v426 = vpack.c.b16 %v413, %v412
        %v427 = vpack.c.b16 %v415, %v414
        %v428 = vpack.c.b16 %v417, %v416
        %v429 = vpack.c.b16 %v419, %v418
        %v430 = vpack.c.b16 %v421, %v420
        %v431 = vpack.c.b16 %v423, %v422
        %v448 = vunpack.c.l.b16 %v334
        %v449 = vunpack.c.h.b16 %v334
        %v450 = vunpack.c.l.b16 %v335
        %v451 = vunpack.c.h.b16 %v335
        %v452 = vunpack.c.l.b16 %v336
        %v453 = vunpack.c.h.b16 %v336
        %v454 = vunpack.c.l.b16 %v337
        %v455 = vunpack.c.h.b16 %v337
        %v456 = vunpack.c.l.b16 %v338
        %v457 = vunpack.c.h.b16 %v338
        %v458 = vunpack.c.l.b16 %v339
        %v459 = vunpack.c.h.b16 %v339
        %v460 = vunpack.c.l.b16 %v340
        %v461 = vunpack.c.h.b16 %v340
        %v462 = vunpack.c.l.b16 %v341
        %v463 = vunpack.c.h.b16 %v341
        %v464 = vunpack.c.l.b16 %v342
        %v465 = vunpack.c.h.b16 %v342
        %v466 = vunpack.c.l.b16 %v343
        %v467 = vunpack.c.h.b16 %v343
        %v468 = vunpack.c.l.b16 %v344
        %v469 = vunpack.c.h.b16 %v344
        %v470 = vunpack.c.l.b16 %v345
        %v471 = vunpack.c.h.b16 %v345
        %v472 = vunpack.c.l.b16 %v346
        %v473 = vunpack.c.h.b16 %v346
        %v474 = vunpack.c.l.b16 %v347
        %v475 = vunpack.c.h.b16 %v347
        %v476 = vunpack.c.l.b16 %v348
        %v477 = vunpack.c.h.b16 %v348
        %v478 = vunpack.c.l.b16 %v349
        %v479 = vunpack.c.h.b16 %v349
        %v480 = vpack.c.b16 %v456, %v448
        %v481 = vpack.c.b16 %v457, %v449
        %v482 = vpack.c.b16 %v458, %v450
        %v483 = vpack.c.b16 %v459, %v451
        %v484 = vpack.c.b16 %v460, %v452
        %v485 = vpack.c.b16 %v461, %v453
        %v486 = vpack.c.b16 %v462, %v454
        %v487 = vpack.c.b16 %v463, %v455
        %v488 = vpack.c.b16 %v472, %v464
        %v489 = vpack.c.b16 %v473, %v465
        %v490 = vpack.c.b16 %v474, %v466
        %v491 = vpack.c.b16 %v475, %v467
        %v492 = vpack.c.b16 %v476, %v468
        %v493 = vpack.c.b16 %v477, %v469
        %v494 = vpack.c.b16 %v478, %v470
        %v495 = vpack.c.b16 %v479, %v471
        %vm512 = vcmask 261120
        %v514 = vsel %vm512, %v424, 0
        %v517 = vsel %vm512, %v425, 0
        %v520 = vsel %vm512, %v426, 0
        %v523 = vsel %vm512, %v427, 0
        %v526 = vsel %vm512, %v428, 0
        %v529 = vsel %vm512, %v429, 0
        %v532 = vsel %vm512, %v430, 0
        %v535 = vsel %vm512, %v431, 0
        %537 = vmatprep.subr.bf16.mxu0 %v481
        %538 = vmatpush1.bf16.msra.mxu0 %v480
        %539 = vmatprep.subr.bf16.mxu0 %v489
        %540 = vmatpush1.bf16.msra.mxu0 %v488
        %541 = vmatprep.subr.bf16.mxu0 0
        %542 = vmatpush1.bf16.msra.mxu0 0
        %543 = vmatprep.subr.bf16.mxu0 0
        %544 = vmatpush1.bf16.msra.mxu0 0
        %545 = vmatprep.subr.bf16.mxu0 0
        %546 = vmatpush1.bf16.msra.mxu0 0
        %547 = vmatprep.subr.bf16.mxu0 0
        %548 = vmatpush1.bf16.msra.mxu0 0
        %549 = vmatprep.subr.bf16.mxu0 0
        %550 = vmatpush1.bf16.msra.mxu0 0
        %551 = vmatprep.subr.bf16.mxu0 0
        %552 = vmatpush1.bf16.msra.mxu0 0
        %553 = vmatprep.subr.bf16.mxu0 0
        %554 = vmatpush1.bf16.msra.mxu0 0
        %555 = vmatprep.subr.bf16.mxu0 0
        %556 = vmatpush1.bf16.msra.mxu0 0
        %557 = vmatprep.subr.bf16.mxu0 0
        %558 = vmatpush1.bf16.msra.mxu0 0
        %559 = vmatprep.subr.bf16.mxu0 0
        %560 = vmatpush1.bf16.msra.mxu0 0
        %561 = vmatprep.subr.bf16.mxu0 0
        %562 = vmatpush1.bf16.msra.mxu0 0
        %563 = vmatprep.subr.bf16.mxu0 0
        %564 = vmatpush1.bf16.msra.mxu0 0
        %565 = vmatprep.subr.bf16.mxu0 0
        %566 = vmatpush1.bf16.msra.mxu0 0
        %567 = vmatprep.subr.bf16.mxu0 0
        %568 = vmatpush1.bf16.msra.mxu0 0
        %569 = vmatprep.mubr.bf16.mxu0 0
        %570 = vmatmul.mubr.bf16.gmra.mrb[0].mxu0 %v514
        %v571 = vpop.f32.mrb[0].mxu0
        %v572 = vadd.f32 %v355, %v571
        %v573 = vpop.f32.mrb[0].mxu0
        %v574 = vadd.f32 %v359, %v573
        %v575 = vpop.f32.mrb[0].mxu0
        %v576 = vadd.f32 %v355, %v575
        %v577 = vpop.f32.mrb[0].mxu0
        %v578 = vadd.f32 %v359, %v577
        %579 = vmatprep.mubr.bf16.mxu0 0
        %580 = vmatmul.mubr.bf16.gmra.mrb[0].mxu0 %v517
        %v581 = vpop.f32.mrb[0].mxu0
        %v582 = vadd.f32 %v355, %v581
        %v583 = vpop.f32.mrb[0].mxu0
        %v584 = vadd.f32 %v359, %v583
        %v585 = vpop.f32.mrb[0].mxu0
        %v586 = vadd.f32 %v355, %v585
        %v587 = vpop.f32.mrb[0].mxu0
        %v588 = vadd.f32 %v359, %v587
        %589 = vmatprep.mubr.bf16.mxu0 0
        %590 = vmatmul.mubr.bf16.gmra.mrb[0].mxu0 %v520
        %v591 = vpop.f32.mrb[0].mxu0
        %v592 = vadd.f32 %v355, %v591
        %v593 = vpop.f32.mrb[0].mxu0
        %v594 = vadd.f32 %v359, %v593
        %v595 = vpop.f32.mrb[0].mxu0
        %v596 = vadd.f32 %v355, %v595
        %v597 = vpop.f32.mrb[0].mxu0
        %v598 = vadd.f32 %v359, %v597
        %599 = vmatprep.mubr.bf16.mxu0 0
        %600 = vmatmul.mubr.bf16.gmra.mrb[0].mxu0 %v523
        %v601 = vpop.f32.mrb[0].mxu0
        %v602 = vadd.f32 %v355, %v601
        %v603 = vpop.f32.mrb[0].mxu0
        %v604 = vadd.f32 %v359, %v603
        %v605 = vpop.f32.mrb[0].mxu0
        %v606 = vadd.f32 %v355, %v605
        %v607 = vpop.f32.mrb[0].mxu0
        %v608 = vadd.f32 %v359, %v607
        %609 = vmatprep.mubr.bf16.mxu0 0
        %610 = vmatmul.mubr.bf16.gmra.mrb[0].mxu0 %v526
        %v611 = vpop.f32.mrb[0].mxu0
        %v612 = vadd.f32 %v355, %v611
        %v613 = vpop.f32.mrb[0].mxu0
        %v614 = vadd.f32 %v359, %v613
        %v615 = vpop.f32.mrb[0].mxu0
        %v616 = vadd.f32 %v355, %v615
        %v617 = vpop.f32.mrb[0].mxu0
        %v618 = vadd.f32 %v359, %v617
        %619 = vmatprep.mubr.bf16.mxu0 0
        %620 = vmatmul.mubr.bf16.gmra.mrb[0].mxu0 %v529
        %v621 = vpop.f32.mrb[0].mxu0
        %v622 = vadd.f32 %v355, %v621
        %v623 = vpop.f32.mrb[0].mxu0
        %v624 = vadd.f32 %v359, %v623
        %v625 = vpop.f32.mrb[0].mxu0
        %v626 = vadd.f32 %v355, %v625
        %v627 = vpop.f32.mrb[0].mxu0
        %v628 = vadd.f32 %v359, %v627
        %629 = vmatprep.mubr.bf16.mxu0 0
        %630 = vmatmul.mubr.bf16.gmra.mrb[0].mxu0 %v532
        %v631 = vpop.f32.mrb[0].mxu0
        %v632 = vadd.f32 %v355, %v631
        %v633 = vpop.f32.mrb[0].mxu0
        %v634 = vadd.f32 %v359, %v633
        %v635 = vpop.f32.mrb[0].mxu0
        %v636 = vadd.f32 %v355, %v635
        %v637 = vpop.f32.mrb[0].mxu0
        %v638 = vadd.f32 %v359, %v637
        %639 = vmatprep.mubr.bf16.mxu0 0
        %640 = vmatmul.mubr.bf16.gmra.mrb[0].mxu0 %v535
        %v641 = vpop.f32.mrb[0].mxu0
        %v642 = vadd.f32 %v355, %v641
        %v643 = vpop.f32.mrb[0].mxu0
        %v644 = vadd.f32 %v359, %v643
        %v645 = vpop.f32.mrb[0].mxu0
        %v646 = vadd.f32 %v355, %v645
        %v647 = vpop.f32.mrb[0].mxu0
        %v648 = vadd.f32 %v359, %v647
        %649 = vdwg.mxu0
        %650 = vmatprep.subr.bf16.mxu0 %v483
        %651 = vmatpush1.bf16.msra.mxu0 %v482
        %652 = vmatprep.subr.bf16.mxu0 %v491
        %653 = vmatpush1.bf16.msra.mxu0 %v490
        %654 = vmatprep.subr.bf16.mxu0 0
        %655 = vmatpush1.bf16.msra.mxu0 0
        %656 = vmatprep.subr.bf16.mxu0 0
        %657 = vmatpush1.bf16.msra.mxu0 0
        %658 = vmatprep.subr.bf16.mxu0 0
        %659 = vmatpush1.bf16.msra.mxu0 0
        %660 = vmatprep.subr.bf16.mxu0 0
        %661 = vmatpush1.bf16.msra.mxu0 0
        %662 = vmatprep.subr.bf16.mxu0 0
        %663 = vmatpush1.bf16.msra.mxu0 0
        %664 = vmatprep.subr.bf16.mxu0 0
        %665 = vmatpush1.bf16.msra.mxu0 0
        %666 = vmatprep.subr.bf16.mxu0 0
        %667 = vmatpush1.bf16.msra.mxu0 0
        %668 = vmatprep.subr.bf16.mxu0 0
        %669 = vmatpush1.bf16.msra.mxu0 0
        %670 = vmatprep.subr.bf16.mxu0 0
        %671 = vmatpush1.bf16.msra.mxu0 0
        %672 = vmatprep.subr.bf16.mxu0 0
        %673 = vmatpush1.bf16.msra.mxu0 0
        %674 = vmatprep.subr.bf16.mxu0 0
        %675 = vmatpush1.bf16.msra.mxu0 0
        %676 = vmatprep.subr.bf16.mxu0 0
        %677 = vmatpush1.bf16.msra.mxu0 0
        %678 = vmatprep.subr.bf16.mxu0 0
        %679 = vmatpush1.bf16.msra.mxu0 0
        %680 = vmatprep.subr.bf16.mxu0 0
        %681 = vmatpush1.bf16.msra.mxu0 0
        %682 = vmatprep.mubr.bf16.mxu0 0
        %683 = vmatmul.mubr.bf16.gmra.mrb[0].mxu0 %v514
        %v684 = vpop.f32.mrb[0].mxu0
        %v685 = vadd.f32 %v363, %v684
        %v686 = vpop.f32.mrb[0].mxu0
        %v687 = vadd.f32 %v367, %v686
        %v688 = vpop.f32.mrb[0].mxu0
        %v689 = vadd.f32 %v363, %v688
        %v690 = vpop.f32.mrb[0].mxu0
        %v691 = vadd.f32 %v367, %v690
        %692 = vmatprep.mubr.bf16.mxu0 0
        %693 = vmatmul.mubr.bf16.gmra.mrb[0].mxu0 %v517
        %v694 = vpop.f32.mrb[0].mxu0
        %v695 = vadd.f32 %v363, %v694
        %v696 = vpop.f32.mrb[0].mxu0
        %v697 = vadd.f32 %v367, %v696
        %v698 = vpop.f32.mrb[0].mxu0
        %v699 = vadd.f32 %v363, %v698
        %v700 = vpop.f32.mrb[0].mxu0
        %v701 = vadd.f32 %v367, %v700
        %702 = vmatprep.mubr.bf16.mxu0 0
        %703 = vmatmul.mubr.bf16.gmra.mrb[0].mxu0 %v520
        %v704 = vpop.f32.mrb[0].mxu0
        %v705 = vadd.f32 %v363, %v704
        %v706 = vpop.f32.mrb[0].mxu0
        %v707 = vadd.f32 %v367, %v706
        %v708 = vpop.f32.mrb[0].mxu0
        %v709 = vadd.f32 %v363, %v708
        %v710 = vpop.f32.mrb[0].mxu0
        %v711 = vadd.f32 %v367, %v710
        %712 = vmatprep.mubr.bf16.mxu0 0
        %713 = vmatmul.mubr.bf16.gmra.mrb[0].mxu0 %v523
        %v714 = vpop.f32.mrb[0].mxu0
        %v715 = vadd.f32 %v363, %v714
        %v716 = vpop.f32.mrb[0].mxu0
        %v717 = vadd.f32 %v367, %v716
        %v718 = vpop.f32.mrb[0].mxu0
        %v719 = vadd.f32 %v363, %v718
        %v720 = vpop.f32.mrb[0].mxu0
        %v721 = vadd.f32 %v367, %v720
        %722 = vmatprep.mubr.bf16.mxu0 0
        %723 = vmatmul.mubr.bf16.gmra.mrb[0].mxu0 %v526
        %v724 = vpop.f32.mrb[0].mxu0
        %v725 = vadd.f32 %v363, %v724
        %v726 = vpop.f32.mrb[0].mxu0
        %v727 = vadd.f32 %v367, %v726
        %v728 = vpop.f32.mrb[0].mxu0
        %v729 = vadd.f32 %v363, %v728
        %v730 = vpop.f32.mrb[0].mxu0
        %v731 = vadd.f32 %v367, %v730
        %732 = vmatprep.mubr.bf16.mxu0 0
        %733 = vmatmul.mubr.bf16.gmra.mrb[0].mxu0 %v529
        %v734 = vpop.f32.mrb[0].mxu0
        %v735 = vadd.f32 %v363, %v734
        %v736 = vpop.f32.mrb[0].mxu0
        %v737 = vadd.f32 %v367, %v736
        %v738 = vpop.f32.mrb[0].mxu0
        %v739 = vadd.f32 %v363, %v738
        %v740 = vpop.f32.mrb[0].mxu0
        %v741 = vadd.f32 %v367, %v740
        %742 = vmatprep.mubr.bf16.mxu0 0
        %743 = vmatmul.mubr.bf16.gmra.mrb[0].mxu0 %v532
        %v744 = vpop.f32.mrb[0].mxu0
        %v745 = vadd.f32 %v363, %v744
        %v746 = vpop.f32.mrb[0].mxu0
        %v747 = vadd.f32 %v367, %v746
        %v748 = vpop.f32.mrb[0].mxu0
        %v749 = vadd.f32 %v363, %v748
        %v750 = vpop.f32.mrb[0].mxu0
        %v751 = vadd.f32 %v367, %v750
        %752 = vmatprep.mubr.bf16.mxu0 0
        %753 = vmatmul.mubr.bf16.gmra.mrb[0].mxu0 %v535
        %v754 = vpop.f32.mrb[0].mxu0
        %v755 = vadd.f32 %v363, %v754
        %v756 = vpop.f32.mrb[0].mxu0
        %v757 = vadd.f32 %v367, %v756
        %v758 = vpop.f32.mrb[0].mxu0
        %v759 = vadd.f32 %v363, %v758
        %v760 = vpop.f32.mrb[0].mxu0
        %v761 = vadd.f32 %v367, %v760
        %762 = vdwg.mxu0
        %763 = vmatprep.subr.bf16.mxu0 %v485
        %764 = vmatpush1.bf16.msra.mxu0 %v484
        %765 = vmatprep.subr.bf16.mxu0 %v493
        %766 = vmatpush1.bf16.msra.mxu0 %v492
        %767 = vmatprep.subr.bf16.mxu0 0
        %768 = vmatpush1.bf16.msra.mxu0 0
        %769 = vmatprep.subr.bf16.mxu0 0
        %770 = vmatpush1.bf16.msra.mxu0 0
        %771 = vmatprep.subr.bf16.mxu0 0
        %772 = vmatpush1.bf16.msra.mxu0 0
        %773 = vmatprep.subr.bf16.mxu0 0
        %774 = vmatpush1.bf16.msra.mxu0 0
        %775 = vmatprep.subr.bf16.mxu0 0
        %776 = vmatpush1.bf16.msra.mxu0 0
        %777 = vmatprep.subr.bf16.mxu0 0
        %778 = vmatpush1.bf16.msra.mxu0 0
        %779 = vmatprep.subr.bf16.mxu0 0
        %780 = vmatpush1.bf16.msra.mxu0 0
        %781 = vmatprep.subr.bf16.mxu0 0
        %782 = vmatpush1.bf16.msra.mxu0 0
        %783 = vmatprep.subr.bf16.mxu0 0
        %784 = vmatpush1.bf16.msra.mxu0 0
        %785 = vmatprep.subr.bf16.mxu0 0
        %786 = vmatpush1.bf16.msra.mxu0 0
        %787 = vmatprep.subr.bf16.mxu0 0
        %788 = vmatpush1.bf16.msra.mxu0 0
        %789 = vmatprep.subr.bf16.mxu0 0
        %790 = vmatpush1.bf16.msra.mxu0 0
        %791 = vmatprep.subr.bf16.mxu0 0
        %792 = vmatpush1.bf16.msra.mxu0 0
        %793 = vmatprep.subr.bf16.mxu0 0
        %794 = vmatpush1.bf16.msra.mxu0 0
        %795 = vmatprep.mubr.bf16.mxu0 0
        %796 = vmatmul.mubr.bf16.gmra.mrb[0].mxu0 %v514
        %v797 = vpop.f32.mrb[0].mxu0
        %v798 = vadd.f32 %v371, %v797
        %v799 = vpop.f32.mrb[0].mxu0
        %v800 = vadd.f32 %v375, %v799
        %v801 = vpop.f32.mrb[0].mxu0
        %v802 = vadd.f32 %v371, %v801
        %v803 = vpop.f32.mrb[0].mxu0
        %v804 = vadd.f32 %v375, %v803
        %805 = vmatprep.mubr.bf16.mxu0 0
        %806 = vmatmul.mubr.bf16.gmra.mrb[0].mxu0 %v517
        %v807 = vpop.f32.mrb[0].mxu0
        %v808 = vadd.f32 %v371, %v807
        %v809 = vpop.f32.mrb[0].mxu0
        %v810 = vadd.f32 %v375, %v809
        %v811 = vpop.f32.mrb[0].mxu0
        %v812 = vadd.f32 %v371, %v811
        %v813 = vpop.f32.mrb[0].mxu0
        %v814 = vadd.f32 %v375, %v813
        %815 = vmatprep.mubr.bf16.mxu0 0
        %816 = vmatmul.mubr.bf16.gmra.mrb[0].mxu0 %v520
        %v817 = vpop.f32.mrb[0].mxu0
        %v818 = vadd.f32 %v371, %v817
        %v819 = vpop.f32.mrb[0].mxu0
        %v820 = vadd.f32 %v375, %v819
        %v821 = vpop.f32.mrb[0].mxu0
        %v822 = vadd.f32 %v371, %v821
        %v823 = vpop.f32.mrb[0].mxu0
        %v824 = vadd.f32 %v375, %v823
        %825 = vmatprep.mubr.bf16.mxu0 0
        %826 = vmatmul.mubr.bf16.gmra.mrb[0].mxu0 %v523
        %v827 = vpop.f32.mrb[0].mxu0
        %v828 = vadd.f32 %v371, %v827
        %v829 = vpop.f32.mrb[0].mxu0
        %v830 = vadd.f32 %v375, %v829
        %v831 = vpop.f32.mrb[0].mxu0
        %v832 = vadd.f32 %v371, %v831
        %v833 = vpop.f32.mrb[0].mxu0
        %v834 = vadd.f32 %v375, %v833
        %835 = vmatprep.mubr.bf16.mxu0 0
        %836 = vmatmul.mubr.bf16.gmra.mrb[0].mxu0 %v526
        %v837 = vpop.f32.mrb[0].mxu0
        %v838 = vadd.f32 %v371, %v837
        %v839 = vpop.f32.mrb[0].mxu0
        %v840 = vadd.f32 %v375, %v839
        %v841 = vpop.f32.mrb[0].mxu0
        %v842 = vadd.f32 %v371, %v841
        %v843 = vpop.f32.mrb[0].mxu0
        %v844 = vadd.f32 %v375, %v843
        %845 = vmatprep.mubr.bf16.mxu0 0
        %846 = vmatmul.mubr.bf16.gmra.mrb[0].mxu0 %v529
        %v847 = vpop.f32.mrb[0].mxu0
        %v848 = vadd.f32 %v371, %v847
        %v849 = vpop.f32.mrb[0].mxu0
        %v850 = vadd.f32 %v375, %v849
        %v851 = vpop.f32.mrb[0].mxu0
        %v852 = vadd.f32 %v371, %v851
        %v853 = vpop.f32.mrb[0].mxu0
        %v854 = vadd.f32 %v375, %v853
        %855 = vmatprep.mubr.bf16.mxu0 0
        %856 = vmatmul.mubr.bf16.gmra.mrb[0].mxu0 %v532
        %v857 = vpop.f32.mrb[0].mxu0
        %v858 = vadd.f32 %v371, %v857
        %v859 = vpop.f32.mrb[0].mxu0
        %v860 = vadd.f32 %v375, %v859
        %v861 = vpop.f32.mrb[0].mxu0
        %v862 = vadd.f32 %v371, %v861
        %v863 = vpop.f32.mrb[0].mxu0
        %v864 = vadd.f32 %v375, %v863
        %865 = vmatprep.mubr.bf16.mxu0 0
        %866 = vmatmul.mubr.bf16.gmra.mrb[0].mxu0 %v535
        %v867 = vpop.f32.mrb[0].mxu0
        %v868 = vadd.f32 %v371, %v867
        %v869 = vpop.f32.mrb[0].mxu0
        %v870 = vadd.f32 %v375, %v869
        %v871 = vpop.f32.mrb[0].mxu0
        %v872 = vadd.f32 %v371, %v871
        %v873 = vpop.f32.mrb[0].mxu0
        %v874 = vadd.f32 %v375, %v873
        %875 = vdwg.mxu0
        %876 = vmatprep.subr.bf16.mxu0 %v487
        %877 = vmatpush1.bf16.msra.mxu0 %v486
        %878 = vmatprep.subr.bf16.mxu0 %v495
        %879 = vmatpush1.bf16.msra.mxu0 %v494
        %880 = vmatprep.subr.bf16.mxu0 0
        %881 = vmatpush1.bf16.msra.mxu0 0
        %882 = vmatprep.subr.bf16.mxu0 0
        %883 = vmatpush1.bf16.msra.mxu0 0
        %884 = vmatprep.subr.bf16.mxu0 0
        %885 = vmatpush1.bf16.msra.mxu0 0
        %886 = vmatprep.subr.bf16.mxu0 0
        %887 = vmatpush1.bf16.msra.mxu0 0
        %888 = vmatprep.subr.bf16.mxu0 0
        %889 = vmatpush1.bf16.msra.mxu0 0
        %890 = vmatprep.subr.bf16.mxu0 0
        %891 = vmatpush1.bf16.msra.mxu0 0
        %892 = vmatprep.subr.bf16.mxu0 0
        %893 = vmatpush1.bf16.msra.mxu0 0
        %894 = vmatprep.subr.bf16.mxu0 0
        %895 = vmatpush1.bf16.msra.mxu0 0
        %896 = vmatprep.subr.bf16.mxu0 0
        %897 = vmatpush1.bf16.msra.mxu0 0
        %898 = vmatprep.subr.bf16.mxu0 0
        %899 = vmatpush1.bf16.msra.mxu0 0
        %900 = vmatprep.subr.bf16.mxu0 0
        %901 = vmatpush1.bf16.msra.mxu0 0
        %902 = vmatprep.subr.bf16.mxu0 0
        %903 = vmatpush1.bf16.msra.mxu0 0
        %904 = vmatprep.subr.bf16.mxu0 0
        %905 = vmatpush1.bf16.msra.mxu0 0
        %906 = vmatprep.subr.bf16.mxu0 0
        %907 = vmatpush1.bf16.msra.mxu0 0
        %908 = vmatprep.mubr.bf16.mxu0 0
        %909 = vmatmul.mubr.bf16.gmra.mrb[0].mxu0 %v514
        %v910 = vpop.f32.mrb[0].mxu0
        %v911 = vadd.f32 %v379, %v910
        %v912 = vpop.f32.mrb[0].mxu0
        %v913 = vadd.f32 %v383, %v912
        %v914 = vpop.f32.mrb[0].mxu0
        %v915 = vadd.f32 %v379, %v914
        %v916 = vpop.f32.mrb[0].mxu0
        %v917 = vadd.f32 %v383, %v916
        %918 = vmatprep.mubr.bf16.mxu0 0
        %919 = vmatmul.mubr.bf16.gmra.mrb[0].mxu0 %v517
        %v920 = vpop.f32.mrb[0].mxu0
        %v921 = vadd.f32 %v379, %v920
        %v922 = vpop.f32.mrb[0].mxu0
        %v923 = vadd.f32 %v383, %v922
        %v924 = vpop.f32.mrb[0].mxu0
        %v925 = vadd.f32 %v379, %v924
        %v926 = vpop.f32.mrb[0].mxu0
        %v927 = vadd.f32 %v383, %v926
        %928 = vmatprep.mubr.bf16.mxu0 0
        %929 = vmatmul.mubr.bf16.gmra.mrb[0].mxu0 %v520
        %v930 = vpop.f32.mrb[0].mxu0
        %v931 = vadd.f32 %v379, %v930
        %v932 = vpop.f32.mrb[0].mxu0
        %v933 = vadd.f32 %v383, %v932
        %v934 = vpop.f32.mrb[0].mxu0
        %v935 = vadd.f32 %v379, %v934
        %v936 = vpop.f32.mrb[0].mxu0
        %v937 = vadd.f32 %v383, %v936
        %938 = vmatprep.mubr.bf16.mxu0 0
        %939 = vmatmul.mubr.bf16.gmra.mrb[0].mxu0 %v523
        %v940 = vpop.f32.mrb[0].mxu0
        %v941 = vadd.f32 %v379, %v940
        %v942 = vpop.f32.mrb[0].mxu0
        %v943 = vadd.f32 %v383, %v942
        %v944 = vpop.f32.mrb[0].mxu0
        %v945 = vadd.f32 %v379, %v944
        %v946 = vpop.f32.mrb[0].mxu0
        %v947 = vadd.f32 %v383, %v946
        %948 = vmatprep.mubr.bf16.mxu0 0
        %949 = vmatmul.mubr.bf16.gmra.mrb[0].mxu0 %v526
        %v950 = vpop.f32.mrb[0].mxu0
        %v951 = vadd.f32 %v379, %v950
        %v952 = vpop.f32.mrb[0].mxu0
        %v953 = vadd.f32 %v383, %v952
        %v954 = vpop.f32.mrb[0].mxu0
        %v955 = vadd.f32 %v379, %v954
        %v956 = vpop.f32.mrb[0].mxu0
        %v957 = vadd.f32 %v383, %v956
        %958 = vmatprep.mubr.bf16.mxu0 0
        %959 = vmatmul.mubr.bf16.gmra.mrb[0].mxu0 %v529
        %v960 = vpop.f32.mrb[0].mxu0
        %v961 = vadd.f32 %v379, %v960
        %v962 = vpop.f32.mrb[0].mxu0
        %v963 = vadd.f32 %v383, %v962
        %v964 = vpop.f32.mrb[0].mxu0
        %v965 = vadd.f32 %v379, %v964
        %v966 = vpop.f32.mrb[0].mxu0
        %v967 = vadd.f32 %v383, %v966
        %968 = vmatprep.mubr.bf16.mxu0 0
        %969 = vmatmul.mubr.bf16.gmra.mrb[0].mxu0 %v532
        %v970 = vpop.f32.mrb[0].mxu0
        %v971 = vadd.f32 %v379, %v970
        %v972 = vpop.f32.mrb[0].mxu0
        %v973 = vadd.f32 %v383, %v972
        %v974 = vpop.f32.mrb[0].mxu0
        %v975 = vadd.f32 %v379, %v974
        %v976 = vpop.f32.mrb[0].mxu0
        %v977 = vadd.f32 %v383, %v976
        %978 = vmatprep.mubr.bf16.mxu0 0
        %979 = vmatmul.mubr.bf16.gmra.mrb[0].mxu0 %v535
        %v980 = vpop.f32.mrb[0].mxu0
        %v981 = vadd.f32 %v379, %v980
        %v982 = vpop.f32.mrb[0].mxu0
        %v983 = vadd.f32 %v383, %v982
        %v984 = vpop.f32.mrb[0].mxu0
        %v985 = vadd.f32 %v379, %v984
        %v986 = vpop.f32.mrb[0].mxu0
        %v987 = vadd.f32 %v383, %v986
        %988 = vdwg.mxu0
        %v989 = vtanh.pop %v572
        %v990 = vtanh.pop %v574
        %v991 = vtanh.pop %v685
        %v992 = vtanh.pop %v687
        %v993 = vtanh.pop %v576
        %v994 = vtanh.pop %v578
        %v995 = vtanh.pop %v689
        %v996 = vtanh.pop %v691
        %v997 = vtanh.pop %v582
        %v998 = vtanh.pop %v584
        %v999 = vtanh.pop %v695
        %v1000 = vtanh.pop %v697
        %v1001 = vtanh.pop %v586
        %v1002 = vtanh.pop %v588
        %v1003 = vtanh.pop %v699
        %v1004 = vtanh.pop %v701
        %v1005 = vtanh.pop %v592
        %v1006 = vtanh.pop %v594
        %v1007 = vtanh.pop %v705
        %v1008 = vtanh.pop %v707
        %v1009 = vtanh.pop %v596
        %v1010 = vtanh.pop %v598
        %v1011 = vtanh.pop %v709
        %v1012 = vtanh.pop %v711
        %v1013 = vtanh.pop %v602
        %v1014 = vtanh.pop %v604
        %v1015 = vtanh.pop %v715
        %v1016 = vtanh.pop %v717
        %v1017 = vtanh.pop %v606
        %v1018 = vtanh.pop %v608
        %v1019 = vtanh.pop %v719
        %v1020 = vtanh.pop %v721
        %v1021 = vtanh.pop %v612
        %v1022 = vtanh.pop %v614
        %v1023 = vtanh.pop %v725
        %v1024 = vtanh.pop %v727
        %v1025 = vtanh.pop %v616
        %v1026 = vtanh.pop %v618
        %v1027 = vtanh.pop %v729
        %v1028 = vtanh.pop %v731
        %v1029 = vtanh.pop %v622
        %v1030 = vtanh.pop %v624
        %v1031 = vtanh.pop %v735
        %v1032 = vtanh.pop %v737
        %v1033 = vtanh.pop %v626
        %v1034 = vtanh.pop %v628
        %v1035 = vtanh.pop %v739
        %v1036 = vtanh.pop %v741
        %v1037 = vtanh.pop %v632
        %v1038 = vtanh.pop %v634
        %v1039 = vtanh.pop %v745
        %v1040 = vtanh.pop %v747
        %v1041 = vtanh.pop %v636
        %v1042 = vtanh.pop %v638
        %v1043 = vtanh.pop %v749
        %v1044 = vtanh.pop %v751
        %v1045 = vtanh.pop %v642
        %v1046 = vtanh.pop %v644
        %v1047 = vtanh.pop %v755
        %v1048 = vtanh.pop %v757
        %v1049 = vtanh.pop %v646
        %v1050 = vtanh.pop %v648
        %v1051 = vtanh.pop %v759
        %v1052 = vtanh.pop %v761
        %v1053 = vmul.f32 %v798, 0.5
        %v1054 = vmul.f32 %v800, 0.5
        %v1055 = vmul.f32 %v911, 0.5
        %v1056 = vmul.f32 %v913, 0.5
        %v1057 = vmul.f32 %v802, 0.5
        %v1058 = vmul.f32 %v804, 0.5
        %v1059 = vmul.f32 %v915, 0.5
        %v1060 = vmul.f32 %v917, 0.5
        %v1061 = vmul.f32 %v808, 0.5
        %v1062 = vmul.f32 %v810, 0.5
        %v1063 = vmul.f32 %v921, 0.5
        %v1064 = vmul.f32 %v923, 0.5
        %v1065 = vmul.f32 %v812, 0.5
        %v1066 = vmul.f32 %v814, 0.5
        %v1067 = vmul.f32 %v925, 0.5
        %v1068 = vmul.f32 %v927, 0.5
        %v1069 = vmul.f32 %v818, 0.5
        %v1070 = vmul.f32 %v820, 0.5
        %v1071 = vmul.f32 %v931, 0.5
        %v1072 = vmul.f32 %v933, 0.5
        %v1073 = vmul.f32 %v822, 0.5
        %v1074 = vmul.f32 %v824, 0.5
        %v1075 = vmul.f32 %v935, 0.5
        %v1076 = vmul.f32 %v937, 0.5
        %v1077 = vmul.f32 %v828, 0.5
        %v1078 = vmul.f32 %v830, 0.5
        %v1079 = vmul.f32 %v941, 0.5
        %v1080 = vmul.f32 %v943, 0.5
        %v1081 = vmul.f32 %v832, 0.5
        %v1082 = vmul.f32 %v834, 0.5
        %v1083 = vmul.f32 %v945, 0.5
        %v1084 = vmul.f32 %v947, 0.5
        %v1085 = vmul.f32 %v838, 0.5
        %v1086 = vmul.f32 %v840, 0.5
        %v1087 = vmul.f32 %v951, 0.5
        %v1088 = vmul.f32 %v953, 0.5
        %v1089 = vmul.f32 %v842, 0.5
        %v1090 = vmul.f32 %v844, 0.5
        %v1091 = vmul.f32 %v955, 0.5
        %v1092 = vmul.f32 %v957, 0.5
        %v1093 = vmul.f32 %v848, 0.5
        %v1094 = vmul.f32 %v850, 0.5
        %v1095 = vmul.f32 %v961, 0.5
        %v1096 = vmul.f32 %v963, 0.5
        %v1097 = vmul.f32 %v852, 0.5
        %v1098 = vmul.f32 %v854, 0.5
        %v1099 = vmul.f32 %v965, 0.5
        %v1100 = vmul.f32 %v967, 0.5
        %v1101 = vmul.f32 %v858, 0.5
        %v1102 = vmul.f32 %v860, 0.5
        %v1103 = vmul.f32 %v971, 0.5
        %v1104 = vmul.f32 %v973, 0.5
        %v1105 = vmul.f32 %v862, 0.5
        %v1106 = vmul.f32 %v864, 0.5
        %v1107 = vmul.f32 %v975, 0.5
        %v1108 = vmul.f32 %v977, 0.5
        %v1109 = vmul.f32 %v868, 0.5
        %v1110 = vmul.f32 %v870, 0.5
        %v1111 = vmul.f32 %v981, 0.5
        %v1112 = vmul.f32 %v983, 0.5
        %v1113 = vmul.f32 %v872, 0.5
        %v1114 = vmul.f32 %v874, 0.5
        %v1115 = vmul.f32 %v985, 0.5
        %v1116 = vmul.f32 %v987, 0.5
        %v1117 = vtanh.pop %v1053
        %v1118 = vtanh.pop %v1054
        %v1119 = vtanh.pop %v1055
        %v1120 = vtanh.pop %v1056
        %v1121 = vtanh.pop %v1057
        %v1122 = vtanh.pop %v1058
        %v1123 = vtanh.pop %v1059
        %v1124 = vtanh.pop %v1060
        %v1125 = vtanh.pop %v1061
        %v1126 = vtanh.pop %v1062
        %v1127 = vtanh.pop %v1063
        %v1128 = vtanh.pop %v1064
        %v1129 = vtanh.pop %v1065
        %v1130 = vtanh.pop %v1066
        %v1131 = vtanh.pop %v1067
        %v1132 = vtanh.pop %v1068
        %v1133 = vtanh.pop %v1069
        %v1134 = vtanh.pop %v1070
        %v1135 = vtanh.pop %v1071
        %v1136 = vtanh.pop %v1072
        %v1137 = vtanh.pop %v1073
        %v1138 = vtanh.pop %v1074
        %v1139 = vtanh.pop %v1075
        %v1140 = vtanh.pop %v1076
        %v1141 = vtanh.pop %v1077
        %v1142 = vtanh.pop %v1078
        %v1143 = vtanh.pop %v1079
        %v1144 = vtanh.pop %v1080
        %v1145 = vtanh.pop %v1081
        %v1146 = vtanh.pop %v1082
        %v1147 = vtanh.pop %v1083
        %v1148 = vtanh.pop %v1084
        %v1149 = vtanh.pop %v1085
        %v1150 = vtanh.pop %v1086
        %v1151 = vtanh.pop %v1087
        %v1152 = vtanh.pop %v1088
        %v1153 = vtanh.pop %v1089
        %v1154 = vtanh.pop %v1090
        %v1155 = vtanh.pop %v1091
        %v1156 = vtanh.pop %v1092
        %v1157 = vtanh.pop %v1093
        %v1158 = vtanh.pop %v1094
        %v1159 = vtanh.pop %v1095
        %v1160 = vtanh.pop %v1096
        %v1161 = vtanh.pop %v1097
        %v1162 = vtanh.pop %v1098
        %v1163 = vtanh.pop %v1099
        %v1164 = vtanh.pop %v1100
        %v1165 = vtanh.pop %v1101
        %v1166 = vtanh.pop %v1102
        %v1167 = vtanh.pop %v1103
        %v1168 = vtanh.pop %v1104
        %v1169 = vtanh.pop %v1105
        %v1170 = vtanh.pop %v1106
        %v1171 = vtanh.pop %v1107
        %v1172 = vtanh.pop %v1108
        %v1173 = vtanh.pop %v1109
        %v1174 = vtanh.pop %v1110
        %v1175 = vtanh.pop %v1111
        %v1176 = vtanh.pop %v1112
        %v1177 = vtanh.pop %v1113
        %v1178 = vtanh.pop %v1114
        %v1179 = vtanh.pop %v1115
        %v1180 = vtanh.pop %v1116
        %v1181 = vadd.f32 %v1117, 1.0
        %v1182 = vadd.f32 %v1118, 1.0
        %v1183 = vadd.f32 %v1119, 1.0
        %v1184 = vadd.f32 %v1120, 1.0
        %v1185 = vadd.f32 %v1121, 1.0
        %v1186 = vadd.f32 %v1122, 1.0
        %v1187 = vadd.f32 %v1123, 1.0
        %v1188 = vadd.f32 %v1124, 1.0
        %v1189 = vadd.f32 %v1125, 1.0
        %v1190 = vadd.f32 %v1126, 1.0
        %v1191 = vadd.f32 %v1127, 1.0
        %v1192 = vadd.f32 %v1128, 1.0
        %v1193 = vadd.f32 %v1129, 1.0
        %v1194 = vadd.f32 %v1130, 1.0
        %v1195 = vadd.f32 %v1131, 1.0
        %v1196 = vadd.f32 %v1132, 1.0
        %v1197 = vadd.f32 %v1133, 1.0
        %v1198 = vadd.f32 %v1134, 1.0
        %v1199 = vadd.f32 %v1135, 1.0
        %v1200 = vadd.f32 %v1136, 1.0
        %v1201 = vadd.f32 %v1137, 1.0
        %v1202 = vadd.f32 %v1138, 1.0
        %v1203 = vadd.f32 %v1139, 1.0
        %v1204 = vadd.f32 %v1140, 1.0
        %v1205 = vadd.f32 %v1141, 1.0
        %v1206 = vadd.f32 %v1142, 1.0
        %v1207 = vadd.f32 %v1143, 1.0
        %v1208 = vadd.f32 %v1144, 1.0
        %v1209 = vadd.f32 %v1145, 1.0
        %v1210 = vadd.f32 %v1146, 1.0
        %v1211 = vadd.f32 %v1147, 1.0
        %v1212 = vadd.f32 %v1148, 1.0
        %v1213 = vadd.f32 %v1149, 1.0
        %v1214 = vadd.f32 %v1150, 1.0
        %v1215 = vadd.f32 %v1151, 1.0
        %v1216 = vadd.f32 %v1152, 1.0
        %v1217 = vadd.f32 %v1153, 1.0
        %v1218 = vadd.f32 %v1154, 1.0
        %v1219 = vadd.f32 %v1155, 1.0
        %v1220 = vadd.f32 %v1156, 1.0
        %v1221 = vadd.f32 %v1157, 1.0
        %v1222 = vadd.f32 %v1158, 1.0
        %v1223 = vadd.f32 %v1159, 1.0
        %v1224 = vadd.f32 %v1160, 1.0
        %v1225 = vadd.f32 %v1161, 1.0
        %v1226 = vadd.f32 %v1162, 1.0
        %v1227 = vadd.f32 %v1163, 1.0
        %v1228 = vadd.f32 %v1164, 1.0
        %v1229 = vadd.f32 %v1165, 1.0
        %v1230 = vadd.f32 %v1166, 1.0
        %v1231 = vadd.f32 %v1167, 1.0
        %v1232 = vadd.f32 %v1168, 1.0
        %v1233 = vadd.f32 %v1169, 1.0
        %v1234 = vadd.f32 %v1170, 1.0
        %v1235 = vadd.f32 %v1171, 1.0
        %v1236 = vadd.f32 %v1172, 1.0
        %v1237 = vadd.f32 %v1173, 1.0
        %v1238 = vadd.f32 %v1174, 1.0
        %v1239 = vadd.f32 %v1175, 1.0
        %v1240 = vadd.f32 %v1176, 1.0
        %v1241 = vadd.f32 %v1177, 1.0
        %v1242 = vadd.f32 %v1178, 1.0
        %v1243 = vadd.f32 %v1179, 1.0
        %v1244 = vadd.f32 %v1180, 1.0
        %v1245 = vmul.f32 %v1181, 0.5
        %v1246 = vmul.f32 %v1182, 0.5
        %v1247 = vmul.f32 %v1183, 0.5
        %v1248 = vmul.f32 %v1184, 0.5
        %v1249 = vmul.f32 %v1185, 0.5
        %v1250 = vmul.f32 %v1186, 0.5
        %v1251 = vmul.f32 %v1187, 0.5
        %v1252 = vmul.f32 %v1188, 0.5
        %v1253 = vmul.f32 %v1189, 0.5
        %v1254 = vmul.f32 %v1190, 0.5
        %v1255 = vmul.f32 %v1191, 0.5
        %v1256 = vmul.f32 %v1192, 0.5
        %v1257 = vmul.f32 %v1193, 0.5
        %v1258 = vmul.f32 %v1194, 0.5
        %v1259 = vmul.f32 %v1195, 0.5
        %v1260 = vmul.f32 %v1196, 0.5
        %v1261 = vmul.f32 %v1197, 0.5
        %v1262 = vmul.f32 %v1198, 0.5
        %v1263 = vmul.f32 %v1199, 0.5
        %v1264 = vmul.f32 %v1200, 0.5
        %v1265 = vmul.f32 %v1201, 0.5
        %v1266 = vmul.f32 %v1202, 0.5
        %v1267 = vmul.f32 %v1203, 0.5
        %v1268 = vmul.f32 %v1204, 0.5
        %v1269 = vmul.f32 %v1205, 0.5
        %v1270 = vmul.f32 %v1206, 0.5
        %v1271 = vmul.f32 %v1207, 0.5
        %v1272 = vmul.f32 %v1208, 0.5
        %v1273 = vmul.f32 %v1209, 0.5
        %v1274 = vmul.f32 %v1210, 0.5
        %v1275 = vmul.f32 %v1211, 0.5
        %v1276 = vmul.f32 %v1212, 0.5
        %v1277 = vmul.f32 %v1213, 0.5
        %v1278 = vmul.f32 %v1214, 0.5
        %v1279 = vmul.f32 %v1215, 0.5
        %v1280 = vmul.f32 %v1216, 0.5
        %v1281 = vmul.f32 %v1217, 0.5
        %v1282 = vmul.f32 %v1218, 0.5
        %v1283 = vmul.f32 %v1219, 0.5
        %v1284 = vmul.f32 %v1220, 0.5
        %v1285 = vmul.f32 %v1221, 0.5
        %v1286 = vmul.f32 %v1222, 0.5
        %v1287 = vmul.f32 %v1223, 0.5
        %v1288 = vmul.f32 %v1224, 0.5
        %v1289 = vmul.f32 %v1225, 0.5
        %v1290 = vmul.f32 %v1226, 0.5
        %v1291 = vmul.f32 %v1227, 0.5
        %v1292 = vmul.f32 %v1228, 0.5
        %v1293 = vmul.f32 %v1229, 0.5
        %v1294 = vmul.f32 %v1230, 0.5
        %v1295 = vmul.f32 %v1231, 0.5
        %v1296 = vmul.f32 %v1232, 0.5
        %v1297 = vmul.f32 %v1233, 0.5
        %v1298 = vmul.f32 %v1234, 0.5
        %v1299 = vmul.f32 %v1235, 0.5
        %v1300 = vmul.f32 %v1236, 0.5
        %v1301 = vmul.f32 %v1237, 0.5
        %v1302 = vmul.f32 %v1238, 0.5
        %v1303 = vmul.f32 %v1239, 0.5
        %v1304 = vmul.f32 %v1240, 0.5
        %v1305 = vmul.f32 %v1241, 0.5
        %v1306 = vmul.f32 %v1242, 0.5
        %v1307 = vmul.f32 %v1243, 0.5
        %v1308 = vmul.f32 %v1244, 0.5
        %v1309 = vmul.f32 %v989, %v1245
        %v1310 = vmul.f32 %v990, %v1246
        %v1311 = vmul.f32 %v991, %v1247
        %v1312 = vmul.f32 %v992, %v1248
        %v1313 = vmul.f32 %v993, %v1249
        %v1314 = vmul.f32 %v994, %v1250
        %v1315 = vmul.f32 %v995, %v1251
        %v1316 = vmul.f32 %v996, %v1252
        %v1317 = vmul.f32 %v997, %v1253
        %v1318 = vmul.f32 %v998, %v1254
        %v1319 = vmul.f32 %v999, %v1255
        %v1320 = vmul.f32 %v1000, %v1256
        %v1321 = vmul.f32 %v1001, %v1257
        %v1322 = vmul.f32 %v1002, %v1258
        %v1323 = vmul.f32 %v1003, %v1259
        %v1324 = vmul.f32 %v1004, %v1260
        %v1325 = vmul.f32 %v1005, %v1261
        %v1326 = vmul.f32 %v1006, %v1262
        %v1327 = vmul.f32 %v1007, %v1263
        %v1328 = vmul.f32 %v1008, %v1264
        %v1329 = vmul.f32 %v1009, %v1265
        %v1330 = vmul.f32 %v1010, %v1266
        %v1331 = vmul.f32 %v1011, %v1267
        %v1332 = vmul.f32 %v1012, %v1268
        %v1333 = vmul.f32 %v1013, %v1269
        %v1334 = vmul.f32 %v1014, %v1270
        %v1335 = vmul.f32 %v1015, %v1271
        %v1336 = vmul.f32 %v1016, %v1272
        %v1337 = vmul.f32 %v1017, %v1273
        %v1338 = vmul.f32 %v1018, %v1274
        %v1339 = vmul.f32 %v1019, %v1275
        %v1340 = vmul.f32 %v1020, %v1276
        %v1341 = vmul.f32 %v1021, %v1277
        %v1342 = vmul.f32 %v1022, %v1278
        %v1343 = vmul.f32 %v1023, %v1279
        %v1344 = vmul.f32 %v1024, %v1280
        %v1345 = vmul.f32 %v1025, %v1281
        %v1346 = vmul.f32 %v1026, %v1282
        %v1347 = vmul.f32 %v1027, %v1283
        %v1348 = vmul.f32 %v1028, %v1284
        %v1349 = vmul.f32 %v1029, %v1285
        %v1350 = vmul.f32 %v1030, %v1286
        %v1351 = vmul.f32 %v1031, %v1287
        %v1352 = vmul.f32 %v1032, %v1288
        %v1353 = vmul.f32 %v1033, %v1289
        %v1354 = vmul.f32 %v1034, %v1290
        %v1355 = vmul.f32 %v1035, %v1291
        %v1356 = vmul.f32 %v1036, %v1292
        %v1357 = vmul.f32 %v1037, %v1293
        %v1358 = vmul.f32 %v1038, %v1294
        %v1359 = vmul.f32 %v1039, %v1295
        %v1360 = vmul.f32 %v1040, %v1296
        %v1361 = vmul.f32 %v1041, %v1297
        %v1362 = vmul.f32 %v1042, %v1298
        %v1363 = vmul.f32 %v1043, %v1299
        %v1364 = vmul.f32 %v1044, %v1300
        %v1365 = vmul.f32 %v1045, %v1301
        %v1366 = vmul.f32 %v1046, %v1302
        %v1367 = vmul.f32 %v1047, %v1303
        %v1368 = vmul.f32 %v1048, %v1304
        %v1369 = vmul.f32 %v1049, %v1305
        %v1370 = vmul.f32 %v1050, %v1306
        %v1371 = vmul.f32 %v1051, %v1307
        %v1372 = vmul.f32 %v1052, %v1308
        %v1373 = vlaneseq
        %v1374 = vshrl.u32 %v1373, 7
        %v1375 = vadd.s32 %v1374, 8
        %v1376 = vadd.s32 %v1374, 16
        %v1377 = vadd.s32 %v1374, 24
        %v1378 = vadd.s32 %v1374, 32
        %v1379 = vadd.s32 %v1374, 40
        %v1380 = vadd.s32 %v1374, 48
        %v1381 = vadd.s32 %v1374, 56
        %v1382 = vadd.s32 %v1374, 64
        %v1383 = vadd.s32 %v1374, 72
        %v1384 = vadd.s32 %v1374, 80
        %v1385 = vadd.s32 %v1374, 88
        %v1386 = vadd.s32 %v1374, 96
        %v1387 = vadd.s32 %v1374, 104
        %v1388 = vadd.s32 %v1374, 112
        %v1389 = vadd.s32 %v1374, 120
        %s1390 = smul.u32 %s21, 128
        %v1391 = vstv %s1390
        %v1392 = vadd.s32 %v1374, %v1391
        %v1393 = vadd.s32 %v1375, %v1391
        %v1394 = vadd.s32 %v1376, %v1391
        %v1395 = vadd.s32 %v1377, %v1391
        %v1396 = vadd.s32 %v1378, %v1391
        %v1397 = vadd.s32 %v1379, %v1391
        %v1398 = vadd.s32 %v1380, %v1391
        %v1399 = vadd.s32 %v1381, %v1391
        %v1400 = vadd.s32 %v1382, %v1391
        %v1401 = vadd.s32 %v1383, %v1391
        %v1402 = vadd.s32 %v1384, %v1391
        %v1403 = vadd.s32 %v1385, %v1391
        %v1404 = vadd.s32 %v1386, %v1391
        %v1405 = vadd.s32 %v1387, %v1391
        %v1406 = vadd.s32 %v1388, %v1391
        %v1407 = vadd.s32 %v1389, %v1391
        %vm1408 = vcmp.lt.s32.totalorder %v1392, 300
        %vm1409 = vcmp.lt.s32.totalorder %v1393, 300
        %vm1410 = vcmp.lt.s32.totalorder %v1394, 300
        %vm1411 = vcmp.lt.s32.totalorder %v1395, 300
        %vm1412 = vcmp.lt.s32.totalorder %v1396, 300
        %vm1413 = vcmp.lt.s32.totalorder %v1397, 300
        %vm1414 = vcmp.lt.s32.totalorder %v1398, 300
        %vm1415 = vcmp.lt.s32.totalorder %v1399, 300
        %vm1416 = vcmp.lt.s32.totalorder %v1400, 300
        %vm1417 = vcmp.lt.s32.totalorder %v1401, 300
        %vm1418 = vcmp.lt.s32.totalorder %v1402, 300
        %vm1419 = vcmp.lt.s32.totalorder %v1403, 300
        %vm1420 = vcmp.lt.s32.totalorder %v1404, 300
        %vm1421 = vcmp.lt.s32.totalorder %v1405, 300
        %vm1422 = vcmp.lt.s32.totalorder %v1406, 300
        %vm1423 = vcmp.lt.s32.totalorder %v1407, 300
        %v1424 = vld [vmem:[%s3] ss:$2 sm:$0xf]
        %v1426 = vlaneseq
        %v1427 = vshrl.u32 %v1426, 7
        %v1428 = vsub.s32 0, %v1427
        %v1429 = vrot.slane %v1424, %v1428
        %v1430 = vlaneseq
        %v1431 = vshrl.u32 %v1430, 7
        %v1432 = vsub.s32 1, %v1431
        %v1433 = vrot.slane %v1424, %v1432
        %v1434 = vlaneseq
        %v1435 = vshrl.u32 %v1434, 7
        %v1436 = vsub.s32 2, %v1435
        %v1437 = vrot.slane %v1424, %v1436
        %v1438 = vlaneseq
        %v1439 = vshrl.u32 %v1438, 7
        %v1440 = vsub.s32 3, %v1439
        %v1441 = vrot.slane %v1424, %v1440
        %v1446 = vmul.f32 %v1309, %v1429
        %v1447 = vmul.f32 %v1310, %v1433
        %v1448 = vmul.f32 %v1311, %v1437
        %v1449 = vmul.f32 %v1312, %v1441
        %v1450 = vmul.f32 %v1313, %v1429
        %v1451 = vmul.f32 %v1314, %v1433
        %v1452 = vmul.f32 %v1315, %v1437
        %v1453 = vmul.f32 %v1316, %v1441
        %v1454 = vmul.f32 %v1317, %v1429
        %v1455 = vmul.f32 %v1318, %v1433
        %v1456 = vmul.f32 %v1319, %v1437
        %v1457 = vmul.f32 %v1320, %v1441
        %v1458 = vmul.f32 %v1321, %v1429
        %v1459 = vmul.f32 %v1322, %v1433
        %v1460 = vmul.f32 %v1323, %v1437
        %v1461 = vmul.f32 %v1324, %v1441
        %v1462 = vmul.f32 %v1325, %v1429
        %v1463 = vmul.f32 %v1326, %v1433
        %v1464 = vmul.f32 %v1327, %v1437
        %v1465 = vmul.f32 %v1328, %v1441
        %v1466 = vmul.f32 %v1329, %v1429
        %v1467 = vmul.f32 %v1330, %v1433
        %v1468 = vmul.f32 %v1331, %v1437
        %v1469 = vmul.f32 %v1332, %v1441
        %v1470 = vmul.f32 %v1333, %v1429
        %v1471 = vmul.f32 %v1334, %v1433
        %v1472 = vmul.f32 %v1335, %v1437
        %v1473 = vmul.f32 %v1336, %v1441
        %v1474 = vmul.f32 %v1337, %v1429
        %v1475 = vmul.f32 %v1338, %v1433
        %v1476 = vmul.f32 %v1339, %v1437
        %v1477 = vmul.f32 %v1340, %v1441
        %v1478 = vmul.f32 %v1341, %v1429
        %v1479 = vmul.f32 %v1342, %v1433
        %v1480 = vmul.f32 %v1343, %v1437
        %v1481 = vmul.f32 %v1344, %v1441
        %v1482 = vmul.f32 %v1345, %v1429
        %v1483 = vmul.f32 %v1346, %v1433
        %v1484 = vmul.f32 %v1347, %v1437
        %v1485 = vmul.f32 %v1348, %v1441
        %v1486 = vmul.f32 %v1349, %v1429
        %v1487 = vmul.f32 %v1350, %v1433
        %v1488 = vmul.f32 %v1351, %v1437
        %v1489 = vmul.f32 %v1352, %v1441
        %v1490 = vmul.f32 %v1353, %v1429
        %v1491 = vmul.f32 %v1354, %v1433
        %v1492 = vmul.f32 %v1355, %v1437
        %v1493 = vmul.f32 %v1356, %v1441
        %v1494 = vmul.f32 %v1357, %v1429
        %v1495 = vmul.f32 %v1358, %v1433
        %v1496 = vmul.f32 %v1359, %v1437
        %v1497 = vmul.f32 %v1360, %v1441
        %v1498 = vmul.f32 %v1361, %v1429
        %v1499 = vmul.f32 %v1362, %v1433
        %v1500 = vmul.f32 %v1363, %v1437
        %v1501 = vmul.f32 %v1364, %v1441
        %v1502 = vmul.f32 %v1365, %v1429
        %v1503 = vmul.f32 %v1366, %v1433
        %v1504 = vmul.f32 %v1367, %v1437
        %v1505 = vmul.f32 %v1368, %v1441
        %v1506 = vmul.f32 %v1369, %v1429
        %v1507 = vmul.f32 %v1370, %v1433
        %v1508 = vmul.f32 %v1371, %v1437
        %v1509 = vmul.f32 %v1372, %v1441
        %v1510 = vadd.f32 %v1446, %v1447
        %v1511 = vadd.f32 %v1510, %v1448
        %v1512 = vadd.f32 %v1511, %v1449
        %1513 = vadd.xlane.f32.xlu0 %v1512
        %v1514 = vpop.xlane.xlu0 %1513
        %v1515 = vadd.f32 %v1450, %v1451
        %v1516 = vadd.f32 %v1515, %v1452
        %v1517 = vadd.f32 %v1516, %v1453
        %1518 = vadd.xlane.f32.xlu0 %v1517
        %v1519 = vpop.xlane.xlu0 %1518
        %v1520 = vadd.f32 %v1454, %v1455
        %v1521 = vadd.f32 %v1520, %v1456
        %v1522 = vadd.f32 %v1521, %v1457
        %1523 = vadd.xlane.f32.xlu0 %v1522
        %v1524 = vpop.xlane.xlu0 %1523
        %v1525 = vadd.f32 %v1458, %v1459
        %v1526 = vadd.f32 %v1525, %v1460
        %v1527 = vadd.f32 %v1526, %v1461
        %1528 = vadd.xlane.f32.xlu0 %v1527
        %v1529 = vpop.xlane.xlu0 %1528
        %v1530 = vadd.f32 %v1462, %v1463
        %v1531 = vadd.f32 %v1530, %v1464
        %v1532 = vadd.f32 %v1531, %v1465
        %1533 = vadd.xlane.f32.xlu0 %v1532
        %v1534 = vpop.xlane.xlu0 %1533
        %v1535 = vadd.f32 %v1466, %v1467
        %v1536 = vadd.f32 %v1535, %v1468
        %v1537 = vadd.f32 %v1536, %v1469
        %1538 = vadd.xlane.f32.xlu0 %v1537
        %v1539 = vpop.xlane.xlu0 %1538
        %v1540 = vadd.f32 %v1470, %v1471
        %v1541 = vadd.f32 %v1540, %v1472
        %v1542 = vadd.f32 %v1541, %v1473
        %1543 = vadd.xlane.f32.xlu0 %v1542
        %v1544 = vpop.xlane.xlu0 %1543
        %v1545 = vadd.f32 %v1474, %v1475
        %v1546 = vadd.f32 %v1545, %v1476
        %v1547 = vadd.f32 %v1546, %v1477
        %1548 = vadd.xlane.f32.xlu0 %v1547
        %v1549 = vpop.xlane.xlu0 %1548
        %v1550 = vadd.f32 %v1478, %v1479
        %v1551 = vadd.f32 %v1550, %v1480
        %v1552 = vadd.f32 %v1551, %v1481
        %1553 = vadd.xlane.f32.xlu0 %v1552
        %v1554 = vpop.xlane.xlu0 %1553
        %v1555 = vadd.f32 %v1482, %v1483
        %v1556 = vadd.f32 %v1555, %v1484
        %v1557 = vadd.f32 %v1556, %v1485
        %1558 = vadd.xlane.f32.xlu0 %v1557
        %v1559 = vpop.xlane.xlu0 %1558
        %v1560 = vadd.f32 %v1486, %v1487
        %v1561 = vadd.f32 %v1560, %v1488
        %v1562 = vadd.f32 %v1561, %v1489
        %1563 = vadd.xlane.f32.xlu0 %v1562
        %v1564 = vpop.xlane.xlu0 %1563
        %v1565 = vadd.f32 %v1490, %v1491
        %v1566 = vadd.f32 %v1565, %v1492
        %v1567 = vadd.f32 %v1566, %v1493
        %1568 = vadd.xlane.f32.xlu0 %v1567
        %v1569 = vpop.xlane.xlu0 %1568
        %v1570 = vadd.f32 %v1494, %v1495
        %v1571 = vadd.f32 %v1570, %v1496
        %v1572 = vadd.f32 %v1571, %v1497
        %1573 = vadd.xlane.f32.xlu0 %v1572
        %v1574 = vpop.xlane.xlu0 %1573
        %v1575 = vadd.f32 %v1498, %v1499
        %v1576 = vadd.f32 %v1575, %v1500
        %v1577 = vadd.f32 %v1576, %v1501
        %1578 = vadd.xlane.f32.xlu0 %v1577
        %v1579 = vpop.xlane.xlu0 %1578
        %v1580 = vadd.f32 %v1502, %v1503
        %v1581 = vadd.f32 %v1580, %v1504
        %v1582 = vadd.f32 %v1581, %v1505
        %1583 = vadd.xlane.f32.xlu0 %v1582
        %v1584 = vpop.xlane.xlu0 %1583
        %v1585 = vadd.f32 %v1506, %v1507
        %v1586 = vadd.f32 %v1585, %v1508
        %v1587 = vadd.f32 %v1586, %v1509
        %1588 = vadd.xlane.f32.xlu0 %v1587
        %v1589 = vpop.xlane.xlu0 %1588
        %s1590 = sld [smem:[#allocation5]]
        %v1591 = vstv %s1590
        %v1592 = vadd.f32 %v1514, %v1591
        %v1593 = vadd.f32 %v1519, %v1591
        %v1594 = vadd.f32 %v1524, %v1591
        %v1595 = vadd.f32 %v1529, %v1591
        %v1596 = vadd.f32 %v1534, %v1591
        %v1597 = vadd.f32 %v1539, %v1591
        %v1598 = vadd.f32 %v1544, %v1591
        %v1599 = vadd.f32 %v1549, %v1591
        %v1600 = vadd.f32 %v1554, %v1591
        %v1601 = vadd.f32 %v1559, %v1591
        %v1602 = vadd.f32 %v1564, %v1591
        %v1603 = vadd.f32 %v1569, %v1591
        %v1604 = vadd.f32 %v1574, %v1591
        %v1605 = vadd.f32 %v1579, %v1591
        %v1606 = vadd.f32 %v1584, %v1591
        %v1607 = vadd.f32 %v1589, %v1591
        %v1608 = vsel %vm1408, %v1592, -1e+30
        %v1609 = vsel %vm1409, %v1593, -1e+30
        %v1610 = vsel %vm1410, %v1594, -1e+30
        %v1611 = vsel %vm1411, %v1595, -1e+30
        %v1612 = vsel %vm1412, %v1596, -1e+30
        %v1613 = vsel %vm1413, %v1597, -1e+30
        %v1614 = vsel %vm1414, %v1598, -1e+30
        %v1615 = vsel %vm1415, %v1599, -1e+30
        %v1616 = vsel %vm1416, %v1600, -1e+30
        %v1617 = vsel %vm1417, %v1601, -1e+30
        %v1618 = vsel %vm1418, %v1602, -1e+30
        %v1619 = vsel %vm1419, %v1603, -1e+30
        %v1620 = vsel %vm1420, %v1604, -1e+30
        %v1621 = vsel %vm1421, %v1605, -1e+30
        %v1622 = vsel %vm1422, %v1606, -1e+30
        %v1623 = vsel %vm1423, %v1607, -1e+30
        %v1624 = vld [vmem:[#allocation2] sm:$0x1]
        %v1625 = vmax.f32 %v1608, %v1612
        %v1626 = vmax.f32 %v1609, %v1613
        %v1627 = vmax.f32 %v1610, %v1614
        %v1628 = vmax.f32 %v1611, %v1615
        %v1629 = vmax.f32 %v1625, %v1616
        %v1630 = vmax.f32 %v1626, %v1617
        %v1631 = vmax.f32 %v1627, %v1618
        %v1632 = vmax.f32 %v1628, %v1619
        %v1633 = vmax.f32 %v1629, %v1620
        %v1634 = vmax.f32 %v1630, %v1621
        %v1635 = vmax.f32 %v1631, %v1622
        %v1636 = vmax.f32 %v1632, %v1623
        %v1637 = vmax.f32 %v1633, %v1634
        %v1638 = vmax.f32 %v1635, %v1636
        %v1639 = vmax.f32 %v1637, %v1638
        %v1640 = vrot.slane %v1639, 4
        %v1641 = vmax.f32 %v1639, %v1640
        %v1642 = vrot.slane %v1641, 2
        %v1643 = vmax.f32 %v1641, %v1642
        %v1644 = vrot.slane %v1643, 1
        %v1645 = vmax.f32 %v1643, %v1644
        %v1646 = vmax.f32 %v1624, %v1645
        %v1647 = vsub.f32 %v1624, %v1646
        %v1648 = vmul.f32 %v1647, 1.442695
        %v1649 = vpow.pop %v1648
        %v1650 = vlaneseq
        %v1651 = vshrl.u32 %v1650, 7
        %v1652 = vsub.s32 0, %v1651
        %v1653 = vrot.slane %v1646, %v1652
        %v1654 = vsub.f32 %v1608, %v1653
        %v1655 = vsub.f32 %v1609, %v1653
        %v1656 = vsub.f32 %v1610, %v1653
        %v1657 = vsub.f32 %v1611, %v1653
        %v1658 = vsub.f32 %v1612, %v1653
        %v1659 = vsub.f32 %v1613, %v1653
        %v1660 = vsub.f32 %v1614, %v1653
        %v1661 = vsub.f32 %v1615, %v1653
        %v1662 = vsub.f32 %v1616, %v1653
        %v1663 = vsub.f32 %v1617, %v1653
        %v1664 = vsub.f32 %v1618, %v1653
        %v1665 = vsub.f32 %v1619, %v1653
        %v1666 = vsub.f32 %v1620, %v1653
        %v1667 = vsub.f32 %v1621, %v1653
        %v1668 = vsub.f32 %v1622, %v1653
        %v1669 = vsub.f32 %v1623, %v1653
        %v1670 = vmul.f32 %v1654, 1.442695
        %v1671 = vpow.pop %v1670
        %v1672 = vmul.f32 %v1655, 1.442695
        %v1673 = vpow.pop %v1672
        %v1674 = vmul.f32 %v1656, 1.442695
        %v1675 = vpow.pop %v1674
        %v1676 = vmul.f32 %v1657, 1.442695
        %v1677 = vpow.pop %v1676
        %v1678 = vmul.f32 %v1658, 1.442695
        %v1679 = vpow.pop %v1678
        %v1680 = vmul.f32 %v1659, 1.442695
        %v1681 = vpow.pop %v1680
        %v1682 = vmul.f32 %v1660, 1.442695
        %v1683 = vpow.pop %v1682
        %v1684 = vmul.f32 %v1661, 1.442695
        %v1685 = vpow.pop %v1684
        %v1686 = vmul.f32 %v1662, 1.442695
        %v1687 = vpow.pop %v1686
        %v1688 = vmul.f32 %v1663, 1.442695
        %v1689 = vpow.pop %v1688
        %v1690 = vmul.f32 %v1664, 1.442695
        %v1691 = vpow.pop %v1690
        %v1692 = vmul.f32 %v1665, 1.442695
        %v1693 = vpow.pop %v1692
        %v1694 = vmul.f32 %v1666, 1.442695
        %v1695 = vpow.pop %v1694
        %v1696 = vmul.f32 %v1667, 1.442695
        %v1697 = vpow.pop %v1696
        %v1698 = vmul.f32 %v1668, 1.442695
        %v1699 = vpow.pop %v1698
        %v1700 = vmul.f32 %v1669, 1.442695
        %v1701 = vpow.pop %v1700
        %v1702 = vld [vmem:[#allocation3] sm:$0x1]
        %v1703 = vmul.f32 %v1649, %v1702
        %vm1704 = vcmask 7168
        %v1705 = vsel %vm1704, %v1671, 0.0
        %v1706 = vsel %vm1704, %v1673, 0.0
        %v1707 = vadd.f32 %v1705, %v1706
        %v1708 = vsel %vm1704, %v1675, 0.0
        %v1709 = vadd.f32 %v1707, %v1708
        %v1710 = vsel %vm1704, %v1677, 0.0
        %v1711 = vadd.f32 %v1709, %v1710
        %v1712 = vsel %vm1704, %v1679, 0.0
        %v1713 = vadd.f32 %v1711, %v1712
        %v1714 = vsel %vm1704, %v1681, 0.0
        %v1715 = vadd.f32 %v1713, %v1714
        %v1716 = vsel %vm1704, %v1683, 0.0
        %v1717 = vadd.f32 %v1715, %v1716
        %v1718 = vsel %vm1704, %v1685, 0.0
        %v1719 = vadd.f32 %v1717, %v1718
        %v1720 = vsel %vm1704, %v1687, 0.0
        %v1721 = vadd.f32 %v1719, %v1720
        %v1722 = vsel %vm1704, %v1689, 0.0
        %v1723 = vadd.f32 %v1721, %v1722
        %v1724 = vsel %vm1704, %v1691, 0.0
        %v1725 = vadd.f32 %v1723, %v1724
        %v1726 = vsel %vm1704, %v1693, 0.0
        %v1727 = vadd.f32 %v1725, %v1726
        %v1728 = vsel %vm1704, %v1695, 0.0
        %v1729 = vadd.f32 %v1727, %v1728
        %v1730 = vsel %vm1704, %v1697, 0.0
        %v1731 = vadd.f32 %v1729, %v1730
        %v1732 = vsel %vm1704, %v1699, 0.0
        %v1733 = vadd.f32 %v1731, %v1732
        %v1734 = vsel %vm1704, %v1701, 0.0
        %v1735 = vadd.f32 %v1733, %v1734
        %v1736 = vrot.slane %v1735, 4
        %v1737 = vadd.f32 %v1735, %v1736
        %v1738 = vrot.slane %v1737, 2
        %v1739 = vadd.f32 %v1737, %v1738
        %v1740 = vrot.slane %v1739, 1
        %v1741 = vadd.f32 %v1739, %v1740
        %v1742 = vadd.f32 %v1703, %v1741
        %vm1743 = vcmask 0
        %1744 = vst.msk [vmem:[#allocation3] sm:$0x1] %vm1743, %v1742
        %v1745 = vpack.c.bf16 %v1673, %v1671
        %v1746 = vpack.c.bf16 %v1677, %v1675
        %v1747 = vpack.c.bf16 %v1681, %v1679
        %v1748 = vpack.c.bf16 %v1685, %v1683
        %v1749 = vpack.c.bf16 %v1689, %v1687
        %v1750 = vpack.c.bf16 %v1693, %v1691
        %v1751 = vpack.c.bf16 %v1697, %v1695
        %v1752 = vpack.c.bf16 %v1701, %v1699
        %1753 = vxpose.xlu0.c.b16.start [1/8] %v1745, 128
        %1754 = vxpose.xlu0.c.b16.cont [2/8] %v1746, 128
        %1755 = vxpose.xlu0.c.b16.cont [3/8] %v1747, 128
        %1756 = vxpose.xlu0.c.b16.cont [4/8] %v1748, 128
        %1757 = vxpose.xlu0.c.b16.cont [5/8] %v1749, 128
        %1758 = vxpose.xlu0.c.b16.cont [6/8] %v1750, 128
        %1759 = vxpose.xlu0.c.b16.cont [7/8] %v1751, 128
        %1760 = vxpose.xlu0.c.b16.end [8/8] %v1752, 128
        %v1761 = vpop.trf.xlu0
        %v1762 = vpop.trf.xlu0
        %v1763 = vpop.trf.xlu0
        %v1764 = vpop.trf.xlu0
        %v1765 = vpop.trf.xlu0
        %v1766 = vpop.trf.xlu0
        %v1767 = vpop.trf.xlu0
        %v1768 = vpop.trf.xlu0
        %1777 = vmatprep.subr.bf16.mxu0 0
        %1778 = vmatpush1.bf16.msra.mxu0 %v424
        %1779 = vmatprep.subr.bf16.mxu0 0
        %1780 = vmatpush1.bf16.msra.mxu0 %v425
        %1781 = vmatprep.subr.bf16.mxu0 0
        %1782 = vmatpush1.bf16.msra.mxu0 %v426
        %1783 = vmatprep.subr.bf16.mxu0 0
        %1784 = vmatpush1.bf16.msra.mxu0 %v427
        %1785 = vmatprep.subr.bf16.mxu0 0
        %1786 = vmatpush1.bf16.msra.mxu0 %v428
        %1787 = vmatprep.subr.bf16.mxu0 0
        %1788 = vmatpush1.bf16.msra.mxu0 %v429
        %1789 = vmatprep.subr.bf16.mxu0 0
        %1790 = vmatpush1.bf16.msra.mxu0 %v430
        %1791 = vmatprep.subr.bf16.mxu0 0
        %1792 = vmatpush1.bf16.msra.mxu0 %v431
        %1793 = vmatprep.subr.bf16.mxu0 0
        %1794 = vmatpush1.bf16.msra.mxu0 0
        %1795 = vmatprep.subr.bf16.mxu0 0
        %1796 = vmatpush1.bf16.msra.mxu0 0
        %1797 = vmatprep.subr.bf16.mxu0 0
        %1798 = vmatpush1.bf16.msra.mxu0 0
        %1799 = vmatprep.subr.bf16.mxu0 0
        %1800 = vmatpush1.bf16.msra.mxu0 0
        %1801 = vmatprep.subr.bf16.mxu0 0
        %1802 = vmatpush1.bf16.msra.mxu0 0
        %1803 = vmatprep.subr.bf16.mxu0 0
        %1804 = vmatpush1.bf16.msra.mxu0 0
        %1805 = vmatprep.subr.bf16.mxu0 0
        %1806 = vmatpush1.bf16.msra.mxu0 0
        %1807 = vmatprep.subr.bf16.mxu0 0
        %1808 = vmatpush1.bf16.msra.mxu0 0
        %1809 = vmatprep.mubr.bf16.mxu0 0
        %1810 = vmatmul.mubr.bf16.gmra.mrb[0].mxu0 %v1761
        %v1811 = vpop.f32.mrb[0].mxu0
        %v1812 = vadd.f32 0.0, %v1811
        %v1813 = vpop.f32.mrb[0].mxu0
        %v1814 = vpop.f32.mrb[0].mxu0
        %v1815 = vpop.f32.mrb[0].mxu0
        %1816 = vdwg.mxu0
        %v1817 = vld [vmem:[#allocation4] sm:$0x1]
        %1819 = vset.pattern.permute.xlu0 0
        %1820 = vperm.xlu0 %1819, %v1649
        %v1821 = vpop.permute.xlu0 %1820
        %v1823 = vmul.f32 %v1821, %v1817
        %v1824 = vadd.f32 %v1823, %v1812
        %vm1825 = vcmask 253952
        %1826 = vst.msk [vmem:[#allocation4] sm:$0x1] %vm1825, %v1824
        %1827 = vst.msk [vmem:[#allocation2] sm:$0x1] %vm1743, %v1646
        %s1828 = scalar_lea.vmem %s3, 1
        %v1829 = vld [vmem:[%s1828] ss:$2 sm:$0xf]
        %v1831 = vlaneseq
        %v1832 = vshrl.u32 %v1831, 7
        %v1833 = vsub.s32 0, %v1832
        %v1834 = vrot.slane %v1829, %v1833
        %v1835 = vlaneseq
        %v1836 = vshrl.u32 %v1835, 7
        %v1837 = vsub.s32 1, %v1836
        %v1838 = vrot.slane %v1829, %v1837
        %v1839 = vlaneseq
        %v1840 = vshrl.u32 %v1839, 7
        %v1841 = vsub.s32 2, %v1840
        %v1842 = vrot.slane %v1829, %v1841
        %v1843 = vlaneseq
        %v1844 = vshrl.u32 %v1843, 7
        %v1845 = vsub.s32 3, %v1844
        %v1846 = vrot.slane %v1829, %v1845
        %v1851 = vmul.f32 %v1309, %v1834
        %v1852 = vmul.f32 %v1310, %v1838
        %v1853 = vmul.f32 %v1311, %v1842
        %v1854 = vmul.f32 %v1312, %v1846
        %v1855 = vmul.f32 %v1313, %v1834
        %v1856 = vmul.f32 %v1314, %v1838
        %v1857 = vmul.f32 %v1315, %v1842
        %v1858 = vmul.f32 %v1316, %v1846
        %v1859 = vmul.f32 %v1317, %v1834
        %v1860 = vmul.f32 %v1318, %v1838
        %v1861 = vmul.f32 %v1319, %v1842
        %v1862 = vmul.f32 %v1320, %v1846
        %v1863 = vmul.f32 %v1321, %v1834
        %v1864 = vmul.f32 %v1322, %v1838
        %v1865 = vmul.f32 %v1323, %v1842
        %v1866 = vmul.f32 %v1324, %v1846
        %v1867 = vmul.f32 %v1325, %v1834
        %v1868 = vmul.f32 %v1326, %v1838
        %v1869 = vmul.f32 %v1327, %v1842
        %v1870 = vmul.f32 %v1328, %v1846
        %v1871 = vmul.f32 %v1329, %v1834
        %v1872 = vmul.f32 %v1330, %v1838
        %v1873 = vmul.f32 %v1331, %v1842
        %v1874 = vmul.f32 %v1332, %v1846
        %v1875 = vmul.f32 %v1333, %v1834
        %v1876 = vmul.f32 %v1334, %v1838
        %v1877 = vmul.f32 %v1335, %v1842
        %v1878 = vmul.f32 %v1336, %v1846
        %v1879 = vmul.f32 %v1337, %v1834
        %v1880 = vmul.f32 %v1338, %v1838
        %v1881 = vmul.f32 %v1339, %v1842
        %v1882 = vmul.f32 %v1340, %v1846
        %v1883 = vmul.f32 %v1341, %v1834
        %v1884 = vmul.f32 %v1342, %v1838
        %v1885 = vmul.f32 %v1343, %v1842
        %v1886 = vmul.f32 %v1344, %v1846
        %v1887 = vmul.f32 %v1345, %v1834
        %v1888 = vmul.f32 %v1346, %v1838
        %v1889 = vmul.f32 %v1347, %v1842
        %v1890 = vmul.f32 %v1348, %v1846
        %v1891 = vmul.f32 %v1349, %v1834
        %v1892 = vmul.f32 %v1350, %v1838
        %v1893 = vmul.f32 %v1351, %v1842
        %v1894 = vmul.f32 %v1352, %v1846
        %v1895 = vmul.f32 %v1353, %v1834
        %v1896 = vmul.f32 %v1354, %v1838
        %v1897 = vmul.f32 %v1355, %v1842
        %v1898 = vmul.f32 %v1356, %v1846
        %v1899 = vmul.f32 %v1357, %v1834
        %v1900 = vmul.f32 %v1358, %v1838
        %v1901 = vmul.f32 %v1359, %v1842
        %v1902 = vmul.f32 %v1360, %v1846
        %v1903 = vmul.f32 %v1361, %v1834
        %v1904 = vmul.f32 %v1362, %v1838
        %v1905 = vmul.f32 %v1363, %v1842
        %v1906 = vmul.f32 %v1364, %v1846
        %v1907 = vmul.f32 %v1365, %v1834
        %v1908 = vmul.f32 %v1366, %v1838
        %v1909 = vmul.f32 %v1367, %v1842
        %v1910 = vmul.f32 %v1368, %v1846
        %v1911 = vmul.f32 %v1369, %v1834
        %v1912 = vmul.f32 %v1370, %v1838
        %v1913 = vmul.f32 %v1371, %v1842
        %v1914 = vmul.f32 %v1372, %v1846
        %v1915 = vadd.f32 %v1851, %v1852
        %v1916 = vadd.f32 %v1915, %v1853
        %v1917 = vadd.f32 %v1916, %v1854
        %1918 = vadd.xlane.f32.xlu0 %v1917
        %v1919 = vpop.xlane.xlu0 %1918
        %v1920 = vadd.f32 %v1855, %v1856
        %v1921 = vadd.f32 %v1920, %v1857
        %v1922 = vadd.f32 %v1921, %v1858
        %1923 = vadd.xlane.f32.xlu0 %v1922
        %v1924 = vpop.xlane.xlu0 %1923
        %v1925 = vadd.f32 %v1859, %v1860
        %v1926 = vadd.f32 %v1925, %v1861
        %v1927 = vadd.f32 %v1926, %v1862
        %1928 = vadd.xlane.f32.xlu0 %v1927
        %v1929 = vpop.xlane.xlu0 %1928
        %v1930 = vadd.f32 %v1863, %v1864
        %v1931 = vadd.f32 %v1930, %v1865
        %v1932 = vadd.f32 %v1931, %v1866
        %1933 = vadd.xlane.f32.xlu0 %v1932
        %v1934 = vpop.xlane.xlu0 %1933
        %v1935 = vadd.f32 %v1867, %v1868
        %v1936 = vadd.f32 %v1935, %v1869
        %v1937 = vadd.f32 %v1936, %v1870
        %1938 = vadd.xlane.f32.xlu0 %v1937
        %v1939 = vpop.xlane.xlu0 %1938
        %v1940 = vadd.f32 %v1871, %v1872
        %v1941 = vadd.f32 %v1940, %v1873
        %v1942 = vadd.f32 %v1941, %v1874
        %1943 = vadd.xlane.f32.xlu0 %v1942
        %v1944 = vpop.xlane.xlu0 %1943
        %v1945 = vadd.f32 %v1875, %v1876
        %v1946 = vadd.f32 %v1945, %v1877
        %v1947 = vadd.f32 %v1946, %v1878
        %1948 = vadd.xlane.f32.xlu0 %v1947
        %v1949 = vpop.xlane.xlu0 %1948
        %v1950 = vadd.f32 %v1879, %v1880
        %v1951 = vadd.f32 %v1950, %v1881
        %v1952 = vadd.f32 %v1951, %v1882
        %1953 = vadd.xlane.f32.xlu0 %v1952
        %v1954 = vpop.xlane.xlu0 %1953
        %v1955 = vadd.f32 %v1883, %v1884
        %v1956 = vadd.f32 %v1955, %v1885
        %v1957 = vadd.f32 %v1956, %v1886
        %1958 = vadd.xlane.f32.xlu0 %v1957
        %v1959 = vpop.xlane.xlu0 %1958
        %v1960 = vadd.f32 %v1887, %v1888
        %v1961 = vadd.f32 %v1960, %v1889
        %v1962 = vadd.f32 %v1961, %v1890
        %1963 = vadd.xlane.f32.xlu0 %v1962
        %v1964 = vpop.xlane.xlu0 %1963
        %v1965 = vadd.f32 %v1891, %v1892
        %v1966 = vadd.f32 %v1965, %v1893
        %v1967 = vadd.f32 %v1966, %v1894
        %1968 = vadd.xlane.f32.xlu0 %v1967
        %v1969 = vpop.xlane.xlu0 %1968
        %v1970 = vadd.f32 %v1895, %v1896
        %v1971 = vadd.f32 %v1970, %v1897
        %v1972 = vadd.f32 %v1971, %v1898
        %1973 = vadd.xlane.f32.xlu0 %v1972
        %v1974 = vpop.xlane.xlu0 %1973
        %v1975 = vadd.f32 %v1899, %v1900
        %v1976 = vadd.f32 %v1975, %v1901
        %v1977 = vadd.f32 %v1976, %v1902
        %1978 = vadd.xlane.f32.xlu0 %v1977
        %v1979 = vpop.xlane.xlu0 %1978
        %v1980 = vadd.f32 %v1903, %v1904
        %v1981 = vadd.f32 %v1980, %v1905
        %v1982 = vadd.f32 %v1981, %v1906
        %1983 = vadd.xlane.f32.xlu0 %v1982
        %v1984 = vpop.xlane.xlu0 %1983
        %v1985 = vadd.f32 %v1907, %v1908
        %v1986 = vadd.f32 %v1985, %v1909
        %v1987 = vadd.f32 %v1986, %v1910
        %1988 = vadd.xlane.f32.xlu0 %v1987
        %v1989 = vpop.xlane.xlu0 %1988
        %v1990 = vadd.f32 %v1911, %v1912
        %v1991 = vadd.f32 %v1990, %v1913
        %v1992 = vadd.f32 %v1991, %v1914
        %1993 = vadd.xlane.f32.xlu0 %v1992
        %v1994 = vpop.xlane.xlu0 %1993
        %s1995 = sld [smem:[#allocation5 + $0x1]]
        %v1996 = vstv %s1995
        %v1997 = vadd.f32 %v1919, %v1996
        %v1998 = vadd.f32 %v1924, %v1996
        %v1999 = vadd.f32 %v1929, %v1996
        %v2000 = vadd.f32 %v1934, %v1996
        %v2001 = vadd.f32 %v1939, %v1996
        %v2002 = vadd.f32 %v1944, %v1996
        %v2003 = vadd.f32 %v1949, %v1996
        %v2004 = vadd.f32 %v1954, %v1996
        %v2005 = vadd.f32 %v1959, %v1996
        %v2006 = vadd.f32 %v1964, %v1996
        %v2007 = vadd.f32 %v1969, %v1996
        %v2008 = vadd.f32 %v1974, %v1996
        %v2009 = vadd.f32 %v1979, %v1996
        %v2010 = vadd.f32 %v1984, %v1996
        %v2011 = vadd.f32 %v1989, %v1996
        %v2012 = vadd.f32 %v1994, %v1996
        %v2013 = vsel %vm1408, %v1997, -1e+30
        %v2014 = vsel %vm1409, %v1998, -1e+30
        %v2015 = vsel %vm1410, %v1999, -1e+30
        %v2016 = vsel %vm1411, %v2000, -1e+30
        %v2017 = vsel %vm1412, %v2001, -1e+30
        %v2018 = vsel %vm1413, %v2002, -1e+30
        %v2019 = vsel %vm1414, %v2003, -1e+30
        %v2020 = vsel %vm1415, %v2004, -1e+30
        %v2021 = vsel %vm1416, %v2005, -1e+30
        %v2022 = vsel %vm1417, %v2006, -1e+30
        %v2023 = vsel %vm1418, %v2007, -1e+30
        %v2024 = vsel %vm1419, %v2008, -1e+30
        %v2025 = vsel %vm1420, %v2009, -1e+30
        %v2026 = vsel %vm1421, %v2010, -1e+30
        %v2027 = vsel %vm1422, %v2011, -1e+30
        %v2028 = vsel %vm1423, %v2012, -1e+30
        %v2029 = vld [vmem:[#allocation2 + $0x1] sm:$0x1]
        %v2030 = vmax.f32 %v2013, %v2017
        %v2031 = vmax.f32 %v2014, %v2018
        %v2032 = vmax.f32 %v2015, %v2019
        %v2033 = vmax.f32 %v2016, %v2020
        %v2034 = vmax.f32 %v2030, %v2021
        %v2035 = vmax.f32 %v2031, %v2022
        %v2036 = vmax.f32 %v2032, %v2023
        %v2037 = vmax.f32 %v2033, %v2024
        %v2038 = vmax.f32 %v2034, %v2025
        %v2039 = vmax.f32 %v2035, %v2026
        %v2040 = vmax.f32 %v2036, %v2027
        %v2041 = vmax.f32 %v2037, %v2028
        %v2042 = vmax.f32 %v2038, %v2039
        %v2043 = vmax.f32 %v2040, %v2041
        %v2044 = vmax.f32 %v2042, %v2043
        %v2045 = vrot.slane %v2044, 4
        %v2046 = vmax.f32 %v2044, %v2045
        %v2047 = vrot.slane %v2046, 2
        %v2048 = vmax.f32 %v2046, %v2047
        %v2049 = vrot.slane %v2048, 1
        %v2050 = vmax.f32 %v2048, %v2049
        %v2051 = vmax.f32 %v2029, %v2050
        %v2052 = vsub.f32 %v2029, %v2051
        %v2053 = vmul.f32 %v2052, 1.442695
        %v2054 = vpow.pop %v2053
        %v2055 = vlaneseq
        %v2056 = vshrl.u32 %v2055, 7
        %v2057 = vsub.s32 0, %v2056
        %v2058 = vrot.slane %v2051, %v2057
        %v2059 = vsub.f32 %v2013, %v2058
        %v2060 = vsub.f32 %v2014, %v2058
        %v2061 = vsub.f32 %v2015, %v2058
        %v2062 = vsub.f32 %v2016, %v2058
        %v2063 = vsub.f32 %v2017, %v2058
        %v2064 = vsub.f32 %v2018, %v2058
        %v2065 = vsub.f32 %v2019, %v2058
        %v2066 = vsub.f32 %v2020, %v2058
        %v2067 = vsub.f32 %v2021, %v2058
        %v2068 = vsub.f32 %v2022, %v2058
        %v2069 = vsub.f32 %v2023, %v2058
        %v2070 = vsub.f32 %v2024, %v2058
        %v2071 = vsub.f32 %v2025, %v2058
        %v2072 = vsub.f32 %v2026, %v2058
        %v2073 = vsub.f32 %v2027, %v2058
        %v2074 = vsub.f32 %v2028, %v2058
        %v2075 = vmul.f32 %v2059, 1.442695
        %v2076 = vpow.pop %v2075
        %v2077 = vmul.f32 %v2060, 1.442695
        %v2078 = vpow.pop %v2077
        %v2079 = vmul.f32 %v2061, 1.442695
        %v2080 = vpow.pop %v2079
        %v2081 = vmul.f32 %v2062, 1.442695
        %v2082 = vpow.pop %v2081
        %v2083 = vmul.f32 %v2063, 1.442695
        %v2084 = vpow.pop %v2083
        %v2085 = vmul.f32 %v2064, 1.442695
        %v2086 = vpow.pop %v2085
        %v2087 = vmul.f32 %v2065, 1.442695
        %v2088 = vpow.pop %v2087
        %v2089 = vmul.f32 %v2066, 1.442695
        %v2090 = vpow.pop %v2089
        %v2091 = vmul.f32 %v2067, 1.442695
        %v2092 = vpow.pop %v2091
        %v2093 = vmul.f32 %v2068, 1.442695
        %v2094 = vpow.pop %v2093
        %v2095 = vmul.f32 %v2069, 1.442695
        %v2096 = vpow.pop %v2095
        %v2097 = vmul.f32 %v2070, 1.442695
        %v2098 = vpow.pop %v2097
        %v2099 = vmul.f32 %v2071, 1.442695
        %v2100 = vpow.pop %v2099
        %v2101 = vmul.f32 %v2072, 1.442695
        %v2102 = vpow.pop %v2101
        %v2103 = vmul.f32 %v2073, 1.442695
        %v2104 = vpow.pop %v2103
        %v2105 = vmul.f32 %v2074, 1.442695
        %v2106 = vpow.pop %v2105
        %v2107 = vld [vmem:[#allocation3 + $0x1] sm:$0x1]
        %v2108 = vmul.f32 %v2054, %v2107
        %v2109 = vsel %vm1704, %v2076, 0.0
        %v2110 = vsel %vm1704, %v2078, 0.0
        %v2111 = vadd.f32 %v2109, %v2110
        %v2112 = vsel %vm1704, %v2080, 0.0
        %v2113 = vadd.f32 %v2111, %v2112
        %v2114 = vsel %vm1704, %v2082, 0.0
        %v2115 = vadd.f32 %v2113, %v2114
        %v2116 = vsel %vm1704, %v2084, 0.0
        %v2117 = vadd.f32 %v2115, %v2116
        %v2118 = vsel %vm1704, %v2086, 0.0
        %v2119 = vadd.f32 %v2117, %v2118
        %v2120 = vsel %vm1704, %v2088, 0.0
        %v2121 = vadd.f32 %v2119, %v2120
        %v2122 = vsel %vm1704, %v2090, 0.0
        %v2123 = vadd.f32 %v2121, %v2122
        %v2124 = vsel %vm1704, %v2092, 0.0
        %v2125 = vadd.f32 %v2123, %v2124
        %v2126 = vsel %vm1704, %v2094, 0.0
        %v2127 = vadd.f32 %v2125, %v2126
        %v2128 = vsel %vm1704, %v2096, 0.0
        %v2129 = vadd.f32 %v2127, %v2128
        %v2130 = vsel %vm1704, %v2098, 0.0
        %v2131 = vadd.f32 %v2129, %v2130
        %v2132 = vsel %vm1704, %v2100, 0.0
        %v2133 = vadd.f32 %v2131, %v2132
        %v2134 = vsel %vm1704, %v2102, 0.0
        %v2135 = vadd.f32 %v2133, %v2134
        %v2136 = vsel %vm1704, %v2104, 0.0
        %v2137 = vadd.f32 %v2135, %v2136
        %v2138 = vsel %vm1704, %v2106, 0.0
        %v2139 = vadd.f32 %v2137, %v2138
        %v2140 = vrot.slane %v2139, 4
        %v2141 = vadd.f32 %v2139, %v2140
        %v2142 = vrot.slane %v2141, 2
        %v2143 = vadd.f32 %v2141, %v2142
        %v2144 = vrot.slane %v2143, 1
        %v2145 = vadd.f32 %v2143, %v2144
        %v2146 = vadd.f32 %v2108, %v2145
        %2147 = vst.msk [vmem:[#allocation3 + $0x1] sm:$0x1] %vm1743, %v2146
        %v2148 = vpack.c.bf16 %v2078, %v2076
        %v2149 = vpack.c.bf16 %v2082, %v2080
        %v2150 = vpack.c.bf16 %v2086, %v2084
        %v2151 = vpack.c.bf16 %v2090, %v2088
        %v2152 = vpack.c.bf16 %v2094, %v2092
        %v2153 = vpack.c.bf16 %v2098, %v2096
        %v2154 = vpack.c.bf16 %v2102, %v2100
        %v2155 = vpack.c.bf16 %v2106, %v2104
        %2156 = vxpose.xlu0.c.b16.start [1/8] %v2148, 128
        %2157 = vxpose.xlu0.c.b16.cont [2/8] %v2149, 128
        %2158 = vxpose.xlu0.c.b16.cont [3/8] %v2150, 128
        %2159 = vxpose.xlu0.c.b16.cont [4/8] %v2151, 128
        %2160 = vxpose.xlu0.c.b16.cont [5/8] %v2152, 128
        %2161 = vxpose.xlu0.c.b16.cont [6/8] %v2153, 128
        %2162 = vxpose.xlu0.c.b16.cont [7/8] %v2154, 128
        %2163 = vxpose.xlu0.c.b16.end [8/8] %v2155, 128
        %v2164 = vpop.trf.xlu0
        %v2165 = vpop.trf.xlu0
        %v2166 = vpop.trf.xlu0
        %v2167 = vpop.trf.xlu0
        %v2168 = vpop.trf.xlu0
        %v2169 = vpop.trf.xlu0
        %v2170 = vpop.trf.xlu0
        %v2171 = vpop.trf.xlu0
        %2172 = vmatprep.subr.bf16.mxu0 0
        %2173 = vmatpush1.bf16.msra.mxu0 %v424
        %2174 = vmatprep.subr.bf16.mxu0 0
        %2175 = vmatpush1.bf16.msra.mxu0 %v425
        %2176 = vmatprep.subr.bf16.mxu0 0
        %2177 = vmatpush1.bf16.msra.mxu0 %v426
        %2178 = vmatprep.subr.bf16.mxu0 0
        %2179 = vmatpush1.bf16.msra.mxu0 %v427
        %2180 = vmatprep.subr.bf16.mxu0 0
        %2181 = vmatpush1.bf16.msra.mxu0 %v428
        %2182 = vmatprep.subr.bf16.mxu0 0
        %2183 = vmatpush1.bf16.msra.mxu0 %v429
        %2184 = vmatprep.subr.bf16.mxu0 0
        %2185 = vmatpush1.bf16.msra.mxu0 %v430
        %2186 = vmatprep.subr.bf16.mxu0 0
        %2187 = vmatpush1.bf16.msra.mxu0 %v431
        %2188 = vmatprep.subr.bf16.mxu0 0
        %2189 = vmatpush1.bf16.msra.mxu0 0
        %2190 = vmatprep.subr.bf16.mxu0 0
        %2191 = vmatpush1.bf16.msra.mxu0 0
        %2192 = vmatprep.subr.bf16.mxu0 0
        %2193 = vmatpush1.bf16.msra.mxu0 0
        %2194 = vmatprep.subr.bf16.mxu0 0
        %2195 = vmatpush1.bf16.msra.mxu0 0
        %2196 = vmatprep.subr.bf16.mxu0 0
        %2197 = vmatpush1.bf16.msra.mxu0 0
        %2198 = vmatprep.subr.bf16.mxu0 0
        %2199 = vmatpush1.bf16.msra.mxu0 0
        %2200 = vmatprep.subr.bf16.mxu0 0
        %2201 = vmatpush1.bf16.msra.mxu0 0
        %2202 = vmatprep.subr.bf16.mxu0 0
        %2203 = vmatpush1.bf16.msra.mxu0 0
        %2204 = vmatprep.mubr.bf16.mxu0 0
        %2205 = vmatmul.mubr.bf16.gmra.mrb[0].mxu0 %v2164
        %v2206 = vpop.f32.mrb[0].mxu0
        %v2207 = vadd.f32 0.0, %v2206
        %v2208 = vpop.f32.mrb[0].mxu0
        %v2209 = vpop.f32.mrb[0].mxu0
        %v2210 = vpop.f32.mrb[0].mxu0
        %2211 = vdwg.mxu0
        %v2212 = vld [vmem:[#allocation4 + $0x1] sm:$0x1]
        %2214 = vset.pattern.permute.xlu0 0
        %2215 = vperm.xlu0 %2214, %v2054
        %v2216 = vpop.permute.xlu0 %2215
        %v2218 = vmul.f32 %v2216, %v2212
        %v2219 = vadd.f32 %v2218, %v2207
        %2220 = vst.msk [vmem:[#allocation4 + $0x1] sm:$0x1] %vm1825, %v2219
        %2221 = vst.msk [vmem:[#allocation2 + $0x1] sm:$0x1] %vm1743, %v2051
        %p2222 = scmp.eq.s32.totalorder %s21, 2
        // Predicated region
        $region61: #{gated_attention_forward.1} parent=51 // pred_check
          %p2223 = pneg %p2222
        $region62: #{gated_attention_forward.1} parent=51 // pred_check_branch
          %2225 = sbr.rel (%p2223) target = $region64
        $region63: #{gated_attention_forward.1} parent=51 // pred_region
          %v2226 = vld [vmem:[#allocation3] sm:$0x3]
          %v2227 = vrcp.pop %v2226
          %v2228 = vld [vmem:[#allocation4] sm:$0x3]
          %2230 = vset.pattern.permute.xlu0 0
          %2231 = vperm.xlu0 %2230, %v2227
          %v2232 = vpop.permute.xlu0 %2231
          %v2234 = vmul.f32 %v2228, %v2232
          %v2235 = vld [vmem:[%s4] sm:$0x3]
          %v2236 = vmul.f32 %v2234, %v2235
          %vm2237 = vcmask 254976
          %v2238 = vsel %vm2237, %v2236, 0.0
          %2239 = vadd.xlane.f32.xlu0 %v2238
          %v2240 = vpop.xlane.xlu0 %2239
          %v2241 = vrot.slane %v2240, 4
          %v2242 = vadd.f32 %v2240, %v2241
          %v2243 = vrot.slane %v2242, 2
          %v2244 = vadd.f32 %v2242, %v2243
          %v2245 = vrot.slane %v2244, 1
          %v2246 = vadd.f32 %v2244, %v2245
          %s2247 = vtos %v2246
          %s2248 = sld [smem:[#allocation5 + $0x2]]
          %s2249 = sadd.f32 %s2247, %s2248
          %s2250 = sld [smem:[#allocation5 + $0x3]]
          %s2251 = smul.f32 %s2249, %s2250
          %v2252 = vld [vmem:[%s5] sm:$0x1]
          %v2253 = vstv %s2251
          %v2254 = vsub.f32 %v2252, %v2253
          %v2255 = vmul.f32 %v2254, 0.5
          %v2256 = vtanh.pop %v2255
          %v2257 = vadd.f32 %v2256, 1.0
          %v2258 = vmul.f32 %v2257, 0.5
          %v2259 = vld [vmem:[%s6] sm:$0x1]
          %v2260 = vsub.f32 %v2259, %v2253
          %v2261 = vmul.f32 %v2260, 0.5
          %v2262 = vtanh.pop %v2261
          %v2263 = vadd.f32 %v2262, 1.0
          %v2264 = vmul.f32 %v2263, 0.5
          %v2265 = vsub.f32 %v2258, %v2264
          %vm2266 = vcmask 24576
          %2267 = vst.msk [vmem:[#allocation8] sm:$0x1] %vm2266, %v2265
        $region64: #{gated_attention_forward.1} parent=51 // pred_fallthru
          _
        // Predicated region
        $region65: #{gated_attention_forward.1} parent=51 // pred_check
          %p2268 = pneg %p207
        $region66: #{gated_attention_forward.1} parent=51 // pred_check_branch
          %2270 = sbr.rel (%p2268) target = $region68
        $region67: #{gated_attention_forward.1} parent=51 // pred_region
          %s2272 = ssub.s32 16, 16
          %2273 = vsyncadd [#allocation6], %s2272
          %s2275 = sshll.u32 [#allocation8], 4
          %s2276 = int_to_ptr.vmem [resolvable:$true] %s2275
          %2278 = dma.vmem_to_hbm [thread:$0]  %s2276, 16, %s8, [#allocation6]
        $region68: #{gated_attention_forward.1} parent=51 // pred_fallthru
          _
        // Predicated region
        $region69: #{gated_attention_forward.1} parent=51 // pred_check
          %p2279 = pneg %p207
        $region70: #{gated_attention_forward.1} parent=51 // pred_check_branch
          %2281 = sbr.rel (%p2279) target = $region72
        $region71: #{gated_attention_forward.1} parent=51 // pred_region
          %2282 = dma.done [#allocation6], 16
        $region72: #{gated_attention_forward.1} parent=51 // pred_fallthru
          _
      $region52: #{gated_attention_forward.1} parent=5 // pred_fallthru
        _
      %p2283 = scmp.le.s32.totalorder 2, %s16
      // Predicated region
      $region73: #{gated_attention_forward.1} parent=5 // pred_check
        %p2284 = pneg %p2283
      $region74: #{gated_attention_forward.1} parent=5 // pred_check_branch
        %2286 = sbr.rel (%p2284) target = $region76
      $region75: #{gated_attention_forward.1} parent=5 // pred_region
        %s2287 = ssub.s32 %s16, 2
      $region76: #{gated_attention_forward.1} parent=5 // pred_fallthru
        _
    $region6: #{gated_attention_forward.1} parent=1 // loop_footer
      %s20 = sadd.s32 1, %s16
    $region7: #{gated_attention_forward.1} parent=1 // loop_footer_branch
      %15 = sbr.rel target = $region3
    $region8: #{gated_attention_forward.1} parent=1 // loop_exit
      _
    %2288 = vsyncpa [#allocation6], 1
    %s2289 = scalar_lea.sflag [#allocation6], 1
    %2290 = vsyncpa %s2289, 1
    %2291 = vsyncpa [#allocation7], 1
    %s2292 = scalar_lea.sflag [#allocation7], 1
    %2293 = vsyncpa %s2292, 1

</llo_original>
